<compile_context>
chip_gen: v7x
topology: tpu7x:2x2x1
jax: 0.10.0
libtpu: 0.0.40
codegen_flags: <defaults>
</compile_context>

<pallas_src>
import jax
import jax.numpy as jnp
from jax.experimental import pallas as pl
from jax.experimental.pallas import tpu as pltpu


def _round_up(x, m):
    return ((x + m - 1) // m) * m


# ----------------------------- Pallas kernel ------------------------------ #
def _row_conv_kernel(top_ref, bot_ref, w_ref, b_ref, o_ref):
    """One output row of a 3x3 / stride-2 conv as four MXU matmuls.

    top_ref, bot_ref: (1, 1, OW+1, 4*Cp)  space-to-depth rows oh and oh+1 (bf16)
    w_ref:            (2, 2, 4*Cp, Coutp) folded conv weights (bf16)
    b_ref:            (1, Coutp)          bias (f32, zero-padded)
    o_ref:            (1, 1, OW, Coutp)   output row
    """
    ow = o_ref.shape[2]
    coutp = o_ref.shape[3]
    rows = (top_ref, bot_ref)
    acc = jnp.zeros((ow, coutp), dtype=jnp.float32)
    for e in range(2):                 # vertical tap pair (s2d row oh / oh+1)
        for f in range(2):             # horizontal tap pair (s2d col ow / ow+1)
            xv = rows[e][0, 0, pl.ds(f, ow), :]          # (OW, 4*Cp) bf16
            acc = acc + jnp.dot(xv, w_ref[e, f],
                                preferred_element_type=jnp.float32)
    acc = acc + b_ref[...]                               # (1, Coutp) broadcast
    o_ref[0, 0] = jnp.maximum(acc, 0.0).astype(o_ref.dtype)


# ------------------------- per-layer conv wrapper -------------------------- #
def _conv3x3_s2_relu(x_nhwc, w_oihw, bias, cout_p, out_dtype):
    """Conv2d(k=3, s=2, p=1) + ReLU (PyTorch semantics), NHWC in / NHWC out.

    Input channels may be zero-padded to Cp >= Cin; output channels are
    zero-padded to cout_p (zeros flow through ReLU as zeros).
    """
    N, H, W, Cp = x_nhwc.shape
    Cout, Cin = w_oihw.shape[0], w_oihw.shape[1]
    assert Cin <= Cp
    OH = (H - 1) // 2 + 1
    OW = (W - 1) // 2 + 1
    K = 4 * Cp

    # Zero-pad so the padded image is exactly (2*(OH+1), 2*(OW+1)).  Extra
    # bottom/right zeros are only ever multiplied by zero weight taps.
    ph = 2 * (OH + 1) - H - 1
    pw = 2 * (OW + 1) - W - 1
    xpad = jnp.pad(x_nhwc, ((0, 0), (1, ph), (1, pw), (0, 0)))

    # Space-to-depth: s2d[n, i, j, (2a+b)*Cp + c] = xpad[n, 2i+a, 2j+b, c]
    s2d = (
        xpad.reshape(N, OH + 1, 2, OW + 1, 2, Cp)
        .transpose(0, 1, 3, 2, 4, 5)
        .reshape(N, OH + 1, OW + 1, K)
        .astype(jnp.bfloat16)
    )

    # Fold weights: w2[e, f, (2a+b)*Cp + c, o] = w[o, c, 2e+a, 2f+b]
    # (taps with 2e+a > 2 or 2f+b > 2 are zero).
    w4 = jnp.pad(
        w_oihw.astype(jnp.float32),
        ((0, cout_p - Cout), (0, Cp - Cin), (0, 1), (0, 1)),
    )                                                    # (Coutp, Cp, 4, 4)
    w2 = (
        w4.reshape(cout_p, Cp, 2, 2, 2, 2)               # [o, c, e, a, f, b]
        .transpose(2, 4, 3, 5, 1, 0)                     # [e, f, a, b, c, o]
        .reshape(2, 2, K, cout_p)
        .astype(jnp.bfloat16)
    )
    b2 = jnp.pad(bias.astype(jnp.float32), (0, cout_p - Cout)).reshape(1, cout_p)

    out_itemsize = 4 if out_dtype == jnp.float32 else 2
    flops = 8 * N * OH * OW * K * cout_p                 # 4 taps x K MACs x 2
    bytes_accessed = (
        2 * s2d.size * 2 + w2.size * 2 + b2.size * 4
        + N * OH * OW * cout_p * out_itemsize
    )

    return pl.pallas_call(
        _row_conv_kernel,
        out_shape=jax.ShapeDtypeStruct((N, OH, OW, cout_p), out_dtype),
        grid=(N, OH),
        in_specs=[
            # s2d row oh ("top") and row oh+1 ("bot") -- same array, two views.
            pl.BlockSpec((1, 1, OW + 1, K), lambda n, i: (n, i, 0, 0)),
            pl.BlockSpec((1, 1, OW + 1, K), lambda n, i: (n, i + 1, 0, 0)),
            pl.BlockSpec((2, 2, K, cout_p), lambda n, i: (0, 0, 0, 0)),
            pl.BlockSpec((1, cout_p), lambda n, i: (0, 0)),
        ],
        out_specs=pl.BlockSpec((1, 1, OW, cout_p), lambda n, i: (n, i, 0, 0)),
        compiler_params=pltpu.CompilerParams(
            dimension_semantics=("parallel", "parallel")
        ),
        cost_estimate=pl.CostEstimate(
            flops=flops, transcendentals=0, bytes_accessed=bytes_accessed
        ),
    )(s2d, s2d, w2, b2)


# ------------------------------ forward pass ------------------------------- #
def feature_extractor_forward(x_nchw, params):
    """Equivalent of FeatureExtractor.forward: 4x (Conv2d k3 s2 p1 + ReLU)."""
    x = jnp.transpose(x_nchw, (0, 2, 3, 1))              # NCHW -> NHWC (once)
    cin0 = x.shape[-1]
    cin_p = _round_up(cin0, 8)                           # K = 4*Cin alignment
    if cin_p > cin0:
        x = jnp.pad(x, ((0, 0), (0, 0), (0, 0), (0, cin_p - cin0)))

    n_layers = len(params)
    for li, (w, b) in enumerate(params):
        last = li == n_layers - 1
        cout_p = _round_up(w.shape[0], 128)              # lane-dense channels
        out_dtype = jnp.float32 if last else jnp.bfloat16
        x = _conv3x3_s2_relu(x, w, b, cout_p, out_dtype)

    x = x[..., : params[-1][0].shape[0]]                 # strip channel pad
    return jnp.transpose(x, (0, 3, 1, 2))                # NHWC -> NCHW (once)


# ------------------------------ parameters --------------------------------- #
def init_feature_extractor_params(input_channels=3, seed=0):
    """Deterministic synthetic params matching nn.Conv2d shapes / init range."""
    channels = [input_channels, 32, 64, 128, 256]
    key = jax.random.PRNGKey(seed)
    params = []
    for i in range(4):
        cin, cout = channels[i], channels[i + 1]
        key, kw, kb = jax.random.split(key, 3)
        fan_in = cin * 3 * 3
        bound = 1.0 / jnp.sqrt(jnp.float32(fan_in))
        w = jax.random.uniform(kw, (cout, cin, 3, 3), jnp.float32, -bound, bound)
        b = jax.random.uniform(kb, (cout,), jnp.float32, -bound, bound)
        params.append((w, b))
    return params


# ------------------------- pure-JAX reference check ------------------------ #
def _reference_forward(x_nchw, params):
    y = x_nchw
    for (w, b) in params:
        y = jax.lax.conv_general_dilated(
            y, w, window_strides=(2, 2), padding=((1, 1), (1, 1)),
            dimension_numbers=("NCHW", "OIHW", "NCHW"))
        y = jnp.maximum(y + b.reshape(1, -1, 1, 1), 0.0)
    return y


# --------------------------------- main ------------------------------------ #
if __name__ == "__main__":
    key = jax.random.PRNGKey(0)
    x = jax.random.normal(key, (2, 3, 16, 16), dtype=jnp.float32)

    params = init_feature_extractor_params(input_channels=3, seed=0)

    fwd = jax.jit(lambda xx: feature_extractor_forward(xx, params))
    out = fwd(x)
    jax.block_until_ready(out)

    # Spatial: 16 -> 8 -> 4 -> 2 -> 1, channels -> 256.
    assert out.shape == (2, 256, 1, 1), out.shape

    # Numerical check vs. an XLA f32 reference (kernel uses bf16 operands,
    # f32 accumulation), generous tolerance for the 4-layer bf16 chain.
    ref = _reference_forward(x, params)
    max_err = float(jnp.max(jnp.abs(out - ref)))
    scale = float(jnp.max(jnp.abs(ref)))
    assert max_err <= 0.05 * max(scale, 1.0), (max_err, scale)

    print("KERNEL_OK")
</pallas_src>

<mosaic_0001>
module attributes {stable_mosaic.version = 11 : i64} {
  func.func @_row_conv_kernel(%arg0: i32, %arg1: i32, %arg2: memref<1x1x9x32xbf16, #tpu.memory_space<vmem>>, %arg3: memref<1x1x9x32xbf16, #tpu.memory_space<vmem>>, %arg4: memref<2x2x32x128xbf16, #tpu.memory_space<vmem>>, %arg5: memref<1x128xf32, #tpu.memory_space<vmem>>, %arg6: memref<1x1x8x128xbf16, #tpu.memory_space<vmem>>) attributes {dimension_semantics = [#tpu.dimension_semantics<parallel>, #tpu.dimension_semantics<parallel>], iteration_bounds = array<i64: 2, 8>, scalar_prefetch = 0 : i64, scratch_operands = 0 : i64, tpu.core_type = #tpu.core_type<tc>, window_params = [{transform_indices = @transform_0, window_bounds = array<i64: 1, 1, 9, 32>}, {transform_indices = @transform_1, window_bounds = array<i64: 1, 1, 9, 32>}, {pipeline_mode = #tpu.pipeline_mode<synchronous>, transform_indices = @transform_2, window_bounds = array<i64: 2, 2, 32, 128>}, {pipeline_mode = #tpu.pipeline_mode<synchronous>, transform_indices = @transform_3, window_bounds = array<i64: 1, 128>}, {transform_indices = @transform_4, window_bounds = array<i64: 1, 1, 8, 128>}]} {
    %cst = arith.constant 0.000000e+00 : f32
    %0 = vector.broadcast %cst : f32 to vector<8x128xf32>
    %c0 = arith.constant 0 : index
    %c0_0 = arith.constant 0 : index
    %c0_1 = arith.constant 0 : index
    %c0_2 = arith.constant 0 : index
    %1 = vector.load %arg2[%c0, %c0_0, %c0_1, %c0_2] : memref<1x1x9x32xbf16, #tpu.memory_space<vmem>>, vector<1x1x8x32xbf16>
    %2 = vector.shape_cast %1 : vector<1x1x8x32xbf16> to vector<8x32xbf16>
    %c0_3 = arith.constant 0 : index
    %c0_4 = arith.constant 0 : index
    %c0_5 = arith.constant 0 : index
    %c0_6 = arith.constant 0 : index
    %3 = vector.load %arg4[%c0_3, %c0_4, %c0_5, %c0_6] : memref<2x2x32x128xbf16, #tpu.memory_space<vmem>>, vector<1x1x32x128xbf16>
    %4 = vector.shape_cast %3 : vector<1x1x32x128xbf16> to vector<32x128xbf16>
    %cst_7 = arith.constant dense<0.000000e+00> : vector<8x128xf32>
    %5 = tpu.matmul %2, %4, %cst_7 {dimension_numbers = #tpu.dot_dimension_numbers<[1], [0], [0], [1], [0, 0, 1, 1], [], []>} : vector<8x32xbf16>, vector<32x128xbf16>, vector<8x128xf32> -> vector<8x128xf32>
    %6 = arith.addf %0, %5 : vector<8x128xf32>
    %c0_8 = arith.constant 0 : index
    %c0_9 = arith.constant 0 : index
    %c1 = arith.constant 1 : index
    %c0_10 = arith.constant 0 : index
    %7 = vector.load %arg2[%c0_8, %c0_9, %c1, %c0_10] : memref<1x1x9x32xbf16, #tpu.memory_space<vmem>>, vector<1x1x8x32xbf16>
    %8 = vector.shape_cast %7 : vector<1x1x8x32xbf16> to vector<8x32xbf16>
    %c0_11 = arith.constant 0 : index
    %c1_12 = arith.constant 1 : index
    %c0_13 = arith.constant 0 : index
    %c0_14 = arith.constant 0 : index
    %9 = vector.load %arg4[%c0_11, %c1_12, %c0_13, %c0_14] : memref<2x2x32x128xbf16, #tpu.memory_space<vmem>>, vector<1x1x32x128xbf16>
    %10 = vector.shape_cast %9 : vector<1x1x32x128xbf16> to vector<32x128xbf16>
    %cst_15 = arith.constant dense<0.000000e+00> : vector<8x128xf32>
    %11 = tpu.matmul %8, %10, %cst_15 {dimension_numbers = #tpu.dot_dimension_numbers<[1], [0], [0], [1], [0, 0, 1, 1], [], []>} : vector<8x32xbf16>, vector<32x128xbf16>, vector<8x128xf32> -> vector<8x128xf32>
    %12 = arith.addf %6, %11 : vector<8x128xf32>
    %c0_16 = arith.constant 0 : index
    %c0_17 = arith.constant 0 : index
    %c0_18 = arith.constant 0 : index
    %c0_19 = arith.constant 0 : index
    %13 = vector.load %arg3[%c0_16, %c0_17, %c0_18, %c0_19] : memref<1x1x9x32xbf16, #tpu.memory_space<vmem>>, vector<1x1x8x32xbf16>
    %14 = vector.shape_cast %13 : vector<1x1x8x32xbf16> to vector<8x32xbf16>
    %c1_20 = arith.constant 1 : index
    %c0_21 = arith.constant 0 : index
    %c0_22 = arith.constant 0 : index
    %c0_23 = arith.constant 0 : index
    %15 = vector.load %arg4[%c1_20, %c0_21, %c0_22, %c0_23] : memref<2x2x32x128xbf16, #tpu.memory_space<vmem>>, vector<1x1x32x128xbf16>
    %16 = vector.shape_cast %15 : vector<1x1x32x128xbf16> to vector<32x128xbf16>
    %cst_24 = arith.constant dense<0.000000e+00> : vector<8x128xf32>
    %17 = tpu.matmul %14, %16, %cst_24 {dimension_numbers = #tpu.dot_dimension_numbers<[1], [0], [0], [1], [0, 0, 1, 1], [], []>} : vector<8x32xbf16>, vector<32x128xbf16>, vector<8x128xf32> -> vector<8x128xf32>
    %18 = arith.addf %12, %17 : vector<8x128xf32>
    %c0_25 = arith.constant 0 : index
    %c0_26 = arith.constant 0 : index
    %c1_27 = arith.constant 1 : index
    %c0_28 = arith.constant 0 : index
    %19 = vector.load %arg3[%c0_25, %c0_26, %c1_27, %c0_28] : memref<1x1x9x32xbf16, #tpu.memory_space<vmem>>, vector<1x1x8x32xbf16>
    %20 = vector.shape_cast %19 : vector<1x1x8x32xbf16> to vector<8x32xbf16>
    %c1_29 = arith.constant 1 : index
    %c1_30 = arith.constant 1 : index
    %c0_31 = arith.constant 0 : index
    %c0_32 = arith.constant 0 : index
    %21 = vector.load %arg4[%c1_29, %c1_30, %c0_31, %c0_32] : memref<2x2x32x128xbf16, #tpu.memory_space<vmem>>, vector<1x1x32x128xbf16>
    %22 = vector.shape_cast %21 : vector<1x1x32x128xbf16> to vector<32x128xbf16>
    %cst_33 = arith.constant dense<0.000000e+00> : vector<8x128xf32>
    %23 = tpu.matmul %20, %22, %cst_33 {dimension_numbers = #tpu.dot_dimension_numbers<[1], [0], [0], [1], [0, 0, 1, 1], [], []>} : vector<8x32xbf16>, vector<32x128xbf16>, vector<8x128xf32> -> vector<8x128xf32>
    %24 = arith.addf %18, %23 : vector<8x128xf32>
    %c0_34 = arith.constant 0 : index
    %c0_35 = arith.constant 0 : index
    %25 = vector.load %arg5[%c0_34, %c0_35] : memref<1x128xf32, #tpu.memory_space<vmem>>, vector<1x128xf32>
    %26 = vector.broadcast %25 : vector<1x128xf32> to vector<8x128xf32>
    %27 = arith.addf %24, %26 : vector<8x128xf32>
    %cst_36 = arith.constant 0.000000e+00 : f32
    %28 = vector.broadcast %cst_36 : f32 to vector<8x128xf32>
    %29 = arith.maximumf %27, %28 : vector<8x128xf32>
    %30 = arith.truncf %29 : vector<8x128xf32> to vector<8x128xbf16>
    %c0_37 = arith.constant 0 : index
    %c0_38 = arith.constant 0 : index
    %c0_39 = arith.constant 0 : index
    %c0_40 = arith.constant 0 : index
    %31 = vector.load %arg6[%c0_37, %c0_38, %c0_39, %c0_40] : memref<1x1x8x128xbf16, #tpu.memory_space<vmem>>, vector<1x1x8x128xbf16>
    %32 = vector.shape_cast %31 : vector<1x1x8x128xbf16> to vector<8x128xbf16>
    %33 = vector.shape_cast %30 : vector<8x128xbf16> to vector<1x1x8x128xbf16>
    tpu.vector_store %arg6[%c0_37, %c0_38, %c0_39, %c0_40], %33 {strides = array<i32>} : memref<1x1x8x128xbf16, #tpu.memory_space<vmem>>, vector<1x1x8x128xbf16>,
    return
  }
  func.func @transform_0(%arg0: i32, %arg1: i32) -> (i32, i32, i32, i32) {
    %c0_i32 = arith.constant 0 : i32
    %c0_i32_0 = arith.constant 0 : i32
    %c0_i32_1 = arith.constant 0 : i32
    return %arg0, %arg1, %c0_i32, %c0_i32_0 : i32, i32, i32, i32
  }
  func.func @transform_1(%arg0: i32, %arg1: i32) -> (i32, i32, i32, i32) {
    %c1_i32 = arith.constant 1 : i32
    %0 = arith.addi %arg1, %c1_i32 : i32
    %c0_i32 = arith.constant 0 : i32
    %c0_i32_0 = arith.constant 0 : i32
    %c0_i32_1 = arith.constant 0 : i32
    return %arg0, %0, %c0_i32, %c0_i32_0 : i32, i32, i32, i32
  }
  func.func @transform_2(%arg0: i32, %arg1: i32) -> (i32, i32, i32, i32) {
    %c0_i32 = arith.constant 0 : i32
    %c0_i32_0 = arith.constant 0 : i32
    %c0_i32_1 = arith.constant 0 : i32
    %c0_i32_2 = arith.constant 0 : i32
    %c0_i32_3 = arith.constant 0 : i32
    return %c0_i32, %c0_i32_0, %c0_i32_1, %c0_i32_2 : i32, i32, i32, i32
  }
  func.func @transform_3(%arg0: i32, %arg1: i32) -> (i32, i32) {
    %c0_i32 = arith.constant 0 : i32
    %c0_i32_0 = arith.constant 0 : i32
    %c0_i32_1 = arith.constant 0 : i32
    return %c0_i32, %c0_i32_0 : i32, i32
  }
  func.func @transform_4(%arg0: i32, %arg1: i32) -> (i32, i32, i32, i32) {
    %c0_i32 = arith.constant 0 : i32
    %c0_i32_0 = arith.constant 0 : i32
    %c0_i32_1 = arith.constant 0 : i32
    return %arg0, %arg1, %c0_i32, %c0_i32_0 : i32, i32, i32, i32
  }
}

module attributes {stable_mosaic.version = 11 : i64} {
  func.func @_row_conv_kernel(%arg0: i32, %arg1: i32, %arg2: memref<1x1x5x512xbf16, #tpu.memory_space<vmem>>, %arg3: memref<1x1x5x512xbf16, #tpu.memory_space<vmem>>, %arg4: memref<2x2x512x128xbf16, #tpu.memory_space<vmem>>, %arg5: memref<1x128xf32, #tpu.memory_space<vmem>>, %arg6: memref<1x1x4x128xbf16, #tpu.memory_space<vmem>>) attributes {dimension_semantics = [#tpu.dimension_semantics<parallel>, #tpu.dimension_semantics<parallel>], iteration_bounds = array<i64: 2, 4>, scalar_prefetch = 0 : i64, scratch_operands = 0 : i64, tpu.core_type = #tpu.core_type<tc>, window_params = [{transform_indices = @transform_0, window_bounds = array<i64: 1, 1, 5, 512>}, {transform_indices = @transform_1, window_bounds = array<i64: 1, 1, 5, 512>}, {pipeline_mode = #tpu.pipeline_mode<synchronous>, transform_indices = @transform_2, window_bounds = array<i64: 2, 2, 512, 128>}, {pipeline_mode = #tpu.pipeline_mode<synchronous>, transform_indices = @transform_3, window_bounds = array<i64: 1, 128>}, {transform_indices = @transform_4, window_bounds = array<i64: 1, 1, 4, 128>}]} {
    %cst = arith.constant 0.000000e+00 : f32
    %0 = vector.broadcast %cst : f32 to vector<4x128xf32>
    %c0 = arith.constant 0 : index
    %c0_0 = arith.constant 0 : index
    %c0_1 = arith.constant 0 : index
    %c0_2 = arith.constant 0 : index
    %1 = vector.load %arg2[%c0, %c0_0, %c0_1, %c0_2] : memref<1x1x5x512xbf16, #tpu.memory_space<vmem>>, vector<1x1x4x512xbf16>
    %2 = vector.shape_cast %1 : vector<1x1x4x512xbf16> to vector<4x512xbf16>
    %c0_3 = arith.constant 0 : index
    %c0_4 = arith.constant 0 : index
    %c0_5 = arith.constant 0 : index
    %c0_6 = arith.constant 0 : index
    %3 = vector.load %arg4[%c0_3, %c0_4, %c0_5, %c0_6] : memref<2x2x512x128xbf16, #tpu.memory_space<vmem>>, vector<1x1x512x128xbf16>
    %4 = vector.shape_cast %3 : vector<1x1x512x128xbf16> to vector<512x128xbf16>
    %cst_7 = arith.constant dense<0.000000e+00> : vector<4x128xf32>
    %5 = tpu.matmul %2, %4, %cst_7 {dimension_numbers = #tpu.dot_dimension_numbers<[1], [0], [0], [1], [0, 0, 1, 1], [], []>} : vector<4x512xbf16>, vector<512x128xbf16>, vector<4x128xf32> -> vector<4x128xf32>
    %6 = arith.addf %0, %5 : vector<4x128xf32>
    %c0_8 = arith.constant 0 : index
    %c0_9 = arith.constant 0 : index
    %c1 = arith.constant 1 : index
    %c0_10 = arith.constant 0 : index
    %7 = vector.load %arg2[%c0_8, %c0_9, %c1, %c0_10] : memref<1x1x5x512xbf16, #tpu.memory_space<vmem>>, vector<1x1x4x512xbf16>
    %8 = vector.shape_cast %7 : vector<1x1x4x512xbf16> to vector<4x512xbf16>
    %c0_11 = arith.constant 0 : index
    %c1_12 = arith.constant 1 : index
    %c0_13 = arith.constant 0 : index
    %c0_14 = arith.constant 0 : index
    %9 = vector.load %arg4[%c0_11, %c1_12, %c0_13, %c0_14] : memref<2x2x512x128xbf16, #tpu.memory_space<vmem>>, vector<1x1x512x128xbf16>
    %10 = vector.shape_cast %9 : vector<1x1x512x128xbf16> to vector<512x128xbf16>
    %cst_15 = arith.constant dense<0.000000e+00> : vector<4x128xf32>
    %11 = tpu.matmul %8, %10, %cst_15 {dimension_numbers = #tpu.dot_dimension_numbers<[1], [0], [0], [1], [0, 0, 1, 1], [], []>} : vector<4x512xbf16>, vector<512x128xbf16>, vector<4x128xf32> -> vector<4x128xf32>
    %12 = arith.addf %6, %11 : vector<4x128xf32>
    %c0_16 = arith.constant 0 : index
    %c0_17 = arith.constant 0 : index
    %c0_18 = arith.constant 0 : index
    %c0_19 = arith.constant 0 : index
    %13 = vector.load %arg3[%c0_16, %c0_17, %c0_18, %c0_19] : memref<1x1x5x512xbf16, #tpu.memory_space<vmem>>, vector<1x1x4x512xbf16>
    %14 = vector.shape_cast %13 : vector<1x1x4x512xbf16> to vector<4x512xbf16>
    %c1_20 = arith.constant 1 : index
    %c0_21 = arith.constant 0 : index
    %c0_22 = arith.constant 0 : index
    %c0_23 = arith.constant 0 : index
    %15 = vector.load %arg4[%c1_20, %c0_21, %c0_22, %c0_23] : memref<2x2x512x128xbf16, #tpu.memory_space<vmem>>, vector<1x1x512x128xbf16>
    %16 = vector.shape_cast %15 : vector<1x1x512x128xbf16> to vector<512x128xbf16>
    %cst_24 = arith.constant dense<0.000000e+00> : vector<4x128xf32>
    %17 = tpu.matmul %14, %16, %cst_24 {dimension_numbers = #tpu.dot_dimension_numbers<[1], [0], [0], [1], [0, 0, 1, 1], [], []>} : vector<4x512xbf16>, vector<512x128xbf16>, vector<4x128xf32> -> vector<4x128xf32>
    %18 = arith.addf %12, %17 : vector<4x128xf32>
    %c0_25 = arith.constant 0 : index
    %c0_26 = arith.constant 0 : index
    %c1_27 = arith.constant 1 : index
    %c0_28 = arith.constant 0 : index
    %19 = vector.load %arg3[%c0_25, %c0_26, %c1_27, %c0_28] : memref<1x1x5x512xbf16, #tpu.memory_space<vmem>>, vector<1x1x4x512xbf16>
    %20 = vector.shape_cast %19 : vector<1x1x4x512xbf16> to vector<4x512xbf16>
    %c1_29 = arith.constant 1 : index
    %c1_30 = arith.constant 1 : index
    %c0_31 = arith.constant 0 : index
    %c0_32 = arith.constant 0 : index
    %21 = vector.load %arg4[%c1_29, %c1_30, %c0_31, %c0_32] : memref<2x2x512x128xbf16, #tpu.memory_space<vmem>>, vector<1x1x512x128xbf16>
    %22 = vector.shape_cast %21 : vector<1x1x512x128xbf16> to vector<512x128xbf16>
    %cst_33 = arith.constant dense<0.000000e+00> : vector<4x128xf32>
    %23 = tpu.matmul %20, %22, %cst_33 {dimension_numbers = #tpu.dot_dimension_numbers<[1], [0], [0], [1], [0, 0, 1, 1], [], []>} : vector<4x512xbf16>, vector<512x128xbf16>, vector<4x128xf32> -> vector<4x128xf32>
    %24 = arith.addf %18, %23 : vector<4x128xf32>
    %c0_34 = arith.constant 0 : index
    %c0_35 = arith.constant 0 : index
    %25 = vector.load %arg5[%c0_34, %c0_35] : memref<1x128xf32, #tpu.memory_space<vmem>>, vector<1x128xf32>
    %26 = vector.broadcast %25 : vector<1x128xf32> to vector<4x128xf32>
    %27 = arith.addf %24, %26 : vector<4x128xf32>
    %cst_36 = arith.constant 0.000000e+00 : f32
    %28 = vector.broadcast %cst_36 : f32 to vector<4x128xf32>
    %29 = arith.maximumf %27, %28 : vector<4x128xf32>
    %30 = arith.truncf %29 : vector<4x128xf32> to vector<4x128xbf16>
    %c0_37 = arith.constant 0 : index
    %c0_38 = arith.constant 0 : index
    %c0_39 = arith.constant 0 : index
    %c0_40 = arith.constant 0 : index
    %31 = vector.load %arg6[%c0_37, %c0_38, %c0_39, %c0_40] : memref<1x1x4x128xbf16, #tpu.memory_space<vmem>>, vector<1x1x4x128xbf16>
    %32 = vector.shape_cast %31 : vector<1x1x4x128xbf16> to vector<4x128xbf16>
    %33 = vector.shape_cast %30 : vector<4x128xbf16> to vector<1x1x4x128xbf16>
    tpu.vector_store %arg6[%c0_37, %c0_38, %c0_39, %c0_40], %33 {strides = array<i32>} : memref<1x1x4x128xbf16, #tpu.memory_space<vmem>>, vector<1x1x4x128xbf16>,
    return
  }
  func.func @transform_0(%arg0: i32, %arg1: i32) -> (i32, i32, i32, i32) {
    %c0_i32 = arith.constant 0 : i32
    %c0_i32_0 = arith.constant 0 : i32
    %c0_i32_1 = arith.constant 0 : i32
    return %arg0, %arg1, %c0_i32, %c0_i32_0 : i32, i32, i32, i32
  }
  func.func @transform_1(%arg0: i32, %arg1: i32) -> (i32, i32, i32, i32) {
    %c1_i32 = arith.constant 1 : i32
    %0 = arith.addi %arg1, %c1_i32 : i32
    %c0_i32 = arith.constant 0 : i32
    %c0_i32_0 = arith.constant 0 : i32
    %c0_i32_1 = arith.constant 0 : i32
    return %arg0, %0, %c0_i32, %c0_i32_0 : i32, i32, i32, i32
  }
  func.func @transform_2(%arg0: i32, %arg1: i32) -> (i32, i32, i32, i32) {
    %c0_i32 = arith.constant 0 : i32
    %c0_i32_0 = arith.constant 0 : i32
    %c0_i32_1 = arith.constant 0 : i32
    %c0_i32_2 = arith.constant 0 : i32
    %c0_i32_3 = arith.constant 0 : i32
    return %c0_i32, %c0_i32_0, %c0_i32_1, %c0_i32_2 : i32, i32, i32, i32
  }
  func.func @transform_3(%arg0: i32, %arg1: i32) -> (i32, i32) {
    %c0_i32 = arith.constant 0 : i32
    %c0_i32_0 = arith.constant 0 : i32
    %c0_i32_1 = arith.constant 0 : i32
    return %c0_i32, %c0_i32_0 : i32, i32
  }
  func.func @transform_4(%arg0: i32, %arg1: i32) -> (i32, i32, i32, i32) {
    %c0_i32 = arith.constant 0 : i32
    %c0_i32_0 = arith.constant 0 : i32
    %c0_i32_1 = arith.constant 0 : i32
    return %arg0, %arg1, %c0_i32, %c0_i32_0 : i32, i32, i32, i32
  }
}

module attributes {stable_mosaic.version = 11 : i64} {
  func.func @_row_conv_kernel(%arg0: i32, %arg1: i32, %arg2: memref<1x1x3x512xbf16, #tpu.memory_space<vmem>>, %arg3: memref<1x1x3x512xbf16, #tpu.memory_space<vmem>>, %arg4: memref<2x2x512x128xbf16, #tpu.memory_space<vmem>>, %arg5: memref<1x128xf32, #tpu.memory_space<vmem>>, %arg6: memref<1x1x2x128xbf16, #tpu.memory_space<vmem>>) attributes {dimension_semantics = [#tpu.dimension_semantics<parallel>, #tpu.dimension_semantics<parallel>], iteration_bounds = array<i64: 2, 2>, scalar_prefetch = 0 : i64, scratch_operands = 0 : i64, tpu.core_type = #tpu.core_type<tc>, window_params = [{transform_indices = @transform_0, window_bounds = array<i64: 1, 1, 3, 512>}, {transform_indices = @transform_1, window_bounds = array<i64: 1, 1, 3, 512>}, {pipeline_mode = #tpu.pipeline_mode<synchronous>, transform_indices = @transform_2, window_bounds = array<i64: 2, 2, 512, 128>}, {pipeline_mode = #tpu.pipeline_mode<synchronous>, transform_indices = @transform_3, window_bounds = array<i64: 1, 128>}, {transform_indices = @transform_4, window_bounds = array<i64: 1, 1, 2, 128>}]} {
    %cst = arith.constant 0.000000e+00 : f32
    %0 = vector.broadcast %cst : f32 to vector<2x128xf32>
    %c0 = arith.constant 0 : index
    %c0_0 = arith.constant 0 : index
    %c0_1 = arith.constant 0 : index
    %c0_2 = arith.constant 0 : index
    %1 = vector.load %arg2[%c0, %c0_0, %c0_1, %c0_2] : memref<1x1x3x512xbf16, #tpu.memory_space<vmem>>, vector<1x1x2x512xbf16>
    %2 = vector.shape_cast %1 : vector<1x1x2x512xbf16> to vector<2x512xbf16>
    %c0_3 = arith.constant 0 : index
    %c0_4 = arith.constant 0 : index
    %c0_5 = arith.constant 0 : index
    %c0_6 = arith.constant 0 : index
    %3 = vector.load %arg4[%c0_3, %c0_4, %c0_5, %c0_6] : memref<2x2x512x128xbf16, #tpu.memory_space<vmem>>, vector<1x1x512x128xbf16>
    %4 = vector.shape_cast %3 : vector<1x1x512x128xbf16> to vector<512x128xbf16>
    %cst_7 = arith.constant dense<0.000000e+00> : vector<2x128xf32>
    %5 = tpu.matmul %2, %4, %cst_7 {dimension_numbers = #tpu.dot_dimension_numbers<[1], [0], [0], [1], [0, 0, 1, 1], [], []>} : vector<2x512xbf16>, vector<512x128xbf16>, vector<2x128xf32> -> vector<2x128xf32>
    %6 = arith.addf %0, %5 : vector<2x128xf32>
    %c0_8 = arith.constant 0 : index
    %c0_9 = arith.constant 0 : index
    %c1 = arith.constant 1 : index
    %c0_10 = arith.constant 0 : index
    %7 = vector.load %arg2[%c0_8, %c0_9, %c1, %c0_10] : memref<1x1x3x512xbf16, #tpu.memory_space<vmem>>, vector<1x1x2x512xbf16>
    %8 = vector.shape_cast %7 : vector<1x1x2x512xbf16> to vector<2x512xbf16>
    %c0_11 = arith.constant 0 : index
    %c1_12 = arith.constant 1 : index
    %c0_13 = arith.constant 0 : index
    %c0_14 = arith.constant 0 : index
    %9 = vector.load %arg4[%c0_11, %c1_12, %c0_13, %c0_14] : memref<2x2x512x128xbf16, #tpu.memory_space<vmem>>, vector<1x1x512x128xbf16>
    %10 = vector.shape_cast %9 : vector<1x1x512x128xbf16> to vector<512x128xbf16>
    %cst_15 = arith.constant dense<0.000000e+00> : vector<2x128xf32>
    %11 = tpu.matmul %8, %10, %cst_15 {dimension_numbers = #tpu.dot_dimension_numbers<[1], [0], [0], [1], [0, 0, 1, 1], [], []>} : vector<2x512xbf16>, vector<512x128xbf16>, vector<2x128xf32> -> vector<2x128xf32>
    %12 = arith.addf %6, %11 : vector<2x128xf32>
    %c0_16 = arith.constant 0 : index
    %c0_17 = arith.constant 0 : index
    %c0_18 = arith.constant 0 : index
    %c0_19 = arith.constant 0 : index
    %13 = vector.load %arg3[%c0_16, %c0_17, %c0_18, %c0_19] : memref<1x1x3x512xbf16, #tpu.memory_space<vmem>>, vector<1x1x2x512xbf16>
    %14 = vector.shape_cast %13 : vector<1x1x2x512xbf16> to vector<2x512xbf16>
    %c1_20 = arith.constant 1 : index
    %c0_21 = arith.constant 0 : index
    %c0_22 = arith.constant 0 : index
    %c0_23 = arith.constant 0 : index
    %15 = vector.load %arg4[%c1_20, %c0_21, %c0_22, %c0_23] : memref<2x2x512x128xbf16, #tpu.memory_space<vmem>>, vector<1x1x512x128xbf16>
    %16 = vector.shape_cast %15 : vector<1x1x512x128xbf16> to vector<512x128xbf16>
    %cst_24 = arith.constant dense<0.000000e+00> : vector<2x128xf32>
    %17 = tpu.matmul %14, %16, %cst_24 {dimension_numbers = #tpu.dot_dimension_numbers<[1], [0], [0], [1], [0, 0, 1, 1], [], []>} : vector<2x512xbf16>, vector<512x128xbf16>, vector<2x128xf32> -> vector<2x128xf32>
    %18 = arith.addf %12, %17 : vector<2x128xf32>
    %c0_25 = arith.constant 0 : index
    %c0_26 = arith.constant 0 : index
    %c1_27 = arith.constant 1 : index
    %c0_28 = arith.constant 0 : index
    %19 = vector.load %arg3[%c0_25, %c0_26, %c1_27, %c0_28] : memref<1x1x3x512xbf16, #tpu.memory_space<vmem>>, vector<1x1x2x512xbf16>
    %20 = vector.shape_cast %19 : vector<1x1x2x512xbf16> to vector<2x512xbf16>
    %c1_29 = arith.constant 1 : index
    %c1_30 = arith.constant 1 : index
    %c0_31 = arith.constant 0 : index
    %c0_32 = arith.constant 0 : index
    %21 = vector.load %arg4[%c1_29, %c1_30, %c0_31, %c0_32] : memref<2x2x512x128xbf16, #tpu.memory_space<vmem>>, vector<1x1x512x128xbf16>
    %22 = vector.shape_cast %21 : vector<1x1x512x128xbf16> to vector<512x128xbf16>
    %cst_33 = arith.constant dense<0.000000e+00> : vector<2x128xf32>
    %23 = tpu.matmul %20, %22, %cst_33 {dimension_numbers = #tpu.dot_dimension_numbers<[1], [0], [0], [1], [0, 0, 1, 1], [], []>} : vector<2x512xbf16>, vector<512x128xbf16>, vector<2x128xf32> -> vector<2x128xf32>
    %24 = arith.addf %18, %23 : vector<2x128xf32>
    %c0_34 = arith.constant 0 : index
    %c0_35 = arith.constant 0 : index
    %25 = vector.load %arg5[%c0_34, %c0_35] : memref<1x128xf32, #tpu.memory_space<vmem>>, vector<1x128xf32>
    %26 = vector.broadcast %25 : vector<1x128xf32> to vector<2x128xf32>
    %27 = arith.addf %24, %26 : vector<2x128xf32>
    %cst_36 = arith.constant 0.000000e+00 : f32
    %28 = vector.broadcast %cst_36 : f32 to vector<2x128xf32>
    %29 = arith.maximumf %27, %28 : vector<2x128xf32>
    %30 = arith.truncf %29 : vector<2x128xf32> to vector<2x128xbf16>
    %c0_37 = arith.constant 0 : index
    %c0_38 = arith.constant 0 : index
    %c0_39 = arith.constant 0 : index
    %c0_40 = arith.constant 0 : index
    %31 = vector.load %arg6[%c0_37, %c0_38, %c0_39, %c0_40] : memref<1x1x2x128xbf16, #tpu.memory_space<vmem>>, vector<1x1x2x128xbf16>
    %32 = vector.shape_cast %31 : vector<1x1x2x128xbf16> to vector<2x128xbf16>
    %33 = vector.shape_cast %30 : vector<2x128xbf16> to vector<1x1x2x128xbf16>
    tpu.vector_store %arg6[%c0_37, %c0_38, %c0_39, %c0_40], %33 {strides = array<i32>} : memref<1x1x2x128xbf16, #tpu.memory_space<vmem>>, vector<1x1x2x128xbf16>,
    return
  }
  func.func @transform_0(%arg0: i32, %arg1: i32) -> (i32, i32, i32, i32) {
    %c0_i32 = arith.constant 0 : i32
    %c0_i32_0 = arith.constant 0 : i32
    %c0_i32_1 = arith.constant 0 : i32
    return %arg0, %arg1, %c0_i32, %c0_i32_0 : i32, i32, i32, i32
  }
  func.func @transform_1(%arg0: i32, %arg1: i32) -> (i32, i32, i32, i32) {
    %c1_i32 = arith.constant 1 : i32
    %0 = arith.addi %arg1, %c1_i32 : i32
    %c0_i32 = arith.constant 0 : i32
    %c0_i32_0 = arith.constant 0 : i32
    %c0_i32_1 = arith.constant 0 : i32
    return %arg0, %0, %c0_i32, %c0_i32_0 : i32, i32, i32, i32
  }
  func.func @transform_2(%arg0: i32, %arg1: i32) -> (i32, i32, i32, i32) {
    %c0_i32 = arith.constant 0 : i32
    %c0_i32_0 = arith.constant 0 : i32
    %c0_i32_1 = arith.constant 0 : i32
    %c0_i32_2 = arith.constant 0 : i32
    %c0_i32_3 = arith.constant 0 : i32
    return %c0_i32, %c0_i32_0, %c0_i32_1, %c0_i32_2 : i32, i32, i32, i32
  }
  func.func @transform_3(%arg0: i32, %arg1: i32) -> (i32, i32) {
    %c0_i32 = arith.constant 0 : i32
    %c0_i32_0 = arith.constant 0 : i32
    %c0_i32_1 = arith.constant 0 : i32
    return %c0_i32, %c0_i32_0 : i32, i32
  }
  func.func @transform_4(%arg0: i32, %arg1: i32) -> (i32, i32, i32, i32) {
    %c0_i32 = arith.constant 0 : i32
    %c0_i32_0 = arith.constant 0 : i32
    %c0_i32_1 = arith.constant 0 : i32
    return %arg0, %arg1, %c0_i32, %c0_i32_0 : i32, i32, i32, i32
  }
}

module attributes {stable_mosaic.version = 11 : i64} {
  func.func @_row_conv_kernel(%arg0: i32, %arg1: i32, %arg2: memref<1x1x2x512xbf16, #tpu.memory_space<vmem>>, %arg3: memref<1x1x2x512xbf16, #tpu.memory_space<vmem>>, %arg4: memref<2x2x512x256xbf16, #tpu.memory_space<vmem>>, %arg5: memref<1x256xf32, #tpu.memory_space<vmem>>, %arg6: memref<1x1x1x256xf32, #tpu.memory_space<vmem>>) attributes {dimension_semantics = [#tpu.dimension_semantics<parallel>, #tpu.dimension_semantics<parallel>], iteration_bounds = array<i64: 2, 1>, scalar_prefetch = 0 : i64, scratch_operands = 0 : i64, tpu.core_type = #tpu.core_type<tc>, window_params = [{transform_indices = @transform_0, window_bounds = array<i64: 1, 1, 2, 512>}, {transform_indices = @transform_1, window_bounds = array<i64: 1, 1, 2, 512>}, {pipeline_mode = #tpu.pipeline_mode<synchronous>, transform_indices = @transform_2, window_bounds = array<i64: 2, 2, 512, 256>}, {pipeline_mode = #tpu.pipeline_mode<synchronous>, transform_indices = @transform_3, window_bounds = array<i64: 1, 256>}, {transform_indices = @transform_4, window_bounds = array<i64: 1, 1, 1, 256>}]} {
    %cst = arith.constant 0.000000e+00 : f32
    %0 = vector.broadcast %cst : f32 to vector<1x256xf32>
    %c0 = arith.constant 0 : index
    %c0_0 = arith.constant 0 : index
    %c0_1 = arith.constant 0 : index
    %c0_2 = arith.constant 0 : index
    %1 = vector.load %arg2[%c0, %c0_0, %c0_1, %c0_2] : memref<1x1x2x512xbf16, #tpu.memory_space<vmem>>, vector<1x1x1x512xbf16>
    %2 = vector.shape_cast %1 : vector<1x1x1x512xbf16> to vector<1x512xbf16>
    %c0_3 = arith.constant 0 : index
    %c0_4 = arith.constant 0 : index
    %c0_5 = arith.constant 0 : index
    %c0_6 = arith.constant 0 : index
    %3 = vector.load %arg4[%c0_3, %c0_4, %c0_5, %c0_6] : memref<2x2x512x256xbf16, #tpu.memory_space<vmem>>, vector<1x1x512x256xbf16>
    %4 = vector.shape_cast %3 : vector<1x1x512x256xbf16> to vector<512x256xbf16>
    %cst_7 = arith.constant dense<0.000000e+00> : vector<1x256xf32>
    %5 = tpu.matmul %2, %4, %cst_7 {dimension_numbers = #tpu.dot_dimension_numbers<[1], [0], [0], [1], [0, 0, 1, 1], [], []>} : vector<1x512xbf16>, vector<512x256xbf16>, vector<1x256xf32> -> vector<1x256xf32>
    %6 = arith.addf %0, %5 : vector<1x256xf32>
    %c0_8 = arith.constant 0 : index
    %c0_9 = arith.constant 0 : index
    %c1 = arith.constant 1 : index
    %c0_10 = arith.constant 0 : index
    %7 = vector.load %arg2[%c0_8, %c0_9, %c1, %c0_10] : memref<1x1x2x512xbf16, #tpu.memory_space<vmem>>, vector<1x1x1x512xbf16>
    %8 = vector.shape_cast %7 : vector<1x1x1x512xbf16> to vector<1x512xbf16>
    %c0_11 = arith.constant 0 : index
    %c1_12 = arith.constant 1 : index
    %c0_13 = arith.constant 0 : index
    %c0_14 = arith.constant 0 : index
    %9 = vector.load %arg4[%c0_11, %c1_12, %c0_13, %c0_14] : memref<2x2x512x256xbf16, #tpu.memory_space<vmem>>, vector<1x1x512x256xbf16>
    %10 = vector.shape_cast %9 : vector<1x1x512x256xbf16> to vector<512x256xbf16>
    %cst_15 = arith.constant dense<0.000000e+00> : vector<1x256xf32>
    %11 = tpu.matmul %8, %10, %cst_15 {dimension_numbers = #tpu.dot_dimension_numbers<[1], [0], [0], [1], [0, 0, 1, 1], [], []>} : vector<1x512xbf16>, vector<512x256xbf16>, vector<1x256xf32> -> vector<1x256xf32>
    %12 = arith.addf %6, %11 : vector<1x256xf32>
    %c0_16 = arith.constant 0 : index
    %c0_17 = arith.constant 0 : index
    %c0_18 = arith.constant 0 : index
    %c0_19 = arith.constant 0 : index
    %13 = vector.load %arg3[%c0_16, %c0_17, %c0_18, %c0_19] : memref<1x1x2x512xbf16, #tpu.memory_space<vmem>>, vector<1x1x1x512xbf16>
    %14 = vector.shape_cast %13 : vector<1x1x1x512xbf16> to vector<1x512xbf16>
    %c1_20 = arith.constant 1 : index
    %c0_21 = arith.constant 0 : index
    %c0_22 = arith.constant 0 : index
    %c0_23 = arith.constant 0 : index
    %15 = vector.load %arg4[%c1_20, %c0_21, %c0_22, %c0_23] : memref<2x2x512x256xbf16, #tpu.memory_space<vmem>>, vector<1x1x512x256xbf16>
    %16 = vector.shape_cast %15 : vector<1x1x512x256xbf16> to vector<512x256xbf16>
    %cst_24 = arith.constant dense<0.000000e+00> : vector<1x256xf32>
    %17 = tpu.matmul %14, %16, %cst_24 {dimension_numbers = #tpu.dot_dimension_numbers<[1], [0], [0], [1], [0, 0, 1, 1], [], []>} : vector<1x512xbf16>, vector<512x256xbf16>, vector<1x256xf32> -> vector<1x256xf32>
    %18 = arith.addf %12, %17 : vector<1x256xf32>
    %c0_25 = arith.constant 0 : index
    %c0_26 = arith.constant 0 : index
    %c1_27 = arith.constant 1 : index
    %c0_28 = arith.constant 0 : index
    %19 = vector.load %arg3[%c0_25, %c0_26, %c1_27, %c0_28] : memref<1x1x2x512xbf16, #tpu.memory_space<vmem>>, vector<1x1x1x512xbf16>
    %20 = vector.shape_cast %19 : vector<1x1x1x512xbf16> to vector<1x512xbf16>
    %c1_29 = arith.constant 1 : index
    %c1_30 = arith.constant 1 : index
    %c0_31 = arith.constant 0 : index
    %c0_32 = arith.constant 0 : index
    %21 = vector.load %arg4[%c1_29, %c1_30, %c0_31, %c0_32] : memref<2x2x512x256xbf16, #tpu.memory_space<vmem>>, vector<1x1x512x256xbf16>
    %22 = vector.shape_cast %21 : vector<1x1x512x256xbf16> to vector<512x256xbf16>
    %cst_33 = arith.constant dense<0.000000e+00> : vector<1x256xf32>
    %23 = tpu.matmul %20, %22, %cst_33 {dimension_numbers = #tpu.dot_dimension_numbers<[1], [0], [0], [1], [0, 0, 1, 1], [], []>} : vector<1x512xbf16>, vector<512x256xbf16>, vector<1x256xf32> -> vector<1x256xf32>
    %24 = arith.addf %18, %23 : vector<1x256xf32>
    %c0_34 = arith.constant 0 : index
    %c0_35 = arith.constant 0 : index
    %25 = vector.load %arg5[%c0_34, %c0_35] : memref<1x256xf32, #tpu.memory_space<vmem>>, vector<1x256xf32>
    %26 = arith.addf %24, %25 : vector<1x256xf32>
    %cst_36 = arith.constant 0.000000e+00 : f32
    %27 = vector.broadcast %cst_36 : f32 to vector<1x256xf32>
    %28 = arith.maximumf %26, %27 : vector<1x256xf32>
    %c0_37 = arith.constant 0 : index
    %c0_38 = arith.constant 0 : index
    %c0_39 = arith.constant 0 : index
    %c0_40 = arith.constant 0 : index
    %29 = vector.load %arg6[%c0_37, %c0_38, %c0_39, %c0_40] : memref<1x1x1x256xf32, #tpu.memory_space<vmem>>, vector<1x1x1x256xf32>
    %30 = vector.shape_cast %29 : vector<1x1x1x256xf32> to vector<1x256xf32>
    %31 = vector.shape_cast %28 : vector<1x256xf32> to vector<1x1x1x256xf32>
    tpu.vector_store %arg6[%c0_37, %c0_38, %c0_39, %c0_40], %31 {strides = array<i32>} : memref<1x1x1x256xf32, #tpu.memory_space<vmem>>, vector<1x1x1x256xf32>,
    return
  }
  func.func @transform_0(%arg0: i32, %arg1: i32) -> (i32, i32, i32, i32) {
    %c0_i32 = arith.constant 0 : i32
    %c0_i32_0 = arith.constant 0 : i32
    %c0_i32_1 = arith.constant 0 : i32
    return %arg0, %arg1, %c0_i32, %c0_i32_0 : i32, i32, i32, i32
  }
  func.func @transform_1(%arg0: i32, %arg1: i32) -> (i32, i32, i32, i32) {
    %c1_i32 = arith.constant 1 : i32
    %0 = arith.addi %arg1, %c1_i32 : i32
    %c0_i32 = arith.constant 0 : i32
    %c0_i32_0 = arith.constant 0 : i32
    %c0_i32_1 = arith.constant 0 : i32
    return %arg0, %0, %c0_i32, %c0_i32_0 : i32, i32, i32, i32
  }
  func.func @transform_2(%arg0: i32, %arg1: i32) -> (i32, i32, i32, i32) {
    %c0_i32 = arith.constant 0 : i32
    %c0_i32_0 = arith.constant 0 : i32
    %c0_i32_1 = arith.constant 0 : i32
    %c0_i32_2 = arith.constant 0 : i32
    %c0_i32_3 = arith.constant 0 : i32
    return %c0_i32, %c0_i32_0, %c0_i32_1, %c0_i32_2 : i32, i32, i32, i32
  }
  func.func @transform_3(%arg0: i32, %arg1: i32) -> (i32, i32) {
    %c0_i32 = arith.constant 0 : i32
    %c0_i32_0 = arith.constant 0 : i32
    %c0_i32_1 = arith.constant 0 : i32
    return %c0_i32, %c0_i32_0 : i32, i32
  }
  func.func @transform_4(%arg0: i32, %arg1: i32) -> (i32, i32, i32, i32) {
    %c0_i32 = arith.constant 0 : i32
    %c0_i32_0 = arith.constant 0 : i32
    %c0_i32_1 = arith.constant 0 : i32
    return %arg0, %arg1, %c0_i32, %c0_i32_0 : i32, i32, i32, i32
  }
}

</mosaic_0001>

<llo_original>
// kernel: _lambda_.4
$region0: #{_lambda_.4}
  #allocation0 [shape = 'u32[]', space=smem, size = 0x4, offset = 0x4, fixed_abs, tag = 'smem constant byte address 0x4 - core index']
  #allocation1 [shape = 'u32[144,128]{1,0:T(1,128)}', space=vmem, size = 0x12000, scoped, tag = 'internal scratch']
  %s0 = inlined_call_operand.vmem [shape: bf16[2,9,9,32], index: 0, kind: input, shape index: {}, may-alias: {0,1}]
  %s1 = inlined_call_operand.vmem [shape: bf16[2,9,9,32], index: 1, kind: input, shape index: {}, may-alias: {0,1}]
  %s2 = inlined_call_operand.vmem [shape: bf16[2,2,32,128], index: 2, kind: input, shape index: {}]
  %s3 = inlined_call_operand.vmem [shape: f32[1,128], index: 3, kind: input, shape index: {}]
  %s4 = inlined_call_operand.vmem [shape: bf16[2,8,8,128], index: 4, kind: output, shape index: {}]
  %s5 = sld [smem:[#allocation0]]
  $region49: #{_lambda_.4} parent=0
    _
  %s7 = ssub.s32 1, %s5
  %s8 = scalar_select 0, %s7, %s5
  loop: start=0, step=1, limit=18
  $region2: #{_lambda_.4} parent=0 // loop_pre_header
    _
  $region3: #{_lambda_.4} parent=0 // loop_header
    %s10 = sphi 0, %s14
    %p11 = scmp.ge.s32.totalorder %s10, 18
    %s17 = sphi 0, %s29
    %s18 = sphi 0, %s25
    %s19 = sphi 0, %s17
    %s20 = sphi 0, %s18
    %s21 = sphi 0, %s19
    %s22 = sphi 0, %s20
    %s34 = sphi 0, %s36
    %s37 = sphi 0, %s34
    %s38 = sphi 0, %s37
    %s54 = sphi 0, %s38
    %s64 = sphi 0, %s66
    %s67 = sphi 0, %s64
    %s68 = sphi 0, %s67
    %s84 = sphi 0, %s68
    %s88 = sphi 0, %s88
    %s90 = sphi 0, %s88
    %s91 = sphi 0, %s90
    %s105 = sphi 0, %s91
    %s109 = sphi 0, %s109
    %s111 = sphi 0, %s109
    %s112 = sphi 0, %s111
    %s126 = sphi 0, %s112
    %s134 = sphi 0, %s136
    %s137 = sphi 0, %s134
    %s138 = sphi 0, %s137
    %s154 = sphi 0, %s138
  $region4: #{_lambda_.4} parent=0 // loop_header_branch
    %13 = sbr.rel (%p11) target = $region8
  $region5: #{_lambda_.4} parent=0 // loop_body
    %s15 = ssub.s32 %s10, 1
    %s16 = ssub.s32 %s10, 2
    %s23 = sadd.s32 1, %s18
    %p24 = scmp.ge.s32.totalorder %s23, 8
    %s25 = scalar_select %p24, 0, %s23
    %s26 = sadd.s32 1, %s17
    %s27 = scalar_select %p24, %s26, %s17
    %p28 = scmp.ge.s32.totalorder %s27, 2
    %s29 = scalar_select %p28, 0, %s27
    %s30 = ssub.s32 %s17, %s29
    %s31 = ssub.s32 %s18, %s25
    %s32 = sor.u32 %s30, %s31
    %p33 = scmp.eq.s32.totalorder %s32, 0
    %s35 = sadd.s32 %s34, 1
    %s36 = scalar_select %p33, %s34, %s35
    %p39 = pneg %p33
    %p40 = scmp.eq.s32.totalorder %s10, 15
    %p41 = por %p39, %p40
    %p42 = scmp.ne.s32.totalorder %s34, %s37
    %p43 = scmp.eq.s32.totalorder %s10, 0
    %p44 = por %p42, %p43
    %p45 = scmp.ne.s32.totalorder %s34, %s37
    %p46 = scmp.eq.s32.totalorder %s15, 15
    %p47 = por %p45, %p46
    %p48 = scmp.ne.s32.totalorder %s37, %s38
    %p49 = scmp.eq.s32.totalorder %s15, 0
    %p50 = por %p48, %p49
    %p51 = scmp.ne.s32.totalorder %s37, %s38
    %p52 = scmp.eq.s32.totalorder %s16, 15
    %p53 = por %p51, %p52
    %p55 = scmp.ne.s32.totalorder %s38, %s54
    %p56 = scmp.eq.s32.totalorder %s16, 0
    %p57 = por %p55, %p56
    %s58 = sadd.s32 %s18, 1
    %s59 = sadd.s32 %s25, 1
    %s60 = ssub.s32 %s17, %s29
    %s61 = ssub.s32 %s58, %s59
    %s62 = sor.u32 %s60, %s61
    %p63 = scmp.eq.s32.totalorder %s62, 0
    %s65 = sadd.s32 %s64, 1
    %s66 = scalar_select %p63, %s64, %s65
    %p69 = pneg %p63
    %p70 = scmp.eq.s32.totalorder %s10, 15
    %p71 = por %p69, %p70
    %p72 = scmp.ne.s32.totalorder %s64, %s67
    %p73 = scmp.eq.s32.totalorder %s10, 0
    %p74 = por %p72, %p73
    %p75 = scmp.ne.s32.totalorder %s64, %s67
    %p76 = scmp.eq.s32.totalorder %s15, 15
    %p77 = por %p75, %p76
    %p78 = scmp.ne.s32.totalorder %s67, %s68
    %p79 = scmp.eq.s32.totalorder %s15, 0
    %p80 = por %p78, %p79
    %p81 = scmp.ne.s32.totalorder %s67, %s68
    %p82 = scmp.eq.s32.totalorder %s16, 15
    %p83 = por %p81, %p82
    %p85 = scmp.ne.s32.totalorder %s68, %s84
    %p86 = scmp.eq.s32.totalorder %s16, 0
    %p87 = por %p85, %p86
    %s89 = sadd.s32 %s88, 1
    %p92 = scmp.eq.s32.totalorder %s10, 15
    %p93 = scmp.ne.s32.totalorder %s88, %s90
    %p94 = scmp.eq.s32.totalorder %s10, 0
    %p95 = por %p93, %p94
    %p96 = scmp.ne.s32.totalorder %s88, %s90
    %p97 = scmp.eq.s32.totalorder %s15, 15
    %p98 = por %p96, %p97
    %p99 = scmp.ne.s32.totalorder %s90, %s91
    %p100 = scmp.eq.s32.totalorder %s15, 0
    %p101 = por %p99, %p100
    %p102 = scmp.ne.s32.totalorder %s90, %s91
    %p103 = scmp.eq.s32.totalorder %s16, 15
    %p104 = por %p102, %p103
    %p106 = scmp.ne.s32.totalorder %s91, %s105
    %p107 = scmp.eq.s32.totalorder %s16, 0
    %p108 = por %p106, %p107
    %s110 = sadd.s32 %s109, 1
    %p113 = scmp.eq.s32.totalorder %s10, 15
    %p114 = scmp.ne.s32.totalorder %s109, %s111
    %p115 = scmp.eq.s32.totalorder %s10, 0
    %p116 = por %p114, %p115
    %p117 = scmp.ne.s32.totalorder %s109, %s111
    %p118 = scmp.eq.s32.totalorder %s15, 15
    %p119 = por %p117, %p118
    %p120 = scmp.ne.s32.totalorder %s111, %s112
    %p121 = scmp.eq.s32.totalorder %s15, 0
    %p122 = por %p120, %p121
    %p123 = scmp.ne.s32.totalorder %s111, %s112
    %p124 = scmp.eq.s32.totalorder %s16, 15
    %p125 = por %p123, %p124
    %p127 = scmp.ne.s32.totalorder %s112, %s126
    %p128 = scmp.eq.s32.totalorder %s16, 0
    %p129 = por %p127, %p128
    %s130 = ssub.s32 %s17, %s29
    %s131 = ssub.s32 %s18, %s25
    %s132 = sor.u32 %s130, %s131
    %p133 = scmp.eq.s32.totalorder %s132, 0
    %s135 = sadd.s32 %s134, 1
    %s136 = scalar_select %p133, %s134, %s135
    %p139 = pneg %p133
    %p140 = scmp.eq.s32.totalorder %s10, 15
    %p141 = por %p139, %p140
    %p142 = scmp.ne.s32.totalorder %s134, %s137
    %p143 = scmp.eq.s32.totalorder %s10, 0
    %p144 = por %p142, %p143
    %p145 = scmp.ne.s32.totalorder %s134, %s137
    %p146 = scmp.eq.s32.totalorder %s15, 15
    %p147 = por %p145, %p146
    %p148 = scmp.ne.s32.totalorder %s137, %s138
    %p149 = scmp.eq.s32.totalorder %s15, 0
    %p150 = por %p148, %p149
    %p151 = scmp.ne.s32.totalorder %s137, %s138
    %p152 = scmp.eq.s32.totalorder %s16, 15
    %p153 = por %p151, %p152
    %p155 = scmp.ne.s32.totalorder %s138, %s154
    %p156 = scmp.eq.s32.totalorder %s16, 0
    %p157 = por %p155, %p156
    %p158 = scmp.le.s32.totalorder 1, %s10
    %p159 = scmp.lt.s32.totalorder %s10, 17
    %p160 = pnand %p158, %p159
    %p161 = pneg %p160
    // Predicated region
    $region9: #{_lambda_.4} parent=5 // pred_check
      _
    $region10: #{_lambda_.4} parent=5 // pred_check_branch
      %163 = sbr.rel (%p160) target = $region12
    $region11: #{_lambda_.4} parent=5 // pred_region
      %s164 = ssub.s32 %s10, 1
      // Predicated region
      $region13: #{_lambda_.4} parent=11 // pred_check
        %p165 = pneg %p101
      $region14: #{_lambda_.4} parent=11 // pred_check_branch
        %167 = sbr.rel (%p165) target = $region16
      $region15: #{_lambda_.4} parent=11 // pred_region
        _
      $region16: #{_lambda_.4} parent=11 // pred_fallthru
        _
      // Predicated region
      $region17: #{_lambda_.4} parent=11 // pred_check
        %p168 = pneg %p122
      $region18: #{_lambda_.4} parent=11 // pred_check_branch
        %170 = sbr.rel (%p168) target = $region20
      $region19: #{_lambda_.4} parent=11 // pred_region
        _
      $region20: #{_lambda_.4} parent=11 // pred_fallthru
        _
    $region12: #{_lambda_.4} parent=5 // pred_fallthru
      _
    %p171 = scmp.lt.s32.totalorder %s10, 16
    // Predicated region
    $region21: #{_lambda_.4} parent=5 // pred_check
      %p172 = pneg %p171
    $region22: #{_lambda_.4} parent=5 // pred_check_branch
      %174 = sbr.rel (%p172) target = $region24
    $region23: #{_lambda_.4} parent=5 // pred_region
      // Predicated region
      $region25: #{_lambda_.4} parent=23 // pred_check
        %p175 = pneg %p44
      $region26: #{_lambda_.4} parent=23 // pred_check_branch
        %177 = sbr.rel (%p175) target = $region28
      $region27: #{_lambda_.4} parent=23 // pred_region
        %p178 = scmp.lt.s32.totalorder %s17, 1
        %s179 = scalar_select %p178, %s17, 1
        %p180 = scmp.lt.s32.totalorder %s18, 8
        %s181 = scalar_select %p180, %s18, 8
        %s182 = smul.addr %s181, 2
        %s183 = smul.addr %s179, 18
        %s184 = sadd.s32 %s182, %s183
        %s185 = smul.addr %s184, 4
        %s186 = scalar_lea.vmem %s0, %s185
      $region28: #{_lambda_.4} parent=23 // pred_fallthru
        _
      // Predicated region
      $region29: #{_lambda_.4} parent=23 // pred_check
        %p187 = pneg %p74
      $region30: #{_lambda_.4} parent=23 // pred_check_branch
        %189 = sbr.rel (%p187) target = $region32
      $region31: #{_lambda_.4} parent=23 // pred_region
        %s190 = sadd.s32 %s18, 1
        %p191 = scmp.lt.s32.totalorder %s17, 1
        %s192 = scalar_select %p191, %s17, 1
        %p193 = scmp.lt.s32.totalorder %s190, 8
        %s194 = scalar_select %p193, %s190, 8
        %s195 = smul.addr %s194, 2
        %s196 = smul.addr %s192, 18
        %s197 = sadd.s32 %s195, %s196
        %s198 = smul.addr %s197, 4
        %s199 = scalar_lea.vmem %s1, %s198
        %s200 = sadd.s32 %s18, 1
      $region32: #{_lambda_.4} parent=23 // pred_fallthru
        _
    $region24: #{_lambda_.4} parent=5 // pred_fallthru
      _
    %p201 = scmp.le.s32.totalorder 1, %s10
    %p202 = scmp.lt.s32.totalorder %s10, 17
    %p203 = pnand %p201, %p202
    %p204 = pneg %p203
    // Predicated region
    $region33: #{_lambda_.4} parent=5 // pred_check
      _
    $region34: #{_lambda_.4} parent=5 // pred_check_branch
      %206 = sbr.rel (%p203) target = $region36
    $region35: #{_lambda_.4} parent=5 // pred_region
      %s207 = ssub.s32 %s10, 1
      %p208 = scmp.lt.s32.totalorder %s19, 1
      %s209 = scalar_select %p208, %s19, 1
      %p210 = scmp.lt.s32.totalorder %s20, 8
      %s211 = scalar_select %p210, %s20, 8
      %s212 = smul.addr %s211, 2
      %s213 = smul.addr %s209, 18
      %s214 = sadd.s32 %s212, %s213
      %s215 = smul.addr %s214, 4
      %s216 = scalar_lea.vmem %s0, %s215
      %p217 = pneg %p50
      %p218 = pneg %p47
      %s219 = sadd.s32 %s20, 1
      %p220 = scmp.lt.s32.totalorder %s19, 1
      %s221 = scalar_select %p220, %s19, 1
      %p222 = scmp.lt.s32.totalorder %s219, 8
      %s223 = scalar_select %p222, %s219, 8
      %s224 = smul.addr %s223, 2
      %s225 = smul.addr %s221, 18
      %s226 = sadd.s32 %s224, %s225
      %s227 = smul.addr %s226, 4
      %s228 = scalar_lea.vmem %s1, %s227
      %p229 = pneg %p80
      %p230 = pneg %p77
      %p231 = pneg %p101
      %p232 = pneg %p98
      %p233 = pneg %p122
      %p234 = pneg %p119
      %p235 = pneg %p150
      %p236 = pneg %p147
      %p237 = scmp.lt.s32.totalorder %s19, 1
      %s238 = scalar_select %p237, %s19, 1
      %p239 = scmp.lt.s32.totalorder %s20, 7
      %s240 = scalar_select %p239, %s20, 7
      %s241 = smul.addr %s238, 8
      %s242 = sadd.s32 %s240, %s241
      %s243 = smul.addr %s242, 4
      %s244 = scalar_lea.vmem %s4, %s243
      %p245 = scmp.lt.s32.totalorder %s19, 1
      %s246 = scalar_select %p245, %s19, 1
      %p247 = scmp.lt.s32.totalorder %s20, 8
      %s248 = scalar_select %p247, %s20, 8
      %s249 = smul.addr %s248, 2
      %s250 = smul.addr %s246, 18
      %s251 = sadd.s32 %s249, %s250
      %s252 = smul.addr %s251, 4
      %s253 = scalar_lea.vmem %s0, %s252
      %s254 = sadd.s32 %s20, 1
      %p255 = scmp.lt.s32.totalorder %s19, 1
      %s256 = scalar_select %p255, %s19, 1
      %p257 = scmp.lt.s32.totalorder %s254, 8
      %s258 = scalar_select %p257, %s254, 8
      %s259 = smul.addr %s258, 2
      %s260 = smul.addr %s256, 18
      %s261 = sadd.s32 %s259, %s260
      %s262 = smul.addr %s261, 4
      %s263 = scalar_lea.vmem %s1, %s262
      %s264 = sadd.s32 %s20, 1
      %p265 = scmp.lt.s32.totalorder %s19, 1
      %s266 = scalar_select %p265, %s19, 1
      %p267 = scmp.lt.s32.totalorder %s20, 7
      %s268 = scalar_select %p267, %s20, 7
      %s269 = smul.addr %s266, 8
      %s270 = sadd.s32 %s268, %s269
      %s271 = smul.addr %s270, 4
      %s272 = scalar_lea.vmem %s4, %s271
      %v274 = vld [vmem:[%s253] sm:$0xf]
      %v275 = vld [vmem:[%s2] sm:$0xf]
      %v276 = vld [vmem:[%s2 + $0x4] sm:$0xf]
      %v277 = vld [vmem:[%s2 + $0x8] sm:$0xf]
      %v278 = vld [vmem:[%s2 + $0xc] sm:$0xf]
      %v279 = vld [vmem:[%s253 + $0x4] sm:$0x1]
      %s280 = scalar_lea.vmem %s2, 16
      %v281 = vld [vmem:[%s280] sm:$0xf]
      %v282 = vld [vmem:[%s280 + $0x4] sm:$0xf]
      %v283 = vld [vmem:[%s280 + $0x8] sm:$0xf]
      %v284 = vld [vmem:[%s280 + $0xc] sm:$0xf]
      %v287 = vunpack.c.l.b16 %v274
      %v288 = vunpack.c.l.b16 %v279
      %v289 = vpack.c.b16 %v288, %v287
      %v291 = vshrl.u32 %v289, 16
      %v293 = vshll.u32 %v289, 16
      %v295 = vrot.slane %v293, 1
      %v296 = vor.u32 %v291, %v295
      %v301 = vunpack.c.l.b16 %v281
      %v302 = vunpack.c.l.b16 %v282
      %v303 = vunpack.c.l.b16 %v283
      %v304 = vunpack.c.l.b16 %v284
      %v305 = vpack.c.b16 %v302, %v301
      %v306 = vpack.c.b16 %v304, %v303
      %vm309 = vcmask 261120
      %v311 = vsel %vm309, %v296, 0
      %313 = vmatprep.subr.bf16.mxu0 0
      %314 = vmatpush1.bf16.msra.mxu0 %v305
      %315 = vmatprep.subr.bf16.mxu0 0
      %316 = vmatpush1.bf16.msra.mxu0 %v306
      %317 = vmatprep.subr.bf16.mxu0 0
      %318 = vmatpush1.bf16.msra.mxu0 0
      %319 = vmatprep.subr.bf16.mxu0 0
      %320 = vmatpush1.bf16.msra.mxu0 0
      %321 = vmatprep.subr.bf16.mxu0 0
      %322 = vmatpush1.bf16.msra.mxu0 0
      %323 = vmatprep.subr.bf16.mxu0 0
      %324 = vmatpush1.bf16.msra.mxu0 0
      %325 = vmatprep.subr.bf16.mxu0 0
      %326 = vmatpush1.bf16.msra.mxu0 0
      %327 = vmatprep.subr.bf16.mxu0 0
      %328 = vmatpush1.bf16.msra.mxu0 0
      %329 = vmatprep.subr.bf16.mxu0 0
      %330 = vmatpush1.bf16.msra.mxu0 0
      %331 = vmatprep.subr.bf16.mxu0 0
      %332 = vmatpush1.bf16.msra.mxu0 0
      %333 = vmatprep.subr.bf16.mxu0 0
      %334 = vmatpush1.bf16.msra.mxu0 0
      %335 = vmatprep.subr.bf16.mxu0 0
      %336 = vmatpush1.bf16.msra.mxu0 0
      %337 = vmatprep.subr.bf16.mxu0 0
      %338 = vmatpush1.bf16.msra.mxu0 0
      %339 = vmatprep.subr.bf16.mxu0 0
      %340 = vmatpush1.bf16.msra.mxu0 0
      %341 = vmatprep.subr.bf16.mxu0 0
      %342 = vmatpush1.bf16.msra.mxu0 0
      %343 = vmatprep.subr.bf16.mxu0 0
      %344 = vmatpush1.bf16.msra.mxu0 0
      %345 = vmatprep.mubr.bf16.mxu0 0
      %346 = vmatmul.mubr.bf16.gmra.mrb[0].mxu0 %v311
      %v347 = vpop.f32.mrb[0].mxu0
      %v348 = vadd.f32 0.0, %v347
      %v349 = vpop.f32.mrb[0].mxu0
      %v350 = vpop.f32.mrb[0].mxu0
      %v351 = vpop.f32.mrb[0].mxu0
      %352 = vdwg.mxu0
      %v357 = vunpack.c.l.b16 %v275
      %v358 = vunpack.c.l.b16 %v276
      %v359 = vunpack.c.l.b16 %v277
      %v360 = vunpack.c.l.b16 %v278
      %v361 = vpack.c.b16 %v358, %v357
      %v362 = vpack.c.b16 %v360, %v359
      %v366 = vsel %vm309, %v274, 0
      %368 = vmatprep.subr.bf16.mxu0 0
      %369 = vmatpush1.bf16.msra.mxu0 %v361
      %370 = vmatprep.subr.bf16.mxu0 0
      %371 = vmatpush1.bf16.msra.mxu0 %v362
      %372 = vmatprep.subr.bf16.mxu0 0
      %373 = vmatpush1.bf16.msra.mxu0 0
      %374 = vmatprep.subr.bf16.mxu0 0
      %375 = vmatpush1.bf16.msra.mxu0 0
      %376 = vmatprep.subr.bf16.mxu0 0
      %377 = vmatpush1.bf16.msra.mxu0 0
      %378 = vmatprep.subr.bf16.mxu0 0
      %379 = vmatpush1.bf16.msra.mxu0 0
      %380 = vmatprep.subr.bf16.mxu0 0
      %381 = vmatpush1.bf16.msra.mxu0 0
      %382 = vmatprep.subr.bf16.mxu0 0
      %383 = vmatpush1.bf16.msra.mxu0 0
      %384 = vmatprep.subr.bf16.mxu0 0
      %385 = vmatpush1.bf16.msra.mxu0 0
      %386 = vmatprep.subr.bf16.mxu0 0
      %387 = vmatpush1.bf16.msra.mxu0 0
      %388 = vmatprep.subr.bf16.mxu0 0
      %389 = vmatpush1.bf16.msra.mxu0 0
      %390 = vmatprep.subr.bf16.mxu0 0
      %391 = vmatpush1.bf16.msra.mxu0 0
      %392 = vmatprep.subr.bf16.mxu0 0
      %393 = vmatpush1.bf16.msra.mxu0 0
      %394 = vmatprep.subr.bf16.mxu0 0
      %395 = vmatpush1.bf16.msra.mxu0 0
      %396 = vmatprep.subr.bf16.mxu0 0
      %397 = vmatpush1.bf16.msra.mxu0 0
      %398 = vmatprep.subr.bf16.mxu0 0
      %399 = vmatpush1.bf16.msra.mxu0 0
      %400 = vmatprep.mubr.bf16.mxu0 0
      %401 = vmatmul.mubr.bf16.gmra.mrb[0].mxu0 %v366
      %v402 = vpop.f32.mrb[0].mxu0
      %v403 = vadd.f32 %v348, %v402
      %v404 = vpop.f32.mrb[0].mxu0
      %v405 = vpop.f32.mrb[0].mxu0
      %v406 = vpop.f32.mrb[0].mxu0
      %407 = vdwg.mxu0
      %v408 = vld [vmem:[%s263] sm:$0xf]
      %s409 = scalar_lea.vmem %s2, 32
      %v410 = vld [vmem:[%s409] sm:$0xf]
      %v411 = vld [vmem:[%s409 + $0x4] sm:$0xf]
      %v412 = vld [vmem:[%s409 + $0x8] sm:$0xf]
      %v413 = vld [vmem:[%s409 + $0xc] sm:$0xf]
      %v418 = vunpack.c.l.b16 %v410
      %v419 = vunpack.c.l.b16 %v411
      %v420 = vunpack.c.l.b16 %v412
      %v421 = vunpack.c.l.b16 %v413
      %v422 = vpack.c.b16 %v419, %v418
      %v423 = vpack.c.b16 %v421, %v420
      %v427 = vsel %vm309, %v408, 0
      %429 = vmatprep.subr.bf16.mxu0 0
      %430 = vmatpush1.bf16.msra.mxu0 %v422
      %431 = vmatprep.subr.bf16.mxu0 0
      %432 = vmatpush1.bf16.msra.mxu0 %v423
      %433 = vmatprep.subr.bf16.mxu0 0
      %434 = vmatpush1.bf16.msra.mxu0 0
      %435 = vmatprep.subr.bf16.mxu0 0
      %436 = vmatpush1.bf16.msra.mxu0 0
      %437 = vmatprep.subr.bf16.mxu0 0
      %438 = vmatpush1.bf16.msra.mxu0 0
      %439 = vmatprep.subr.bf16.mxu0 0
      %440 = vmatpush1.bf16.msra.mxu0 0
      %441 = vmatprep.subr.bf16.mxu0 0
      %442 = vmatpush1.bf16.msra.mxu0 0
      %443 = vmatprep.subr.bf16.mxu0 0
      %444 = vmatpush1.bf16.msra.mxu0 0
      %445 = vmatprep.subr.bf16.mxu0 0
      %446 = vmatpush1.bf16.msra.mxu0 0
      %447 = vmatprep.subr.bf16.mxu0 0
      %448 = vmatpush1.bf16.msra.mxu0 0
      %449 = vmatprep.subr.bf16.mxu0 0
      %450 = vmatpush1.bf16.msra.mxu0 0
      %451 = vmatprep.subr.bf16.mxu0 0
      %452 = vmatpush1.bf16.msra.mxu0 0
      %453 = vmatprep.subr.bf16.mxu0 0
      %454 = vmatpush1.bf16.msra.mxu0 0
      %455 = vmatprep.subr.bf16.mxu0 0
      %456 = vmatpush1.bf16.msra.mxu0 0
      %457 = vmatprep.subr.bf16.mxu0 0
      %458 = vmatpush1.bf16.msra.mxu0 0
      %459 = vmatprep.subr.bf16.mxu0 0
      %460 = vmatpush1.bf16.msra.mxu0 0
      %461 = vmatprep.mubr.bf16.mxu0 0
      %462 = vmatmul.mubr.bf16.gmra.mrb[0].mxu0 %v427
      %v463 = vpop.f32.mrb[0].mxu0
      %v464 = vadd.f32 0.0, %v463
      %v465 = vpop.f32.mrb[0].mxu0
      %v466 = vpop.f32.mrb[0].mxu0
      %v467 = vpop.f32.mrb[0].mxu0
      %468 = vdwg.mxu0
      %v469 = vadd.f32 %v403, %v464
      %v470 = vld [vmem:[%s263] sm:$0xf]
      %v471 = vld [vmem:[%s263 + $0x4] sm:$0x1]
      %s472 = scalar_lea.vmem %s2, 48
      %v473 = vld [vmem:[%s472] sm:$0xf]
      %v474 = vld [vmem:[%s472 + $0x4] sm:$0xf]
      %v475 = vld [vmem:[%s472 + $0x8] sm:$0xf]
      %v476 = vld [vmem:[%s472 + $0xc] sm:$0xf]
      %v479 = vunpack.c.l.b16 %v470
      %v480 = vunpack.c.l.b16 %v471
      %v481 = vpack.c.b16 %v480, %v479
      %v483 = vshrl.u32 %v481, 16
      %v485 = vshll.u32 %v481, 16
      %v487 = vrot.slane %v485, 1
      %v488 = vor.u32 %v483, %v487
      %v493 = vunpack.c.l.b16 %v473
      %v494 = vunpack.c.l.b16 %v474
      %v495 = vunpack.c.l.b16 %v475
      %v496 = vunpack.c.l.b16 %v476
      %v497 = vpack.c.b16 %v494, %v493
      %v498 = vpack.c.b16 %v496, %v495
      %v502 = vsel %vm309, %v488, 0
      %504 = vmatprep.subr.bf16.mxu0 0
      %505 = vmatpush1.bf16.msra.mxu0 %v497
      %506 = vmatprep.subr.bf16.mxu0 0
      %507 = vmatpush1.bf16.msra.mxu0 %v498
      %508 = vmatprep.subr.bf16.mxu0 0
      %509 = vmatpush1.bf16.msra.mxu0 0
      %510 = vmatprep.subr.bf16.mxu0 0
      %511 = vmatpush1.bf16.msra.mxu0 0
      %512 = vmatprep.subr.bf16.mxu0 0
      %513 = vmatpush1.bf16.msra.mxu0 0
      %514 = vmatprep.subr.bf16.mxu0 0
      %515 = vmatpush1.bf16.msra.mxu0 0
      %516 = vmatprep.subr.bf16.mxu0 0
      %517 = vmatpush1.bf16.msra.mxu0 0
      %518 = vmatprep.subr.bf16.mxu0 0
      %519 = vmatpush1.bf16.msra.mxu0 0
      %520 = vmatprep.subr.bf16.mxu0 0
      %521 = vmatpush1.bf16.msra.mxu0 0
      %522 = vmatprep.subr.bf16.mxu0 0
      %523 = vmatpush1.bf16.msra.mxu0 0
      %524 = vmatprep.subr.bf16.mxu0 0
      %525 = vmatpush1.bf16.msra.mxu0 0
      %526 = vmatprep.subr.bf16.mxu0 0
      %527 = vmatpush1.bf16.msra.mxu0 0
      %528 = vmatprep.subr.bf16.mxu0 0
      %529 = vmatpush1.bf16.msra.mxu0 0
      %530 = vmatprep.subr.bf16.mxu0 0
      %531 = vmatpush1.bf16.msra.mxu0 0
      %532 = vmatprep.subr.bf16.mxu0 0
      %533 = vmatpush1.bf16.msra.mxu0 0
      %534 = vmatprep.subr.bf16.mxu0 0
      %535 = vmatpush1.bf16.msra.mxu0 0
      %536 = vmatprep.mubr.bf16.mxu0 0
      %537 = vmatmul.mubr.bf16.gmra.mrb[0].mxu0 %v502
      %v538 = vpop.f32.mrb[0].mxu0
      %v539 = vadd.f32 0.0, %v538
      %v540 = vpop.f32.mrb[0].mxu0
      %v541 = vpop.f32.mrb[0].mxu0
      %v542 = vpop.f32.mrb[0].mxu0
      %543 = vdwg.mxu0
      %v544 = vadd.f32 %v469, %v539
      %v545 = vld [vmem:[%s3] sm:$0x1]
      %v547 = vlaneseq
      %v548 = vshrl.u32 %v547, 7
      %v549 = vsub.s32 0, %v548
      %v550 = vrot.slane %v545, %v549
      %v552 = vadd.f32 %v544, %v550
      %v553 = vmax.f32 %v552, 0.0
      %v554 = vpack.c.bf16 %v553, %v553
      %555 = vst [vmem:[%s272] sm:$0xf] %v554
      %p556 = scmp.lt.s32.totalorder %s19, 1
      %s557 = scalar_select %p556, %s19, 1
      %p558 = scmp.lt.s32.totalorder %s20, 7
      %s559 = scalar_select %p558, %s20, 7
      %s560 = smul.addr %s557, 8
      %s561 = sadd.s32 %s559, %s560
      %s562 = smul.addr %s561, 4
      %s563 = scalar_lea.vmem %s4, %s562
      // Predicated region
      $region37: #{_lambda_.4} parent=35 // pred_check
        %p564 = pneg %p147
      $region38: #{_lambda_.4} parent=35 // pred_check_branch
        %566 = sbr.rel (%p564) target = $region40
      $region39: #{_lambda_.4} parent=35 // pred_region
        _
      $region40: #{_lambda_.4} parent=35 // pred_fallthru
        _
    $region36: #{_lambda_.4} parent=5 // pred_fallthru
      _
    %p567 = scmp.le.s32.totalorder 2, %s10
    // Predicated region
    $region41: #{_lambda_.4} parent=5 // pred_check
      %p568 = pneg %p567
    $region42: #{_lambda_.4} parent=5 // pred_check_branch
      %570 = sbr.rel (%p568) target = $region44
    $region43: #{_lambda_.4} parent=5 // pred_region
      %s571 = ssub.s32 %s10, 2
      // Predicated region
      $region45: #{_lambda_.4} parent=43 // pred_check
        %p572 = pneg %p153
      $region46: #{_lambda_.4} parent=43 // pred_check_branch
        %574 = sbr.rel (%p572) target = $region48
      $region47: #{_lambda_.4} parent=43 // pred_region
        %p575 = scmp.lt.s32.totalorder %s21, 1
        %s576 = scalar_select %p575, %s21, 1
        %p577 = scmp.lt.s32.totalorder %s22, 7
        %s578 = scalar_select %p577, %s22, 7
        %s579 = smul.addr %s576, 8
        %s580 = sadd.s32 %s578, %s579
        %s581 = smul.addr %s580, 4
        %s582 = scalar_lea.vmem %s4, %s581
      $region48: #{_lambda_.4} parent=43 // pred_fallthru
        _
    $region44: #{_lambda_.4} parent=5 // pred_fallthru
      _
  $region6: #{_lambda_.4} parent=0 // loop_footer
    %s14 = sadd.s32 1, %s10
  $region7: #{_lambda_.4} parent=0 // loop_footer_branch
    %9 = sbr.rel target = $region3
  $region8: #{_lambda_.4} parent=0 // loop_exit
    _

// kernel: _lambda_.5
$region0: #{_lambda_.5}
  #allocation0 [shape = 'u32[]', space=smem, size = 0x4, offset = 0x4, fixed_abs, tag = 'smem constant byte address 0x4 - core index']
  #allocation1 [shape = 'u32[144,128]{1,0:T(1,128)}', space=vmem, size = 0x12000, scoped, tag = 'internal scratch']
  %s0 = inlined_call_operand.vmem [shape: bf16[2,5,5,512], index: 0, kind: input, shape index: {}, may-alias: {0,1}]
  %s1 = inlined_call_operand.vmem [shape: bf16[2,5,5,512], index: 1, kind: input, shape index: {}, may-alias: {0,1}]
  %s2 = inlined_call_operand.vmem [shape: bf16[2,2,512,128], index: 2, kind: input, shape index: {}]
  %s3 = inlined_call_operand.vmem [shape: f32[1,128], index: 3, kind: input, shape index: {}]
  %s4 = inlined_call_operand.vmem [shape: bf16[2,4,4,128], index: 4, kind: output, shape index: {}]
  %s5 = sld [smem:[#allocation0]]
  $region49: #{_lambda_.5} parent=0
    _
  %s7 = ssub.s32 1, %s5
  %s8 = scalar_select 0, %s7, %s5
  loop: start=0, step=1, limit=10
  $region2: #{_lambda_.5} parent=0 // loop_pre_header
    _
  $region3: #{_lambda_.5} parent=0 // loop_header
    %s10 = sphi 0, %s14
    %p11 = scmp.ge.s32.totalorder %s10, 10
    %s17 = sphi 0, %s29
    %s18 = sphi 0, %s25
    %s19 = sphi 0, %s17
    %s20 = sphi 0, %s18
    %s21 = sphi 0, %s19
    %s22 = sphi 0, %s20
    %s34 = sphi 0, %s36
    %s37 = sphi 0, %s34
    %s38 = sphi 0, %s37
    %s54 = sphi 0, %s38
    %s64 = sphi 0, %s66
    %s67 = sphi 0, %s64
    %s68 = sphi 0, %s67
    %s84 = sphi 0, %s68
    %s88 = sphi 0, %s88
    %s90 = sphi 0, %s88
    %s91 = sphi 0, %s90
    %s105 = sphi 0, %s91
    %s109 = sphi 0, %s109
    %s111 = sphi 0, %s109
    %s112 = sphi 0, %s111
    %s126 = sphi 0, %s112
    %s134 = sphi 0, %s136
    %s137 = sphi 0, %s134
    %s138 = sphi 0, %s137
    %s154 = sphi 0, %s138
  $region4: #{_lambda_.5} parent=0 // loop_header_branch
    %13 = sbr.rel (%p11) target = $region8
  $region5: #{_lambda_.5} parent=0 // loop_body
    %s15 = ssub.s32 %s10, 1
    %s16 = ssub.s32 %s10, 2
    %s23 = sadd.s32 1, %s18
    %p24 = scmp.ge.s32.totalorder %s23, 4
    %s25 = scalar_select %p24, 0, %s23
    %s26 = sadd.s32 1, %s17
    %s27 = scalar_select %p24, %s26, %s17
    %p28 = scmp.ge.s32.totalorder %s27, 2
    %s29 = scalar_select %p28, 0, %s27
    %s30 = ssub.s32 %s17, %s29
    %s31 = ssub.s32 %s18, %s25
    %s32 = sor.u32 %s30, %s31
    %p33 = scmp.eq.s32.totalorder %s32, 0
    %s35 = sadd.s32 %s34, 1
    %s36 = scalar_select %p33, %s34, %s35
    %p39 = pneg %p33
    %p40 = scmp.eq.s32.totalorder %s10, 7
    %p41 = por %p39, %p40
    %p42 = scmp.ne.s32.totalorder %s34, %s37
    %p43 = scmp.eq.s32.totalorder %s10, 0
    %p44 = por %p42, %p43
    %p45 = scmp.ne.s32.totalorder %s34, %s37
    %p46 = scmp.eq.s32.totalorder %s15, 7
    %p47 = por %p45, %p46
    %p48 = scmp.ne.s32.totalorder %s37, %s38
    %p49 = scmp.eq.s32.totalorder %s15, 0
    %p50 = por %p48, %p49
    %p51 = scmp.ne.s32.totalorder %s37, %s38
    %p52 = scmp.eq.s32.totalorder %s16, 7
    %p53 = por %p51, %p52
    %p55 = scmp.ne.s32.totalorder %s38, %s54
    %p56 = scmp.eq.s32.totalorder %s16, 0
    %p57 = por %p55, %p56
    %s58 = sadd.s32 %s18, 1
    %s59 = sadd.s32 %s25, 1
    %s60 = ssub.s32 %s17, %s29
    %s61 = ssub.s32 %s58, %s59
    %s62 = sor.u32 %s60, %s61
    %p63 = scmp.eq.s32.totalorder %s62, 0
    %s65 = sadd.s32 %s64, 1
    %s66 = scalar_select %p63, %s64, %s65
    %p69 = pneg %p63
    %p70 = scmp.eq.s32.totalorder %s10, 7
    %p71 = por %p69, %p70
    %p72 = scmp.ne.s32.totalorder %s64, %s67
    %p73 = scmp.eq.s32.totalorder %s10, 0
    %p74 = por %p72, %p73
    %p75 = scmp.ne.s32.totalorder %s64, %s67
    %p76 = scmp.eq.s32.totalorder %s15, 7
    %p77 = por %p75, %p76
    %p78 = scmp.ne.s32.totalorder %s67, %s68
    %p79 = scmp.eq.s32.totalorder %s15, 0
    %p80 = por %p78, %p79
    %p81 = scmp.ne.s32.totalorder %s67, %s68
    %p82 = scmp.eq.s32.totalorder %s16, 7
    %p83 = por %p81, %p82
    %p85 = scmp.ne.s32.totalorder %s68, %s84
    %p86 = scmp.eq.s32.totalorder %s16, 0
    %p87 = por %p85, %p86
    %s89 = sadd.s32 %s88, 1
    %p92 = scmp.eq.s32.totalorder %s10, 7
    %p93 = scmp.ne.s32.totalorder %s88, %s90
    %p94 = scmp.eq.s32.totalorder %s10, 0
    %p95 = por %p93, %p94
    %p96 = scmp.ne.s32.totalorder %s88, %s90
    %p97 = scmp.eq.s32.totalorder %s15, 7
    %p98 = por %p96, %p97
    %p99 = scmp.ne.s32.totalorder %s90, %s91
    %p100 = scmp.eq.s32.totalorder %s15, 0
    %p101 = por %p99, %p100
    %p102 = scmp.ne.s32.totalorder %s90, %s91
    %p103 = scmp.eq.s32.totalorder %s16, 7
    %p104 = por %p102, %p103
    %p106 = scmp.ne.s32.totalorder %s91, %s105
    %p107 = scmp.eq.s32.totalorder %s16, 0
    %p108 = por %p106, %p107
    %s110 = sadd.s32 %s109, 1
    %p113 = scmp.eq.s32.totalorder %s10, 7
    %p114 = scmp.ne.s32.totalorder %s109, %s111
    %p115 = scmp.eq.s32.totalorder %s10, 0
    %p116 = por %p114, %p115
    %p117 = scmp.ne.s32.totalorder %s109, %s111
    %p118 = scmp.eq.s32.totalorder %s15, 7
    %p119 = por %p117, %p118
    %p120 = scmp.ne.s32.totalorder %s111, %s112
    %p121 = scmp.eq.s32.totalorder %s15, 0
    %p122 = por %p120, %p121
    %p123 = scmp.ne.s32.totalorder %s111, %s112
    %p124 = scmp.eq.s32.totalorder %s16, 7
    %p125 = por %p123, %p124
    %p127 = scmp.ne.s32.totalorder %s112, %s126
    %p128 = scmp.eq.s32.totalorder %s16, 0
    %p129 = por %p127, %p128
    %s130 = ssub.s32 %s17, %s29
    %s131 = ssub.s32 %s18, %s25
    %s132 = sor.u32 %s130, %s131
    %p133 = scmp.eq.s32.totalorder %s132, 0
    %s135 = sadd.s32 %s134, 1
    %s136 = scalar_select %p133, %s134, %s135
    %p139 = pneg %p133
    %p140 = scmp.eq.s32.totalorder %s10, 7
    %p141 = por %p139, %p140
    %p142 = scmp.ne.s32.totalorder %s134, %s137
    %p143 = scmp.eq.s32.totalorder %s10, 0
    %p144 = por %p142, %p143
    %p145 = scmp.ne.s32.totalorder %s134, %s137
    %p146 = scmp.eq.s32.totalorder %s15, 7
    %p147 = por %p145, %p146
    %p148 = scmp.ne.s32.totalorder %s137, %s138
    %p149 = scmp.eq.s32.totalorder %s15, 0
    %p150 = por %p148, %p149
    %p151 = scmp.ne.s32.totalorder %s137, %s138
    %p152 = scmp.eq.s32.totalorder %s16, 7
    %p153 = por %p151, %p152
    %p155 = scmp.ne.s32.totalorder %s138, %s154
    %p156 = scmp.eq.s32.totalorder %s16, 0
    %p157 = por %p155, %p156
    %p158 = scmp.le.s32.totalorder 1, %s10
    %p159 = scmp.lt.s32.totalorder %s10, 9
    %p160 = pnand %p158, %p159
    %p161 = pneg %p160
    // Predicated region
    $region9: #{_lambda_.5} parent=5 // pred_check
      _
    $region10: #{_lambda_.5} parent=5 // pred_check_branch
      %163 = sbr.rel (%p160) target = $region12
    $region11: #{_lambda_.5} parent=5 // pred_region
      %s164 = ssub.s32 %s10, 1
      // Predicated region
      $region13: #{_lambda_.5} parent=11 // pred_check
        %p165 = pneg %p101
      $region14: #{_lambda_.5} parent=11 // pred_check_branch
        %167 = sbr.rel (%p165) target = $region16
      $region15: #{_lambda_.5} parent=11 // pred_region
        _
      $region16: #{_lambda_.5} parent=11 // pred_fallthru
        _
      // Predicated region
      $region17: #{_lambda_.5} parent=11 // pred_check
        %p168 = pneg %p122
      $region18: #{_lambda_.5} parent=11 // pred_check_branch
        %170 = sbr.rel (%p168) target = $region20
      $region19: #{_lambda_.5} parent=11 // pred_region
        _
      $region20: #{_lambda_.5} parent=11 // pred_fallthru
        _
    $region12: #{_lambda_.5} parent=5 // pred_fallthru
      _
    %p171 = scmp.lt.s32.totalorder %s10, 8
    // Predicated region
    $region21: #{_lambda_.5} parent=5 // pred_check
      %p172 = pneg %p171
    $region22: #{_lambda_.5} parent=5 // pred_check_branch
      %174 = sbr.rel (%p172) target = $region24
    $region23: #{_lambda_.5} parent=5 // pred_region
      // Predicated region
      $region25: #{_lambda_.5} parent=23 // pred_check
        %p175 = pneg %p44
      $region26: #{_lambda_.5} parent=23 // pred_check_branch
        %177 = sbr.rel (%p175) target = $region28
      $region27: #{_lambda_.5} parent=23 // pred_region
        %p178 = scmp.lt.s32.totalorder %s17, 1
        %s179 = scalar_select %p178, %s17, 1
        %p180 = scmp.lt.s32.totalorder %s18, 4
        %s181 = scalar_select %p180, %s18, 4
        %s182 = smul.addr %s181, 4
        %s183 = smul.addr %s179, 20
        %s184 = sadd.s32 %s182, %s183
        %s185 = smul.addr %s184, 4
        %s186 = scalar_lea.vmem %s0, %s185
      $region28: #{_lambda_.5} parent=23 // pred_fallthru
        _
      // Predicated region
      $region29: #{_lambda_.5} parent=23 // pred_check
        %p187 = pneg %p74
      $region30: #{_lambda_.5} parent=23 // pred_check_branch
        %189 = sbr.rel (%p187) target = $region32
      $region31: #{_lambda_.5} parent=23 // pred_region
        %s190 = sadd.s32 %s18, 1
        %p191 = scmp.lt.s32.totalorder %s17, 1
        %s192 = scalar_select %p191, %s17, 1
        %p193 = scmp.lt.s32.totalorder %s190, 4
        %s194 = scalar_select %p193, %s190, 4
        %s195 = smul.addr %s194, 4
        %s196 = smul.addr %s192, 20
        %s197 = sadd.s32 %s195, %s196
        %s198 = smul.addr %s197, 4
        %s199 = scalar_lea.vmem %s1, %s198
        %s200 = sadd.s32 %s18, 1
      $region32: #{_lambda_.5} parent=23 // pred_fallthru
        _
    $region24: #{_lambda_.5} parent=5 // pred_fallthru
      _
    %p201 = scmp.le.s32.totalorder 1, %s10
    %p202 = scmp.lt.s32.totalorder %s10, 9
    %p203 = pnand %p201, %p202
    %p204 = pneg %p203
    // Predicated region
    $region33: #{_lambda_.5} parent=5 // pred_check
      _
    $region34: #{_lambda_.5} parent=5 // pred_check_branch
      %206 = sbr.rel (%p203) target = $region36
    $region35: #{_lambda_.5} parent=5 // pred_region
      %s207 = ssub.s32 %s10, 1
      %p208 = scmp.lt.s32.totalorder %s19, 1
      %s209 = scalar_select %p208, %s19, 1
      %p210 = scmp.lt.s32.totalorder %s20, 4
      %s211 = scalar_select %p210, %s20, 4
      %s212 = smul.addr %s211, 4
      %s213 = smul.addr %s209, 20
      %s214 = sadd.s32 %s212, %s213
      %s215 = smul.addr %s214, 4
      %s216 = scalar_lea.vmem %s0, %s215
      %p217 = pneg %p50
      %p218 = pneg %p47
      %s219 = sadd.s32 %s20, 1
      %p220 = scmp.lt.s32.totalorder %s19, 1
      %s221 = scalar_select %p220, %s19, 1
      %p222 = scmp.lt.s32.totalorder %s219, 4
      %s223 = scalar_select %p222, %s219, 4
      %s224 = smul.addr %s223, 4
      %s225 = smul.addr %s221, 20
      %s226 = sadd.s32 %s224, %s225
      %s227 = smul.addr %s226, 4
      %s228 = scalar_lea.vmem %s1, %s227
      %p229 = pneg %p80
      %p230 = pneg %p77
      %p231 = pneg %p101
      %p232 = pneg %p98
      %p233 = pneg %p122
      %p234 = pneg %p119
      %p235 = pneg %p150
      %p236 = pneg %p147
      %p237 = scmp.lt.s32.totalorder %s19, 1
      %s238 = scalar_select %p237, %s19, 1
      %p239 = scmp.lt.s32.totalorder %s20, 3
      %s240 = scalar_select %p239, %s20, 3
      %s241 = smul.addr %s238, 4
      %s242 = sadd.s32 %s240, %s241
      %s243 = smul.addr %s242, 2
      %s244 = scalar_lea.vmem %s4, %s243
      %p245 = scmp.lt.s32.totalorder %s19, 1
      %s246 = scalar_select %p245, %s19, 1
      %p247 = scmp.lt.s32.totalorder %s20, 4
      %s248 = scalar_select %p247, %s20, 4
      %s249 = smul.addr %s248, 4
      %s250 = smul.addr %s246, 20
      %s251 = sadd.s32 %s249, %s250
      %s252 = smul.addr %s251, 4
      %s253 = scalar_lea.vmem %s0, %s252
      %s254 = sadd.s32 %s20, 1
      %p255 = scmp.lt.s32.totalorder %s19, 1
      %s256 = scalar_select %p255, %s19, 1
      %p257 = scmp.lt.s32.totalorder %s254, 4
      %s258 = scalar_select %p257, %s254, 4
      %s259 = smul.addr %s258, 4
      %s260 = smul.addr %s256, 20
      %s261 = sadd.s32 %s259, %s260
      %s262 = smul.addr %s261, 4
      %s263 = scalar_lea.vmem %s1, %s262
      %s264 = sadd.s32 %s20, 1
      %p265 = scmp.lt.s32.totalorder %s19, 1
      %s266 = scalar_select %p265, %s19, 1
      %p267 = scmp.lt.s32.totalorder %s20, 3
      %s268 = scalar_select %p267, %s20, 3
      %s269 = smul.addr %s266, 4
      %s270 = sadd.s32 %s268, %s269
      %s271 = smul.addr %s270, 2
      %s272 = scalar_lea.vmem %s4, %s271
      %v274 = vld [vmem:[%s253] sm:$0x33]
      %v275 = vld [vmem:[%s253 + $0x8] sm:$0x33]
      %v276 = vld [vmem:[%s2] sm:$0xf]
      %v277 = vld [vmem:[%s2 + $0x4] sm:$0xf]
      %v278 = vld [vmem:[%s2 + $0x8] sm:$0xf]
      %v279 = vld [vmem:[%s2 + $0xc] sm:$0xf]
      %v280 = vld [vmem:[%s2 + $0x10] sm:$0xf]
      %v281 = vld [vmem:[%s2 + $0x14] sm:$0xf]
      %v282 = vld [vmem:[%s2 + $0x18] sm:$0xf]
      %v283 = vld [vmem:[%s2 + $0x1c] sm:$0xf]
      %v284 = vld [vmem:[%s2 + $0x20] sm:$0xf]
      %v285 = vld [vmem:[%s2 + $0x24] sm:$0xf]
      %v286 = vld [vmem:[%s2 + $0x28] sm:$0xf]
      %v287 = vld [vmem:[%s2 + $0x2c] sm:$0xf]
      %v288 = vld [vmem:[%s2 + $0x30] sm:$0xf]
      %v289 = vld [vmem:[%s2 + $0x34] sm:$0xf]
      %v290 = vld [vmem:[%s2 + $0x38] sm:$0xf]
      %v291 = vld [vmem:[%s2 + $0x3c] sm:$0xf]
      %v292 = vld [vmem:[%s2 + $0x40] sm:$0xf]
      %v293 = vld [vmem:[%s2 + $0x44] sm:$0xf]
      %v294 = vld [vmem:[%s2 + $0x48] sm:$0xf]
      %v295 = vld [vmem:[%s2 + $0x4c] sm:$0xf]
      %v296 = vld [vmem:[%s2 + $0x50] sm:$0xf]
      %v297 = vld [vmem:[%s2 + $0x54] sm:$0xf]
      %v298 = vld [vmem:[%s2 + $0x58] sm:$0xf]
      %v299 = vld [vmem:[%s2 + $0x5c] sm:$0xf]
      %v300 = vld [vmem:[%s2 + $0x60] sm:$0xf]
      %v301 = vld [vmem:[%s2 + $0x64] sm:$0xf]
      %v302 = vld [vmem:[%s2 + $0x68] sm:$0xf]
      %v303 = vld [vmem:[%s2 + $0x6c] sm:$0xf]
      %v304 = vld [vmem:[%s2 + $0x70] sm:$0xf]
      %v305 = vld [vmem:[%s2 + $0x74] sm:$0xf]
      %v306 = vld [vmem:[%s2 + $0x78] sm:$0xf]
      %v307 = vld [vmem:[%s2 + $0x7c] sm:$0xf]
      %v308 = vld [vmem:[%s2 + $0x80] sm:$0xf]
      %v309 = vld [vmem:[%s2 + $0x84] sm:$0xf]
      %v310 = vld [vmem:[%s2 + $0x88] sm:$0xf]
      %v311 = vld [vmem:[%s2 + $0x8c] sm:$0xf]
      %v312 = vld [vmem:[%s2 + $0x90] sm:$0xf]
      %v313 = vld [vmem:[%s2 + $0x94] sm:$0xf]
      %v314 = vld [vmem:[%s2 + $0x98] sm:$0xf]
      %v315 = vld [vmem:[%s2 + $0x9c] sm:$0xf]
      %v316 = vld [vmem:[%s2 + $0xa0] sm:$0xf]
      %v317 = vld [vmem:[%s2 + $0xa4] sm:$0xf]
      %v318 = vld [vmem:[%s2 + $0xa8] sm:$0xf]
      %v319 = vld [vmem:[%s2 + $0xac] sm:$0xf]
      %v320 = vld [vmem:[%s2 + $0xb0] sm:$0xf]
      %v321 = vld [vmem:[%s2 + $0xb4] sm:$0xf]
      %v322 = vld [vmem:[%s2 + $0xb8] sm:$0xf]
      %v323 = vld [vmem:[%s2 + $0xbc] sm:$0xf]
      %v324 = vld [vmem:[%s2 + $0xc0] sm:$0xf]
      %v325 = vld [vmem:[%s2 + $0xc4] sm:$0xf]
      %v326 = vld [vmem:[%s2 + $0xc8] sm:$0xf]
      %v327 = vld [vmem:[%s2 + $0xcc] sm:$0xf]
      %v328 = vld [vmem:[%s2 + $0xd0] sm:$0xf]
      %v329 = vld [vmem:[%s2 + $0xd4] sm:$0xf]
      %v330 = vld [vmem:[%s2 + $0xd8] sm:$0xf]
      %v331 = vld [vmem:[%s2 + $0xdc] sm:$0xf]
      %v332 = vld [vmem:[%s2 + $0xe0] sm:$0xf]
      %v333 = vld [vmem:[%s2 + $0xe4] sm:$0xf]
      %v334 = vld [vmem:[%s2 + $0xe8] sm:$0xf]
      %v335 = vld [vmem:[%s2 + $0xec] sm:$0xf]
      %v336 = vld [vmem:[%s2 + $0xf0] sm:$0xf]
      %v337 = vld [vmem:[%s2 + $0xf4] sm:$0xf]
      %v338 = vld [vmem:[%s2 + $0xf8] sm:$0xf]
      %v339 = vld [vmem:[%s2 + $0xfc] sm:$0xf]
      %v340 = vld [vmem:[%s253] sm:$0x77]
      %v341 = vld [vmem:[%s253 + $0x8] sm:$0x77]
      %s342 = scalar_lea.vmem %s2, 256
      %v343 = vld [vmem:[%s342] sm:$0xf]
      %v344 = vld [vmem:[%s342 + $0x4] sm:$0xf]
      %v345 = vld [vmem:[%s342 + $0x8] sm:$0xf]
      %v346 = vld [vmem:[%s342 + $0xc] sm:$0xf]
      %v347 = vld [vmem:[%s342 + $0x10] sm:$0xf]
      %v348 = vld [vmem:[%s342 + $0x14] sm:$0xf]
      %v349 = vld [vmem:[%s342 + $0x18] sm:$0xf]
      %v350 = vld [vmem:[%s342 + $0x1c] sm:$0xf]
      %v351 = vld [vmem:[%s342 + $0x20] sm:$0xf]
      %v352 = vld [vmem:[%s342 + $0x24] sm:$0xf]
      %v353 = vld [vmem:[%s342 + $0x28] sm:$0xf]
      %v354 = vld [vmem:[%s342 + $0x2c] sm:$0xf]
      %v355 = vld [vmem:[%s342 + $0x30] sm:$0xf]
      %v356 = vld [vmem:[%s342 + $0x34] sm:$0xf]
      %v357 = vld [vmem:[%s342 + $0x38] sm:$0xf]
      %v358 = vld [vmem:[%s342 + $0x3c] sm:$0xf]
      %v359 = vld [vmem:[%s342 + $0x40] sm:$0xf]
      %v360 = vld [vmem:[%s342 + $0x44] sm:$0xf]
      %v361 = vld [vmem:[%s342 + $0x48] sm:$0xf]
      %v362 = vld [vmem:[%s342 + $0x4c] sm:$0xf]
      %v363 = vld [vmem:[%s342 + $0x50] sm:$0xf]
      %v364 = vld [vmem:[%s342 + $0x54] sm:$0xf]
      %v365 = vld [vmem:[%s342 + $0x58] sm:$0xf]
      %v366 = vld [vmem:[%s342 + $0x5c] sm:$0xf]
      %v367 = vld [vmem:[%s342 + $0x60] sm:$0xf]
      %v368 = vld [vmem:[%s342 + $0x64] sm:$0xf]
      %v369 = vld [vmem:[%s342 + $0x68] sm:$0xf]
      %v370 = vld [vmem:[%s342 + $0x6c] sm:$0xf]
      %v371 = vld [vmem:[%s342 + $0x70] sm:$0xf]
      %v372 = vld [vmem:[%s342 + $0x74] sm:$0xf]
      %v373 = vld [vmem:[%s342 + $0x78] sm:$0xf]
      %v374 = vld [vmem:[%s342 + $0x7c] sm:$0xf]
      %v375 = vld [vmem:[%s342 + $0x80] sm:$0xf]
      %v376 = vld [vmem:[%s342 + $0x84] sm:$0xf]
      %v377 = vld [vmem:[%s342 + $0x88] sm:$0xf]
      %v378 = vld [vmem:[%s342 + $0x8c] sm:$0xf]
      %v379 = vld [vmem:[%s342 + $0x90] sm:$0xf]
      %v380 = vld [vmem:[%s342 + $0x94] sm:$0xf]
      %v381 = vld [vmem:[%s342 + $0x98] sm:$0xf]
      %v382 = vld [vmem:[%s342 + $0x9c] sm:$0xf]
      %v383 = vld [vmem:[%s342 + $0xa0] sm:$0xf]
      %v384 = vld [vmem:[%s342 + $0xa4] sm:$0xf]
      %v385 = vld [vmem:[%s342 + $0xa8] sm:$0xf]
      %v386 = vld [vmem:[%s342 + $0xac] sm:$0xf]
      %v387 = vld [vmem:[%s342 + $0xb0] sm:$0xf]
      %v388 = vld [vmem:[%s342 + $0xb4] sm:$0xf]
      %v389 = vld [vmem:[%s342 + $0xb8] sm:$0xf]
      %v390 = vld [vmem:[%s342 + $0xbc] sm:$0xf]
      %v391 = vld [vmem:[%s342 + $0xc0] sm:$0xf]
      %v392 = vld [vmem:[%s342 + $0xc4] sm:$0xf]
      %v393 = vld [vmem:[%s342 + $0xc8] sm:$0xf]
      %v394 = vld [vmem:[%s342 + $0xcc] sm:$0xf]
      %v395 = vld [vmem:[%s342 + $0xd0] sm:$0xf]
      %v396 = vld [vmem:[%s342 + $0xd4] sm:$0xf]
      %v397 = vld [vmem:[%s342 + $0xd8] sm:$0xf]
      %v398 = vld [vmem:[%s342 + $0xdc] sm:$0xf]
      %v399 = vld [vmem:[%s342 + $0xe0] sm:$0xf]
      %v400 = vld [vmem:[%s342 + $0xe4] sm:$0xf]
      %v401 = vld [vmem:[%s342 + $0xe8] sm:$0xf]
      %v402 = vld [vmem:[%s342 + $0xec] sm:$0xf]
      %v403 = vld [vmem:[%s342 + $0xf0] sm:$0xf]
      %v404 = vld [vmem:[%s342 + $0xf4] sm:$0xf]
      %v405 = vld [vmem:[%s342 + $0xf8] sm:$0xf]
      %v406 = vld [vmem:[%s342 + $0xfc] sm:$0xf]
      %v409 = vunpack.c.l.b16 %v340
      %v410 = vunpack.c.h.b16 %v340
      %v411 = vunpack.c.l.b16 %v341
      %v412 = vunpack.c.h.b16 %v341
      %v413 = vpack.c.b16 %v409, %v409
      %v414 = vpack.c.b16 %v410, %v410
      %v415 = vpack.c.b16 %v411, %v411
      %v416 = vpack.c.b16 %v412, %v412
      %v418 = vshrl.u32 %v413, 16
      %v420 = vshll.u32 %v413, 16
      %v422 = vrot.slane %v420, 1
      %v423 = vor.u32 %v418, %v422
      %v425 = vshrl.u32 %v414, 16
      %v427 = vshll.u32 %v414, 16
      %v429 = vrot.slane %v427, 1
      %v430 = vor.u32 %v425, %v429
      %v432 = vshrl.u32 %v415, 16
      %v434 = vshll.u32 %v415, 16
      %v436 = vrot.slane %v434, 1
      %v437 = vor.u32 %v432, %v436
      %v439 = vshrl.u32 %v416, 16
      %v441 = vshll.u32 %v416, 16
      %v443 = vrot.slane %v441, 1
      %v444 = vor.u32 %v439, %v443
      %v513 = vunpack.c.l.b16 %v343
      %v514 = vunpack.c.l.b16 %v344
      %v515 = vunpack.c.l.b16 %v345
      %v516 = vunpack.c.l.b16 %v346
      %v517 = vunpack.c.l.b16 %v347
      %v518 = vunpack.c.l.b16 %v348
      %v519 = vunpack.c.l.b16 %v349
      %v520 = vunpack.c.l.b16 %v350
      %v521 = vunpack.c.l.b16 %v351
      %v522 = vunpack.c.l.b16 %v352
      %v523 = vunpack.c.l.b16 %v353
      %v524 = vunpack.c.l.b16 %v354
      %v525 = vunpack.c.l.b16 %v355
      %v526 = vunpack.c.l.b16 %v356
      %v527 = vunpack.c.l.b16 %v357
      %v528 = vunpack.c.l.b16 %v358
      %v529 = vunpack.c.l.b16 %v359
      %v530 = vunpack.c.l.b16 %v360
      %v531 = vunpack.c.l.b16 %v361
      %v532 = vunpack.c.l.b16 %v362
      %v533 = vunpack.c.l.b16 %v363
      %v534 = vunpack.c.l.b16 %v364
      %v535 = vunpack.c.l.b16 %v365
      %v536 = vunpack.c.l.b16 %v366
      %v537 = vunpack.c.l.b16 %v367
      %v538 = vunpack.c.l.b16 %v368
      %v539 = vunpack.c.l.b16 %v369
      %v540 = vunpack.c.l.b16 %v370
      %v541 = vunpack.c.l.b16 %v371
      %v542 = vunpack.c.l.b16 %v372
      %v543 = vunpack.c.l.b16 %v373
      %v544 = vunpack.c.l.b16 %v374
      %v545 = vunpack.c.l.b16 %v375
      %v546 = vunpack.c.l.b16 %v376
      %v547 = vunpack.c.l.b16 %v377
      %v548 = vunpack.c.l.b16 %v378
      %v549 = vunpack.c.l.b16 %v379
      %v550 = vunpack.c.l.b16 %v380
      %v551 = vunpack.c.l.b16 %v381
      %v552 = vunpack.c.l.b16 %v382
      %v553 = vunpack.c.l.b16 %v383
      %v554 = vunpack.c.l.b16 %v384
      %v555 = vunpack.c.l.b16 %v385
      %v556 = vunpack.c.l.b16 %v386
      %v557 = vunpack.c.l.b16 %v387
      %v558 = vunpack.c.l.b16 %v388
      %v559 = vunpack.c.l.b16 %v389
      %v560 = vunpack.c.l.b16 %v390
      %v561 = vunpack.c.l.b16 %v391
      %v562 = vunpack.c.l.b16 %v392
      %v563 = vunpack.c.l.b16 %v393
      %v564 = vunpack.c.l.b16 %v394
      %v565 = vunpack.c.l.b16 %v395
      %v566 = vunpack.c.l.b16 %v396
      %v567 = vunpack.c.l.b16 %v397
      %v568 = vunpack.c.l.b16 %v398
      %v569 = vunpack.c.l.b16 %v399
      %v570 = vunpack.c.l.b16 %v400
      %v571 = vunpack.c.l.b16 %v401
      %v572 = vunpack.c.l.b16 %v402
      %v573 = vunpack.c.l.b16 %v403
      %v574 = vunpack.c.l.b16 %v404
      %v575 = vunpack.c.l.b16 %v405
      %v576 = vunpack.c.l.b16 %v406
      %v577 = vpack.c.b16 %v514, %v513
      %v578 = vpack.c.b16 %v516, %v515
      %v579 = vpack.c.b16 %v518, %v517
      %v580 = vpack.c.b16 %v520, %v519
      %v581 = vpack.c.b16 %v522, %v521
      %v582 = vpack.c.b16 %v524, %v523
      %v583 = vpack.c.b16 %v526, %v525
      %v584 = vpack.c.b16 %v528, %v527
      %v585 = vpack.c.b16 %v530, %v529
      %v586 = vpack.c.b16 %v532, %v531
      %v587 = vpack.c.b16 %v534, %v533
      %v588 = vpack.c.b16 %v536, %v535
      %v589 = vpack.c.b16 %v538, %v537
      %v590 = vpack.c.b16 %v540, %v539
      %v591 = vpack.c.b16 %v542, %v541
      %v592 = vpack.c.b16 %v544, %v543
      %v593 = vpack.c.b16 %v546, %v545
      %v594 = vpack.c.b16 %v548, %v547
      %v595 = vpack.c.b16 %v550, %v549
      %v596 = vpack.c.b16 %v552, %v551
      %v597 = vpack.c.b16 %v554, %v553
      %v598 = vpack.c.b16 %v556, %v555
      %v599 = vpack.c.b16 %v558, %v557
      %v600 = vpack.c.b16 %v560, %v559
      %v601 = vpack.c.b16 %v562, %v561
      %v602 = vpack.c.b16 %v564, %v563
      %v603 = vpack.c.b16 %v566, %v565
      %v604 = vpack.c.b16 %v568, %v567
      %v605 = vpack.c.b16 %v570, %v569
      %v606 = vpack.c.b16 %v572, %v571
      %v607 = vpack.c.b16 %v574, %v573
      %v608 = vpack.c.b16 %v576, %v575
      %641 = vmatprep.subr.bf16.mxu0 0
      %642 = vmatpush1.bf16.msra.mxu0 %v577
      %643 = vmatprep.subr.bf16.mxu0 0
      %644 = vmatpush1.bf16.msra.mxu0 %v578
      %645 = vmatprep.subr.bf16.mxu0 0
      %646 = vmatpush1.bf16.msra.mxu0 %v579
      %647 = vmatprep.subr.bf16.mxu0 0
      %648 = vmatpush1.bf16.msra.mxu0 %v580
      %649 = vmatprep.subr.bf16.mxu0 0
      %650 = vmatpush1.bf16.msra.mxu0 %v581
      %651 = vmatprep.subr.bf16.mxu0 0
      %652 = vmatpush1.bf16.msra.mxu0 %v582
      %653 = vmatprep.subr.bf16.mxu0 0
      %654 = vmatpush1.bf16.msra.mxu0 %v583
      %655 = vmatprep.subr.bf16.mxu0 0
      %656 = vmatpush1.bf16.msra.mxu0 %v584
      %657 = vmatprep.subr.bf16.mxu0 0
      %658 = vmatpush1.bf16.msra.mxu0 %v585
      %659 = vmatprep.subr.bf16.mxu0 0
      %660 = vmatpush1.bf16.msra.mxu0 %v586
      %661 = vmatprep.subr.bf16.mxu0 0
      %662 = vmatpush1.bf16.msra.mxu0 %v587
      %663 = vmatprep.subr.bf16.mxu0 0
      %664 = vmatpush1.bf16.msra.mxu0 %v588
      %665 = vmatprep.subr.bf16.mxu0 0
      %666 = vmatpush1.bf16.msra.mxu0 %v589
      %667 = vmatprep.subr.bf16.mxu0 0
      %668 = vmatpush1.bf16.msra.mxu0 %v590
      %669 = vmatprep.subr.bf16.mxu0 0
      %670 = vmatpush1.bf16.msra.mxu0 %v591
      %671 = vmatprep.subr.bf16.mxu0 0
      %672 = vmatpush1.bf16.msra.mxu0 %v592
      %673 = vmatprep.mubr.bf16.mxu0 %v430
      %674 = vmatmul.mubr.bf16.gmra.mrb[0].mxu0 %v423
      %v675 = vpop.f32.mrb[0].mxu0
      %v676 = vadd.f32 0.0, %v675
      %v677 = vpop.f32.mrb[0].mxu0
      %v678 = vpop.f32.mrb[0].mxu0
      %v679 = vpop.f32.mrb[0].mxu0
      %680 = vdwg.mxu0
      %681 = vmatprep.subr.bf16.mxu0 0
      %682 = vmatpush1.bf16.msra.mxu0 %v593
      %683 = vmatprep.subr.bf16.mxu0 0
      %684 = vmatpush1.bf16.msra.mxu0 %v594
      %685 = vmatprep.subr.bf16.mxu0 0
      %686 = vmatpush1.bf16.msra.mxu0 %v595
      %687 = vmatprep.subr.bf16.mxu0 0
      %688 = vmatpush1.bf16.msra.mxu0 %v596
      %689 = vmatprep.subr.bf16.mxu0 0
      %690 = vmatpush1.bf16.msra.mxu0 %v597
      %691 = vmatprep.subr.bf16.mxu0 0
      %692 = vmatpush1.bf16.msra.mxu0 %v598
      %693 = vmatprep.subr.bf16.mxu0 0
      %694 = vmatpush1.bf16.msra.mxu0 %v599
      %695 = vmatprep.subr.bf16.mxu0 0
      %696 = vmatpush1.bf16.msra.mxu0 %v600
      %697 = vmatprep.subr.bf16.mxu0 0
      %698 = vmatpush1.bf16.msra.mxu0 %v601
      %699 = vmatprep.subr.bf16.mxu0 0
      %700 = vmatpush1.bf16.msra.mxu0 %v602
      %701 = vmatprep.subr.bf16.mxu0 0
      %702 = vmatpush1.bf16.msra.mxu0 %v603
      %703 = vmatprep.subr.bf16.mxu0 0
      %704 = vmatpush1.bf16.msra.mxu0 %v604
      %705 = vmatprep.subr.bf16.mxu0 0
      %706 = vmatpush1.bf16.msra.mxu0 %v605
      %707 = vmatprep.subr.bf16.mxu0 0
      %708 = vmatpush1.bf16.msra.mxu0 %v606
      %709 = vmatprep.subr.bf16.mxu0 0
      %710 = vmatpush1.bf16.msra.mxu0 %v607
      %711 = vmatprep.subr.bf16.mxu0 0
      %712 = vmatpush1.bf16.msra.mxu0 %v608
      %713 = vmatprep.mubr.bf16.mxu0 %v444
      %714 = vmatmul.mubr.bf16.gmra.mrb[0].mxu0 %v437
      %v715 = vpop.f32.mrb[0].mxu0
      %v716 = vadd.f32 %v676, %v715
      %v717 = vpop.f32.mrb[0].mxu0
      %v718 = vpop.f32.mrb[0].mxu0
      %v719 = vpop.f32.mrb[0].mxu0
      %720 = vdwg.mxu0
      %v723 = vunpack.c.l.b16 %v274
      %v724 = vunpack.c.h.b16 %v274
      %v725 = vunpack.c.l.b16 %v275
      %v726 = vunpack.c.h.b16 %v275
      %v727 = vpack.c.b16 %v723, %v723
      %v728 = vpack.c.b16 %v724, %v724
      %v729 = vpack.c.b16 %v725, %v725
      %v730 = vpack.c.b16 %v726, %v726
      %v799 = vunpack.c.l.b16 %v276
      %v800 = vunpack.c.l.b16 %v277
      %v801 = vunpack.c.l.b16 %v278
      %v802 = vunpack.c.l.b16 %v279
      %v803 = vunpack.c.l.b16 %v280
      %v804 = vunpack.c.l.b16 %v281
      %v805 = vunpack.c.l.b16 %v282
      %v806 = vunpack.c.l.b16 %v283
      %v807 = vunpack.c.l.b16 %v284
      %v808 = vunpack.c.l.b16 %v285
      %v809 = vunpack.c.l.b16 %v286
      %v810 = vunpack.c.l.b16 %v287
      %v811 = vunpack.c.l.b16 %v288
      %v812 = vunpack.c.l.b16 %v289
      %v813 = vunpack.c.l.b16 %v290
      %v814 = vunpack.c.l.b16 %v291
      %v815 = vunpack.c.l.b16 %v292
      %v816 = vunpack.c.l.b16 %v293
      %v817 = vunpack.c.l.b16 %v294
      %v818 = vunpack.c.l.b16 %v295
      %v819 = vunpack.c.l.b16 %v296
      %v820 = vunpack.c.l.b16 %v297
      %v821 = vunpack.c.l.b16 %v298
      %v822 = vunpack.c.l.b16 %v299
      %v823 = vunpack.c.l.b16 %v300
      %v824 = vunpack.c.l.b16 %v301
      %v825 = vunpack.c.l.b16 %v302
      %v826 = vunpack.c.l.b16 %v303
      %v827 = vunpack.c.l.b16 %v304
      %v828 = vunpack.c.l.b16 %v305
      %v829 = vunpack.c.l.b16 %v306
      %v830 = vunpack.c.l.b16 %v307
      %v831 = vunpack.c.l.b16 %v308
      %v832 = vunpack.c.l.b16 %v309
      %v833 = vunpack.c.l.b16 %v310
      %v834 = vunpack.c.l.b16 %v311
      %v835 = vunpack.c.l.b16 %v312
      %v836 = vunpack.c.l.b16 %v313
      %v837 = vunpack.c.l.b16 %v314
      %v838 = vunpack.c.l.b16 %v315
      %v839 = vunpack.c.l.b16 %v316
      %v840 = vunpack.c.l.b16 %v317
      %v841 = vunpack.c.l.b16 %v318
      %v842 = vunpack.c.l.b16 %v319
      %v843 = vunpack.c.l.b16 %v320
      %v844 = vunpack.c.l.b16 %v321
      %v845 = vunpack.c.l.b16 %v322
      %v846 = vunpack.c.l.b16 %v323
      %v847 = vunpack.c.l.b16 %v324
      %v848 = vunpack.c.l.b16 %v325
      %v849 = vunpack.c.l.b16 %v326
      %v850 = vunpack.c.l.b16 %v327
      %v851 = vunpack.c.l.b16 %v328
      %v852 = vunpack.c.l.b16 %v329
      %v853 = vunpack.c.l.b16 %v330
      %v854 = vunpack.c.l.b16 %v331
      %v855 = vunpack.c.l.b16 %v332
      %v856 = vunpack.c.l.b16 %v333
      %v857 = vunpack.c.l.b16 %v334
      %v858 = vunpack.c.l.b16 %v335
      %v859 = vunpack.c.l.b16 %v336
      %v860 = vunpack.c.l.b16 %v337
      %v861 = vunpack.c.l.b16 %v338
      %v862 = vunpack.c.l.b16 %v339
      %v863 = vpack.c.b16 %v800, %v799
      %v864 = vpack.c.b16 %v802, %v801
      %v865 = vpack.c.b16 %v804, %v803
      %v866 = vpack.c.b16 %v806, %v805
      %v867 = vpack.c.b16 %v808, %v807
      %v868 = vpack.c.b16 %v810, %v809
      %v869 = vpack.c.b16 %v812, %v811
      %v870 = vpack.c.b16 %v814, %v813
      %v871 = vpack.c.b16 %v816, %v815
      %v872 = vpack.c.b16 %v818, %v817
      %v873 = vpack.c.b16 %v820, %v819
      %v874 = vpack.c.b16 %v822, %v821
      %v875 = vpack.c.b16 %v824, %v823
      %v876 = vpack.c.b16 %v826, %v825
      %v877 = vpack.c.b16 %v828, %v827
      %v878 = vpack.c.b16 %v830, %v829
      %v879 = vpack.c.b16 %v832, %v831
      %v880 = vpack.c.b16 %v834, %v833
      %v881 = vpack.c.b16 %v836, %v835
      %v882 = vpack.c.b16 %v838, %v837
      %v883 = vpack.c.b16 %v840, %v839
      %v884 = vpack.c.b16 %v842, %v841
      %v885 = vpack.c.b16 %v844, %v843
      %v886 = vpack.c.b16 %v846, %v845
      %v887 = vpack.c.b16 %v848, %v847
      %v888 = vpack.c.b16 %v850, %v849
      %v889 = vpack.c.b16 %v852, %v851
      %v890 = vpack.c.b16 %v854, %v853
      %v891 = vpack.c.b16 %v856, %v855
      %v892 = vpack.c.b16 %v858, %v857
      %v893 = vpack.c.b16 %v860, %v859
      %v894 = vpack.c.b16 %v862, %v861
      %927 = vmatprep.subr.bf16.mxu0 0
      %928 = vmatpush1.bf16.msra.mxu0 %v863
      %929 = vmatprep.subr.bf16.mxu0 0
      %930 = vmatpush1.bf16.msra.mxu0 %v864
      %931 = vmatprep.subr.bf16.mxu0 0
      %932 = vmatpush1.bf16.msra.mxu0 %v865
      %933 = vmatprep.subr.bf16.mxu0 0
      %934 = vmatpush1.bf16.msra.mxu0 %v866
      %935 = vmatprep.subr.bf16.mxu0 0
      %936 = vmatpush1.bf16.msra.mxu0 %v867
      %937 = vmatprep.subr.bf16.mxu0 0
      %938 = vmatpush1.bf16.msra.mxu0 %v868
      %939 = vmatprep.subr.bf16.mxu0 0
      %940 = vmatpush1.bf16.msra.mxu0 %v869
      %941 = vmatprep.subr.bf16.mxu0 0
      %942 = vmatpush1.bf16.msra.mxu0 %v870
      %943 = vmatprep.subr.bf16.mxu0 0
      %944 = vmatpush1.bf16.msra.mxu0 %v871
      %945 = vmatprep.subr.bf16.mxu0 0
      %946 = vmatpush1.bf16.msra.mxu0 %v872
      %947 = vmatprep.subr.bf16.mxu0 0
      %948 = vmatpush1.bf16.msra.mxu0 %v873
      %949 = vmatprep.subr.bf16.mxu0 0
      %950 = vmatpush1.bf16.msra.mxu0 %v874
      %951 = vmatprep.subr.bf16.mxu0 0
      %952 = vmatpush1.bf16.msra.mxu0 %v875
      %953 = vmatprep.subr.bf16.mxu0 0
      %954 = vmatpush1.bf16.msra.mxu0 %v876
      %955 = vmatprep.subr.bf16.mxu0 0
      %956 = vmatpush1.bf16.msra.mxu0 %v877
      %957 = vmatprep.subr.bf16.mxu0 0
      %958 = vmatpush1.bf16.msra.mxu0 %v878
      %959 = vmatprep.mubr.bf16.mxu0 %v728
      %960 = vmatmul.mubr.bf16.gmra.mrb[0].mxu0 %v727
      %v961 = vpop.f32.mrb[0].mxu0
      %v962 = vadd.f32 %v716, %v961
      %v963 = vpop.f32.mrb[0].mxu0
      %v964 = vpop.f32.mrb[0].mxu0
      %v965 = vpop.f32.mrb[0].mxu0
      %966 = vdwg.mxu0
      %967 = vmatprep.subr.bf16.mxu0 0
      %968 = vmatpush1.bf16.msra.mxu0 %v879
      %969 = vmatprep.subr.bf16.mxu0 0
      %970 = vmatpush1.bf16.msra.mxu0 %v880
      %971 = vmatprep.subr.bf16.mxu0 0
      %972 = vmatpush1.bf16.msra.mxu0 %v881
      %973 = vmatprep.subr.bf16.mxu0 0
      %974 = vmatpush1.bf16.msra.mxu0 %v882
      %975 = vmatprep.subr.bf16.mxu0 0
      %976 = vmatpush1.bf16.msra.mxu0 %v883
      %977 = vmatprep.subr.bf16.mxu0 0
      %978 = vmatpush1.bf16.msra.mxu0 %v884
      %979 = vmatprep.subr.bf16.mxu0 0
      %980 = vmatpush1.bf16.msra.mxu0 %v885
      %981 = vmatprep.subr.bf16.mxu0 0
      %982 = vmatpush1.bf16.msra.mxu0 %v886
      %983 = vmatprep.subr.bf16.mxu0 0
      %984 = vmatpush1.bf16.msra.mxu0 %v887
      %985 = vmatprep.subr.bf16.mxu0 0
      %986 = vmatpush1.bf16.msra.mxu0 %v888
      %987 = vmatprep.subr.bf16.mxu0 0
      %988 = vmatpush1.bf16.msra.mxu0 %v889
      %989 = vmatprep.subr.bf16.mxu0 0
      %990 = vmatpush1.bf16.msra.mxu0 %v890
      %991 = vmatprep.subr.bf16.mxu0 0
      %992 = vmatpush1.bf16.msra.mxu0 %v891
      %993 = vmatprep.subr.bf16.mxu0 0
      %994 = vmatpush1.bf16.msra.mxu0 %v892
      %995 = vmatprep.subr.bf16.mxu0 0
      %996 = vmatpush1.bf16.msra.mxu0 %v893
      %997 = vmatprep.subr.bf16.mxu0 0
      %998 = vmatpush1.bf16.msra.mxu0 %v894
      %999 = vmatprep.mubr.bf16.mxu0 %v730
      %1000 = vmatmul.mubr.bf16.gmra.mrb[0].mxu0 %v729
      %v1001 = vpop.f32.mrb[0].mxu0
      %v1002 = vadd.f32 %v962, %v1001
      %v1003 = vpop.f32.mrb[0].mxu0
      %v1004 = vpop.f32.mrb[0].mxu0
      %v1005 = vpop.f32.mrb[0].mxu0
      %1006 = vdwg.mxu0
      %v1007 = vld [vmem:[%s263] sm:$0x33]
      %v1008 = vld [vmem:[%s263 + $0x8] sm:$0x33]
      %s1009 = scalar_lea.vmem %s2, 512
      %v1010 = vld [vmem:[%s1009] sm:$0xf]
      %v1011 = vld [vmem:[%s1009 + $0x4] sm:$0xf]
      %v1012 = vld [vmem:[%s1009 + $0x8] sm:$0xf]
      %v1013 = vld [vmem:[%s1009 + $0xc] sm:$0xf]
      %v1014 = vld [vmem:[%s1009 + $0x10] sm:$0xf]
      %v1015 = vld [vmem:[%s1009 + $0x14] sm:$0xf]
      %v1016 = vld [vmem:[%s1009 + $0x18] sm:$0xf]
      %v1017 = vld [vmem:[%s1009 + $0x1c] sm:$0xf]
      %v1018 = vld [vmem:[%s1009 + $0x20] sm:$0xf]
      %v1019 = vld [vmem:[%s1009 + $0x24] sm:$0xf]
      %v1020 = vld [vmem:[%s1009 + $0x28] sm:$0xf]
      %v1021 = vld [vmem:[%s1009 + $0x2c] sm:$0xf]
      %v1022 = vld [vmem:[%s1009 + $0x30] sm:$0xf]
      %v1023 = vld [vmem:[%s1009 + $0x34] sm:$0xf]
      %v1024 = vld [vmem:[%s1009 + $0x38] sm:$0xf]
      %v1025 = vld [vmem:[%s1009 + $0x3c] sm:$0xf]
      %v1026 = vld [vmem:[%s1009 + $0x40] sm:$0xf]
      %v1027 = vld [vmem:[%s1009 + $0x44] sm:$0xf]
      %v1028 = vld [vmem:[%s1009 + $0x48] sm:$0xf]
      %v1029 = vld [vmem:[%s1009 + $0x4c] sm:$0xf]
      %v1030 = vld [vmem:[%s1009 + $0x50] sm:$0xf]
      %v1031 = vld [vmem:[%s1009 + $0x54] sm:$0xf]
      %v1032 = vld [vmem:[%s1009 + $0x58] sm:$0xf]
      %v1033 = vld [vmem:[%s1009 + $0x5c] sm:$0xf]
      %v1034 = vld [vmem:[%s1009 + $0x60] sm:$0xf]
      %v1035 = vld [vmem:[%s1009 + $0x64] sm:$0xf]
      %v1036 = vld [vmem:[%s1009 + $0x68] sm:$0xf]
      %v1037 = vld [vmem:[%s1009 + $0x6c] sm:$0xf]
      %v1038 = vld [vmem:[%s1009 + $0x70] sm:$0xf]
      %v1039 = vld [vmem:[%s1009 + $0x74] sm:$0xf]
      %v1040 = vld [vmem:[%s1009 + $0x78] sm:$0xf]
      %v1041 = vld [vmem:[%s1009 + $0x7c] sm:$0xf]
      %v1042 = vld [vmem:[%s1009 + $0x80] sm:$0xf]
      %v1043 = vld [vmem:[%s1009 + $0x84] sm:$0xf]
      %v1044 = vld [vmem:[%s1009 + $0x88] sm:$0xf]
      %v1045 = vld [vmem:[%s1009 + $0x8c] sm:$0xf]
      %v1046 = vld [vmem:[%s1009 + $0x90] sm:$0xf]
      %v1047 = vld [vmem:[%s1009 + $0x94] sm:$0xf]
      %v1048 = vld [vmem:[%s1009 + $0x98] sm:$0xf]
      %v1049 = vld [vmem:[%s1009 + $0x9c] sm:$0xf]
      %v1050 = vld [vmem:[%s1009 + $0xa0] sm:$0xf]
      %v1051 = vld [vmem:[%s1009 + $0xa4] sm:$0xf]
      %v1052 = vld [vmem:[%s1009 + $0xa8] sm:$0xf]
      %v1053 = vld [vmem:[%s1009 + $0xac] sm:$0xf]
      %v1054 = vld [vmem:[%s1009 + $0xb0] sm:$0xf]
      %v1055 = vld [vmem:[%s1009 + $0xb4] sm:$0xf]
      %v1056 = vld [vmem:[%s1009 + $0xb8] sm:$0xf]
      %v1057 = vld [vmem:[%s1009 + $0xbc] sm:$0xf]
      %v1058 = vld [vmem:[%s1009 + $0xc0] sm:$0xf]
      %v1059 = vld [vmem:[%s1009 + $0xc4] sm:$0xf]
      %v1060 = vld [vmem:[%s1009 + $0xc8] sm:$0xf]
      %v1061 = vld [vmem:[%s1009 + $0xcc] sm:$0xf]
      %v1062 = vld [vmem:[%s1009 + $0xd0] sm:$0xf]
      %v1063 = vld [vmem:[%s1009 + $0xd4] sm:$0xf]
      %v1064 = vld [vmem:[%s1009 + $0xd8] sm:$0xf]
      %v1065 = vld [vmem:[%s1009 + $0xdc] sm:$0xf]
      %v1066 = vld [vmem:[%s1009 + $0xe0] sm:$0xf]
      %v1067 = vld [vmem:[%s1009 + $0xe4] sm:$0xf]
      %v1068 = vld [vmem:[%s1009 + $0xe8] sm:$0xf]
      %v1069 = vld [vmem:[%s1009 + $0xec] sm:$0xf]
      %v1070 = vld [vmem:[%s1009 + $0xf0] sm:$0xf]
      %v1071 = vld [vmem:[%s1009 + $0xf4] sm:$0xf]
      %v1072 = vld [vmem:[%s1009 + $0xf8] sm:$0xf]
      %v1073 = vld [vmem:[%s1009 + $0xfc] sm:$0xf]
      %v1076 = vunpack.c.l.b16 %v1007
      %v1077 = vunpack.c.h.b16 %v1007
      %v1078 = vunpack.c.l.b16 %v1008
      %v1079 = vunpack.c.h.b16 %v1008
      %v1080 = vpack.c.b16 %v1076, %v1076
      %v1081 = vpack.c.b16 %v1077, %v1077
      %v1082 = vpack.c.b16 %v1078, %v1078
      %v1083 = vpack.c.b16 %v1079, %v1079
      %v1152 = vunpack.c.l.b16 %v1010
      %v1153 = vunpack.c.l.b16 %v1011
      %v1154 = vunpack.c.l.b16 %v1012
      %v1155 = vunpack.c.l.b16 %v1013
      %v1156 = vunpack.c.l.b16 %v1014
      %v1157 = vunpack.c.l.b16 %v1015
      %v1158 = vunpack.c.l.b16 %v1016
      %v1159 = vunpack.c.l.b16 %v1017
      %v1160 = vunpack.c.l.b16 %v1018
      %v1161 = vunpack.c.l.b16 %v1019
      %v1162 = vunpack.c.l.b16 %v1020
      %v1163 = vunpack.c.l.b16 %v1021
      %v1164 = vunpack.c.l.b16 %v1022
      %v1165 = vunpack.c.l.b16 %v1023
      %v1166 = vunpack.c.l.b16 %v1024
      %v1167 = vunpack.c.l.b16 %v1025
      %v1168 = vunpack.c.l.b16 %v1026
      %v1169 = vunpack.c.l.b16 %v1027
      %v1170 = vunpack.c.l.b16 %v1028
      %v1171 = vunpack.c.l.b16 %v1029
      %v1172 = vunpack.c.l.b16 %v1030
      %v1173 = vunpack.c.l.b16 %v1031
      %v1174 = vunpack.c.l.b16 %v1032
      %v1175 = vunpack.c.l.b16 %v1033
      %v1176 = vunpack.c.l.b16 %v1034
      %v1177 = vunpack.c.l.b16 %v1035
      %v1178 = vunpack.c.l.b16 %v1036
      %v1179 = vunpack.c.l.b16 %v1037
      %v1180 = vunpack.c.l.b16 %v1038
      %v1181 = vunpack.c.l.b16 %v1039
      %v1182 = vunpack.c.l.b16 %v1040
      %v1183 = vunpack.c.l.b16 %v1041
      %v1184 = vunpack.c.l.b16 %v1042
      %v1185 = vunpack.c.l.b16 %v1043
      %v1186 = vunpack.c.l.b16 %v1044
      %v1187 = vunpack.c.l.b16 %v1045
      %v1188 = vunpack.c.l.b16 %v1046
      %v1189 = vunpack.c.l.b16 %v1047
      %v1190 = vunpack.c.l.b16 %v1048
      %v1191 = vunpack.c.l.b16 %v1049
      %v1192 = vunpack.c.l.b16 %v1050
      %v1193 = vunpack.c.l.b16 %v1051
      %v1194 = vunpack.c.l.b16 %v1052
      %v1195 = vunpack.c.l.b16 %v1053
      %v1196 = vunpack.c.l.b16 %v1054
      %v1197 = vunpack.c.l.b16 %v1055
      %v1198 = vunpack.c.l.b16 %v1056
      %v1199 = vunpack.c.l.b16 %v1057
      %v1200 = vunpack.c.l.b16 %v1058
      %v1201 = vunpack.c.l.b16 %v1059
      %v1202 = vunpack.c.l.b16 %v1060
      %v1203 = vunpack.c.l.b16 %v1061
      %v1204 = vunpack.c.l.b16 %v1062
      %v1205 = vunpack.c.l.b16 %v1063
      %v1206 = vunpack.c.l.b16 %v1064
      %v1207 = vunpack.c.l.b16 %v1065
      %v1208 = vunpack.c.l.b16 %v1066
      %v1209 = vunpack.c.l.b16 %v1067
      %v1210 = vunpack.c.l.b16 %v1068
      %v1211 = vunpack.c.l.b16 %v1069
      %v1212 = vunpack.c.l.b16 %v1070
      %v1213 = vunpack.c.l.b16 %v1071
      %v1214 = vunpack.c.l.b16 %v1072
      %v1215 = vunpack.c.l.b16 %v1073
      %v1216 = vpack.c.b16 %v1153, %v1152
      %v1217 = vpack.c.b16 %v1155, %v1154
      %v1218 = vpack.c.b16 %v1157, %v1156
      %v1219 = vpack.c.b16 %v1159, %v1158
      %v1220 = vpack.c.b16 %v1161, %v1160
      %v1221 = vpack.c.b16 %v1163, %v1162
      %v1222 = vpack.c.b16 %v1165, %v1164
      %v1223 = vpack.c.b16 %v1167, %v1166
      %v1224 = vpack.c.b16 %v1169, %v1168
      %v1225 = vpack.c.b16 %v1171, %v1170
      %v1226 = vpack.c.b16 %v1173, %v1172
      %v1227 = vpack.c.b16 %v1175, %v1174
      %v1228 = vpack.c.b16 %v1177, %v1176
      %v1229 = vpack.c.b16 %v1179, %v1178
      %v1230 = vpack.c.b16 %v1181, %v1180
      %v1231 = vpack.c.b16 %v1183, %v1182
      %v1232 = vpack.c.b16 %v1185, %v1184
      %v1233 = vpack.c.b16 %v1187, %v1186
      %v1234 = vpack.c.b16 %v1189, %v1188
      %v1235 = vpack.c.b16 %v1191, %v1190
      %v1236 = vpack.c.b16 %v1193, %v1192
      %v1237 = vpack.c.b16 %v1195, %v1194
      %v1238 = vpack.c.b16 %v1197, %v1196
      %v1239 = vpack.c.b16 %v1199, %v1198
      %v1240 = vpack.c.b16 %v1201, %v1200
      %v1241 = vpack.c.b16 %v1203, %v1202
      %v1242 = vpack.c.b16 %v1205, %v1204
      %v1243 = vpack.c.b16 %v1207, %v1206
      %v1244 = vpack.c.b16 %v1209, %v1208
      %v1245 = vpack.c.b16 %v1211, %v1210
      %v1246 = vpack.c.b16 %v1213, %v1212
      %v1247 = vpack.c.b16 %v1215, %v1214
      %1280 = vmatprep.subr.bf16.mxu0 0
      %1281 = vmatpush1.bf16.msra.mxu0 %v1216
      %1282 = vmatprep.subr.bf16.mxu0 0
      %1283 = vmatpush1.bf16.msra.mxu0 %v1217
      %1284 = vmatprep.subr.bf16.mxu0 0
      %1285 = vmatpush1.bf16.msra.mxu0 %v1218
      %1286 = vmatprep.subr.bf16.mxu0 0
      %1287 = vmatpush1.bf16.msra.mxu0 %v1219
      %1288 = vmatprep.subr.bf16.mxu0 0
      %1289 = vmatpush1.bf16.msra.mxu0 %v1220
      %1290 = vmatprep.subr.bf16.mxu0 0
      %1291 = vmatpush1.bf16.msra.mxu0 %v1221
      %1292 = vmatprep.subr.bf16.mxu0 0
      %1293 = vmatpush1.bf16.msra.mxu0 %v1222
      %1294 = vmatprep.subr.bf16.mxu0 0
      %1295 = vmatpush1.bf16.msra.mxu0 %v1223
      %1296 = vmatprep.subr.bf16.mxu0 0
      %1297 = vmatpush1.bf16.msra.mxu0 %v1224
      %1298 = vmatprep.subr.bf16.mxu0 0
      %1299 = vmatpush1.bf16.msra.mxu0 %v1225
      %1300 = vmatprep.subr.bf16.mxu0 0
      %1301 = vmatpush1.bf16.msra.mxu0 %v1226
      %1302 = vmatprep.subr.bf16.mxu0 0
      %1303 = vmatpush1.bf16.msra.mxu0 %v1227
      %1304 = vmatprep.subr.bf16.mxu0 0
      %1305 = vmatpush1.bf16.msra.mxu0 %v1228
      %1306 = vmatprep.subr.bf16.mxu0 0
      %1307 = vmatpush1.bf16.msra.mxu0 %v1229
      %1308 = vmatprep.subr.bf16.mxu0 0
      %1309 = vmatpush1.bf16.msra.mxu0 %v1230
      %1310 = vmatprep.subr.bf16.mxu0 0
      %1311 = vmatpush1.bf16.msra.mxu0 %v1231
      %1312 = vmatprep.mubr.bf16.mxu0 %v1081
      %1313 = vmatmul.mubr.bf16.gmra.mrb[0].mxu0 %v1080
      %v1314 = vpop.f32.mrb[0].mxu0
      %v1315 = vadd.f32 0.0, %v1314
      %v1316 = vpop.f32.mrb[0].mxu0
      %v1317 = vpop.f32.mrb[0].mxu0
      %v1318 = vpop.f32.mrb[0].mxu0
      %1319 = vdwg.mxu0
      %1320 = vmatprep.subr.bf16.mxu0 0
      %1321 = vmatpush1.bf16.msra.mxu0 %v1232
      %1322 = vmatprep.subr.bf16.mxu0 0
      %1323 = vmatpush1.bf16.msra.mxu0 %v1233
      %1324 = vmatprep.subr.bf16.mxu0 0
      %1325 = vmatpush1.bf16.msra.mxu0 %v1234
      %1326 = vmatprep.subr.bf16.mxu0 0
      %1327 = vmatpush1.bf16.msra.mxu0 %v1235
      %1328 = vmatprep.subr.bf16.mxu0 0
      %1329 = vmatpush1.bf16.msra.mxu0 %v1236
      %1330 = vmatprep.subr.bf16.mxu0 0
      %1331 = vmatpush1.bf16.msra.mxu0 %v1237
      %1332 = vmatprep.subr.bf16.mxu0 0
      %1333 = vmatpush1.bf16.msra.mxu0 %v1238
      %1334 = vmatprep.subr.bf16.mxu0 0
      %1335 = vmatpush1.bf16.msra.mxu0 %v1239
      %1336 = vmatprep.subr.bf16.mxu0 0
      %1337 = vmatpush1.bf16.msra.mxu0 %v1240
      %1338 = vmatprep.subr.bf16.mxu0 0
      %1339 = vmatpush1.bf16.msra.mxu0 %v1241
      %1340 = vmatprep.subr.bf16.mxu0 0
      %1341 = vmatpush1.bf16.msra.mxu0 %v1242
      %1342 = vmatprep.subr.bf16.mxu0 0
      %1343 = vmatpush1.bf16.msra.mxu0 %v1243
      %1344 = vmatprep.subr.bf16.mxu0 0
      %1345 = vmatpush1.bf16.msra.mxu0 %v1244
      %1346 = vmatprep.subr.bf16.mxu0 0
      %1347 = vmatpush1.bf16.msra.mxu0 %v1245
      %1348 = vmatprep.subr.bf16.mxu0 0
      %1349 = vmatpush1.bf16.msra.mxu0 %v1246
      %1350 = vmatprep.subr.bf16.mxu0 0
      %1351 = vmatpush1.bf16.msra.mxu0 %v1247
      %1352 = vmatprep.mubr.bf16.mxu0 %v1083
      %1353 = vmatmul.mubr.bf16.gmra.mrb[0].mxu0 %v1082
      %v1354 = vpop.f32.mrb[0].mxu0
      %v1355 = vadd.f32 %v1315, %v1354
      %v1356 = vpop.f32.mrb[0].mxu0
      %v1357 = vpop.f32.mrb[0].mxu0
      %v1358 = vpop.f32.mrb[0].mxu0
      %1359 = vdwg.mxu0
      %v1360 = vadd.f32 %v1002, %v1355
      %v1361 = vld [vmem:[%s263] sm:$0x77]
      %v1362 = vld [vmem:[%s263 + $0x8] sm:$0x77]
      %s1363 = scalar_lea.vmem %s2, 768
      %v1364 = vld [vmem:[%s1363] sm:$0xf]
      %v1365 = vld [vmem:[%s1363 + $0x4] sm:$0xf]
      %v1366 = vld [vmem:[%s1363 + $0x8] sm:$0xf]
      %v1367 = vld [vmem:[%s1363 + $0xc] sm:$0xf]
      %v1368 = vld [vmem:[%s1363 + $0x10] sm:$0xf]
      %v1369 = vld [vmem:[%s1363 + $0x14] sm:$0xf]
      %v1370 = vld [vmem:[%s1363 + $0x18] sm:$0xf]
      %v1371 = vld [vmem:[%s1363 + $0x1c] sm:$0xf]
      %v1372 = vld [vmem:[%s1363 + $0x20] sm:$0xf]
      %v1373 = vld [vmem:[%s1363 + $0x24] sm:$0xf]
      %v1374 = vld [vmem:[%s1363 + $0x28] sm:$0xf]
      %v1375 = vld [vmem:[%s1363 + $0x2c] sm:$0xf]
      %v1376 = vld [vmem:[%s1363 + $0x30] sm:$0xf]
      %v1377 = vld [vmem:[%s1363 + $0x34] sm:$0xf]
      %v1378 = vld [vmem:[%s1363 + $0x38] sm:$0xf]
      %v1379 = vld [vmem:[%s1363 + $0x3c] sm:$0xf]
      %v1380 = vld [vmem:[%s1363 + $0x40] sm:$0xf]
      %v1381 = vld [vmem:[%s1363 + $0x44] sm:$0xf]
      %v1382 = vld [vmem:[%s1363 + $0x48] sm:$0xf]
      %v1383 = vld [vmem:[%s1363 + $0x4c] sm:$0xf]
      %v1384 = vld [vmem:[%s1363 + $0x50] sm:$0xf]
      %v1385 = vld [vmem:[%s1363 + $0x54] sm:$0xf]
      %v1386 = vld [vmem:[%s1363 + $0x58] sm:$0xf]
      %v1387 = vld [vmem:[%s1363 + $0x5c] sm:$0xf]
      %v1388 = vld [vmem:[%s1363 + $0x60] sm:$0xf]
      %v1389 = vld [vmem:[%s1363 + $0x64] sm:$0xf]
      %v1390 = vld [vmem:[%s1363 + $0x68] sm:$0xf]
      %v1391 = vld [vmem:[%s1363 + $0x6c] sm:$0xf]
      %v1392 = vld [vmem:[%s1363 + $0x70] sm:$0xf]
      %v1393 = vld [vmem:[%s1363 + $0x74] sm:$0xf]
      %v1394 = vld [vmem:[%s1363 + $0x78] sm:$0xf]
      %v1395 = vld [vmem:[%s1363 + $0x7c] sm:$0xf]
      %v1396 = vld [vmem:[%s1363 + $0x80] sm:$0xf]
      %v1397 = vld [vmem:[%s1363 + $0x84] sm:$0xf]
      %v1398 = vld [vmem:[%s1363 + $0x88] sm:$0xf]
      %v1399 = vld [vmem:[%s1363 + $0x8c] sm:$0xf]
      %v1400 = vld [vmem:[%s1363 + $0x90] sm:$0xf]
      %v1401 = vld [vmem:[%s1363 + $0x94] sm:$0xf]
      %v1402 = vld [vmem:[%s1363 + $0x98] sm:$0xf]
      %v1403 = vld [vmem:[%s1363 + $0x9c] sm:$0xf]
      %v1404 = vld [vmem:[%s1363 + $0xa0] sm:$0xf]
      %v1405 = vld [vmem:[%s1363 + $0xa4] sm:$0xf]
      %v1406 = vld [vmem:[%s1363 + $0xa8] sm:$0xf]
      %v1407 = vld [vmem:[%s1363 + $0xac] sm:$0xf]
      %v1408 = vld [vmem:[%s1363 + $0xb0] sm:$0xf]
      %v1409 = vld [vmem:[%s1363 + $0xb4] sm:$0xf]
      %v1410 = vld [vmem:[%s1363 + $0xb8] sm:$0xf]
      %v1411 = vld [vmem:[%s1363 + $0xbc] sm:$0xf]
      %v1412 = vld [vmem:[%s1363 + $0xc0] sm:$0xf]
      %v1413 = vld [vmem:[%s1363 + $0xc4] sm:$0xf]
      %v1414 = vld [vmem:[%s1363 + $0xc8] sm:$0xf]
      %v1415 = vld [vmem:[%s1363 + $0xcc] sm:$0xf]
      %v1416 = vld [vmem:[%s1363 + $0xd0] sm:$0xf]
      %v1417 = vld [vmem:[%s1363 + $0xd4] sm:$0xf]
      %v1418 = vld [vmem:[%s1363 + $0xd8] sm:$0xf]
      %v1419 = vld [vmem:[%s1363 + $0xdc] sm:$0xf]
      %v1420 = vld [vmem:[%s1363 + $0xe0] sm:$0xf]
      %v1421 = vld [vmem:[%s1363 + $0xe4] sm:$0xf]
      %v1422 = vld [vmem:[%s1363 + $0xe8] sm:$0xf]
      %v1423 = vld [vmem:[%s1363 + $0xec] sm:$0xf]
      %v1424 = vld [vmem:[%s1363 + $0xf0] sm:$0xf]
      %v1425 = vld [vmem:[%s1363 + $0xf4] sm:$0xf]
      %v1426 = vld [vmem:[%s1363 + $0xf8] sm:$0xf]
      %v1427 = vld [vmem:[%s1363 + $0xfc] sm:$0xf]
      %v1430 = vunpack.c.l.b16 %v1361
      %v1431 = vunpack.c.h.b16 %v1361
      %v1432 = vunpack.c.l.b16 %v1362
      %v1433 = vunpack.c.h.b16 %v1362
      %v1434 = vpack.c.b16 %v1430, %v1430
      %v1435 = vpack.c.b16 %v1431, %v1431
      %v1436 = vpack.c.b16 %v1432, %v1432
      %v1437 = vpack.c.b16 %v1433, %v1433
      %v1439 = vshrl.u32 %v1434, 16
      %v1441 = vshll.u32 %v1434, 16
      %v1443 = vrot.slane %v1441, 1
      %v1444 = vor.u32 %v1439, %v1443
      %v1446 = vshrl.u32 %v1435, 16
      %v1448 = vshll.u32 %v1435, 16
      %v1450 = vrot.slane %v1448, 1
      %v1451 = vor.u32 %v1446, %v1450
      %v1453 = vshrl.u32 %v1436, 16
      %v1455 = vshll.u32 %v1436, 16
      %v1457 = vrot.slane %v1455, 1
      %v1458 = vor.u32 %v1453, %v1457
      %v1460 = vshrl.u32 %v1437, 16
      %v1462 = vshll.u32 %v1437, 16
      %v1464 = vrot.slane %v1462, 1
      %v1465 = vor.u32 %v1460, %v1464
      %v1534 = vunpack.c.l.b16 %v1364
      %v1535 = vunpack.c.l.b16 %v1365
      %v1536 = vunpack.c.l.b16 %v1366
      %v1537 = vunpack.c.l.b16 %v1367
      %v1538 = vunpack.c.l.b16 %v1368
      %v1539 = vunpack.c.l.b16 %v1369
      %v1540 = vunpack.c.l.b16 %v1370
      %v1541 = vunpack.c.l.b16 %v1371
      %v1542 = vunpack.c.l.b16 %v1372
      %v1543 = vunpack.c.l.b16 %v1373
      %v1544 = vunpack.c.l.b16 %v1374
      %v1545 = vunpack.c.l.b16 %v1375
      %v1546 = vunpack.c.l.b16 %v1376
      %v1547 = vunpack.c.l.b16 %v1377
      %v1548 = vunpack.c.l.b16 %v1378
      %v1549 = vunpack.c.l.b16 %v1379
      %v1550 = vunpack.c.l.b16 %v1380
      %v1551 = vunpack.c.l.b16 %v1381
      %v1552 = vunpack.c.l.b16 %v1382
      %v1553 = vunpack.c.l.b16 %v1383
      %v1554 = vunpack.c.l.b16 %v1384
      %v1555 = vunpack.c.l.b16 %v1385
      %v1556 = vunpack.c.l.b16 %v1386
      %v1557 = vunpack.c.l.b16 %v1387
      %v1558 = vunpack.c.l.b16 %v1388
      %v1559 = vunpack.c.l.b16 %v1389
      %v1560 = vunpack.c.l.b16 %v1390
      %v1561 = vunpack.c.l.b16 %v1391
      %v1562 = vunpack.c.l.b16 %v1392
      %v1563 = vunpack.c.l.b16 %v1393
      %v1564 = vunpack.c.l.b16 %v1394
      %v1565 = vunpack.c.l.b16 %v1395
      %v1566 = vunpack.c.l.b16 %v1396
      %v1567 = vunpack.c.l.b16 %v1397
      %v1568 = vunpack.c.l.b16 %v1398
      %v1569 = vunpack.c.l.b16 %v1399
      %v1570 = vunpack.c.l.b16 %v1400
      %v1571 = vunpack.c.l.b16 %v1401
      %v1572 = vunpack.c.l.b16 %v1402
      %v1573 = vunpack.c.l.b16 %v1403
      %v1574 = vunpack.c.l.b16 %v1404
      %v1575 = vunpack.c.l.b16 %v1405
      %v1576 = vunpack.c.l.b16 %v1406
      %v1577 = vunpack.c.l.b16 %v1407
      %v1578 = vunpack.c.l.b16 %v1408
      %v1579 = vunpack.c.l.b16 %v1409
      %v1580 = vunpack.c.l.b16 %v1410
      %v1581 = vunpack.c.l.b16 %v1411
      %v1582 = vunpack.c.l.b16 %v1412
      %v1583 = vunpack.c.l.b16 %v1413
      %v1584 = vunpack.c.l.b16 %v1414
      %v1585 = vunpack.c.l.b16 %v1415
      %v1586 = vunpack.c.l.b16 %v1416
      %v1587 = vunpack.c.l.b16 %v1417
      %v1588 = vunpack.c.l.b16 %v1418
      %v1589 = vunpack.c.l.b16 %v1419
      %v1590 = vunpack.c.l.b16 %v1420
      %v1591 = vunpack.c.l.b16 %v1421
      %v1592 = vunpack.c.l.b16 %v1422
      %v1593 = vunpack.c.l.b16 %v1423
      %v1594 = vunpack.c.l.b16 %v1424
      %v1595 = vunpack.c.l.b16 %v1425
      %v1596 = vunpack.c.l.b16 %v1426
      %v1597 = vunpack.c.l.b16 %v1427
      %v1598 = vpack.c.b16 %v1535, %v1534
      %v1599 = vpack.c.b16 %v1537, %v1536
      %v1600 = vpack.c.b16 %v1539, %v1538
      %v1601 = vpack.c.b16 %v1541, %v1540
      %v1602 = vpack.c.b16 %v1543, %v1542
      %v1603 = vpack.c.b16 %v1545, %v1544
      %v1604 = vpack.c.b16 %v1547, %v1546
      %v1605 = vpack.c.b16 %v1549, %v1548
      %v1606 = vpack.c.b16 %v1551, %v1550
      %v1607 = vpack.c.b16 %v1553, %v1552
      %v1608 = vpack.c.b16 %v1555, %v1554
      %v1609 = vpack.c.b16 %v1557, %v1556
      %v1610 = vpack.c.b16 %v1559, %v1558
      %v1611 = vpack.c.b16 %v1561, %v1560
      %v1612 = vpack.c.b16 %v1563, %v1562
      %v1613 = vpack.c.b16 %v1565, %v1564
      %v1614 = vpack.c.b16 %v1567, %v1566
      %v1615 = vpack.c.b16 %v1569, %v1568
      %v1616 = vpack.c.b16 %v1571, %v1570
      %v1617 = vpack.c.b16 %v1573, %v1572
      %v1618 = vpack.c.b16 %v1575, %v1574
      %v1619 = vpack.c.b16 %v1577, %v1576
      %v1620 = vpack.c.b16 %v1579, %v1578
      %v1621 = vpack.c.b16 %v1581, %v1580
      %v1622 = vpack.c.b16 %v1583, %v1582
      %v1623 = vpack.c.b16 %v1585, %v1584
      %v1624 = vpack.c.b16 %v1587, %v1586
      %v1625 = vpack.c.b16 %v1589, %v1588
      %v1626 = vpack.c.b16 %v1591, %v1590
      %v1627 = vpack.c.b16 %v1593, %v1592
      %v1628 = vpack.c.b16 %v1595, %v1594
      %v1629 = vpack.c.b16 %v1597, %v1596
      %1662 = vmatprep.subr.bf16.mxu0 0
      %1663 = vmatpush1.bf16.msra.mxu0 %v1598
      %1664 = vmatprep.subr.bf16.mxu0 0
      %1665 = vmatpush1.bf16.msra.mxu0 %v1599
      %1666 = vmatprep.subr.bf16.mxu0 0
      %1667 = vmatpush1.bf16.msra.mxu0 %v1600
      %1668 = vmatprep.subr.bf16.mxu0 0
      %1669 = vmatpush1.bf16.msra.mxu0 %v1601
      %1670 = vmatprep.subr.bf16.mxu0 0
      %1671 = vmatpush1.bf16.msra.mxu0 %v1602
      %1672 = vmatprep.subr.bf16.mxu0 0
      %1673 = vmatpush1.bf16.msra.mxu0 %v1603
      %1674 = vmatprep.subr.bf16.mxu0 0
      %1675 = vmatpush1.bf16.msra.mxu0 %v1604
      %1676 = vmatprep.subr.bf16.mxu0 0
      %1677 = vmatpush1.bf16.msra.mxu0 %v1605
      %1678 = vmatprep.subr.bf16.mxu0 0
      %1679 = vmatpush1.bf16.msra.mxu0 %v1606
      %1680 = vmatprep.subr.bf16.mxu0 0
      %1681 = vmatpush1.bf16.msra.mxu0 %v1607
      %1682 = vmatprep.subr.bf16.mxu0 0
      %1683 = vmatpush1.bf16.msra.mxu0 %v1608
      %1684 = vmatprep.subr.bf16.mxu0 0
      %1685 = vmatpush1.bf16.msra.mxu0 %v1609
      %1686 = vmatprep.subr.bf16.mxu0 0
      %1687 = vmatpush1.bf16.msra.mxu0 %v1610
      %1688 = vmatprep.subr.bf16.mxu0 0
      %1689 = vmatpush1.bf16.msra.mxu0 %v1611
      %1690 = vmatprep.subr.bf16.mxu0 0
      %1691 = vmatpush1.bf16.msra.mxu0 %v1612
      %1692 = vmatprep.subr.bf16.mxu0 0
      %1693 = vmatpush1.bf16.msra.mxu0 %v1613
      %1694 = vmatprep.mubr.bf16.mxu0 %v1451
      %1695 = vmatmul.mubr.bf16.gmra.mrb[0].mxu0 %v1444
      %v1696 = vpop.f32.mrb[0].mxu0
      %v1697 = vadd.f32 0.0, %v1696
      %v1698 = vpop.f32.mrb[0].mxu0
      %v1699 = vpop.f32.mrb[0].mxu0
      %v1700 = vpop.f32.mrb[0].mxu0
      %1701 = vdwg.mxu0
      %1702 = vmatprep.subr.bf16.mxu0 0
      %1703 = vmatpush1.bf16.msra.mxu0 %v1614
      %1704 = vmatprep.subr.bf16.mxu0 0
      %1705 = vmatpush1.bf16.msra.mxu0 %v1615
      %1706 = vmatprep.subr.bf16.mxu0 0
      %1707 = vmatpush1.bf16.msra.mxu0 %v1616
      %1708 = vmatprep.subr.bf16.mxu0 0
      %1709 = vmatpush1.bf16.msra.mxu0 %v1617
      %1710 = vmatprep.subr.bf16.mxu0 0
      %1711 = vmatpush1.bf16.msra.mxu0 %v1618
      %1712 = vmatprep.subr.bf16.mxu0 0
      %1713 = vmatpush1.bf16.msra.mxu0 %v1619
      %1714 = vmatprep.subr.bf16.mxu0 0
      %1715 = vmatpush1.bf16.msra.mxu0 %v1620
      %1716 = vmatprep.subr.bf16.mxu0 0
      %1717 = vmatpush1.bf16.msra.mxu0 %v1621
      %1718 = vmatprep.subr.bf16.mxu0 0
      %1719 = vmatpush1.bf16.msra.mxu0 %v1622
      %1720 = vmatprep.subr.bf16.mxu0 0
      %1721 = vmatpush1.bf16.msra.mxu0 %v1623
      %1722 = vmatprep.subr.bf16.mxu0 0
      %1723 = vmatpush1.bf16.msra.mxu0 %v1624
      %1724 = vmatprep.subr.bf16.mxu0 0
      %1725 = vmatpush1.bf16.msra.mxu0 %v1625
      %1726 = vmatprep.subr.bf16.mxu0 0
      %1727 = vmatpush1.bf16.msra.mxu0 %v1626
      %1728 = vmatprep.subr.bf16.mxu0 0
      %1729 = vmatpush1.bf16.msra.mxu0 %v1627
      %1730 = vmatprep.subr.bf16.mxu0 0
      %1731 = vmatpush1.bf16.msra.mxu0 %v1628
      %1732 = vmatprep.subr.bf16.mxu0 0
      %1733 = vmatpush1.bf16.msra.mxu0 %v1629
      %1734 = vmatprep.mubr.bf16.mxu0 %v1465
      %1735 = vmatmul.mubr.bf16.gmra.mrb[0].mxu0 %v1458
      %v1736 = vpop.f32.mrb[0].mxu0
      %v1737 = vadd.f32 %v1697, %v1736
      %v1738 = vpop.f32.mrb[0].mxu0
      %v1739 = vpop.f32.mrb[0].mxu0
      %v1740 = vpop.f32.mrb[0].mxu0
      %1741 = vdwg.mxu0
      %v1742 = vadd.f32 %v1360, %v1737
      %v1743 = vld [vmem:[%s3] sm:$0x1]
      %v1745 = vlaneseq
      %v1746 = vshrl.u32 %v1745, 7
      %v1747 = vsub.s32 0, %v1746
      %v1748 = vrot.slane %v1743, %v1747
      %v1750 = vadd.f32 %v1742, %v1748
      %v1751 = vmax.f32 %v1750, 0.0
      %v1752 = vpack.c.bf16 %v1751, %v1751
      %1753 = vst [vmem:[%s272] sm:$0x3] %v1752
      %p1754 = scmp.lt.s32.totalorder %s19, 1
      %s1755 = scalar_select %p1754, %s19, 1
      %p1756 = scmp.lt.s32.totalorder %s20, 3
      %s1757 = scalar_select %p1756, %s20, 3
      %s1758 = smul.addr %s1755, 4
      %s1759 = sadd.s32 %s1757, %s1758
      %s1760 = smul.addr %s1759, 2
      %s1761 = scalar_lea.vmem %s4, %s1760
      // Predicated region
      $region37: #{_lambda_.5} parent=35 // pred_check
        %p1762 = pneg %p147
      $region38: #{_lambda_.5} parent=35 // pred_check_branch
        %1764 = sbr.rel (%p1762) target = $region40
      $region39: #{_lambda_.5} parent=35 // pred_region
        _
      $region40: #{_lambda_.5} parent=35 // pred_fallthru
        _
    $region36: #{_lambda_.5} parent=5 // pred_fallthru
      _
    %p1765 = scmp.le.s32.totalorder 2, %s10
    // Predicated region
    $region41: #{_lambda_.5} parent=5 // pred_check
      %p1766 = pneg %p1765
    $region42: #{_lambda_.5} parent=5 // pred_check_branch
      %1768 = sbr.rel (%p1766) target = $region44
    $region43: #{_lambda_.5} parent=5 // pred_region
      %s1769 = ssub.s32 %s10, 2
      // Predicated region
      $region45: #{_lambda_.5} parent=43 // pred_check
        %p1770 = pneg %p153
      $region46: #{_lambda_.5} parent=43 // pred_check_branch
        %1772 = sbr.rel (%p1770) target = $region48
      $region47: #{_lambda_.5} parent=43 // pred_region
        %p1773 = scmp.lt.s32.totalorder %s21, 1
        %s1774 = scalar_select %p1773, %s21, 1
        %p1775 = scmp.lt.s32.totalorder %s22, 3
        %s1776 = scalar_select %p1775, %s22, 3
        %s1777 = smul.addr %s1774, 4
        %s1778 = sadd.s32 %s1776, %s1777
        %s1779 = smul.addr %s1778, 2
        %s1780 = scalar_lea.vmem %s4, %s1779
      $region48: #{_lambda_.5} parent=43 // pred_fallthru
        _
    $region44: #{_lambda_.5} parent=5 // pred_fallthru
      _
  $region6: #{_lambda_.5} parent=0 // loop_footer
    %s14 = sadd.s32 1, %s10
  $region7: #{_lambda_.5} parent=0 // loop_footer_branch
    %9 = sbr.rel target = $region3
  $region8: #{_lambda_.5} parent=0 // loop_exit
    _

// kernel: _lambda_.6
$region0: #{_lambda_.6}
  #allocation0 [shape = 'u32[]', space=smem, size = 0x4, offset = 0x4, fixed_abs, tag = 'smem constant byte address 0x4 - core index']
  #allocation1 [shape = 'u32[144,128]{1,0:T(1,128)}', space=vmem, size = 0x12000, scoped, tag = 'internal scratch']
  %s0 = inlined_call_operand.vmem [shape: bf16[2,3,3,512], index: 0, kind: input, shape index: {}, may-alias: {0,1}]
  %s1 = inlined_call_operand.vmem [shape: bf16[2,3,3,512], index: 1, kind: input, shape index: {}, may-alias: {0,1}]
  %s2 = inlined_call_operand.vmem [shape: bf16[2,2,512,128], index: 2, kind: input, shape index: {}]
  %s3 = inlined_call_operand.vmem [shape: f32[1,128], index: 3, kind: input, shape index: {}]
  %s4 = inlined_call_operand.vmem [shape: bf16[2,2,2,128], index: 4, kind: output, shape index: {}]
  %s5 = sld [smem:[#allocation0]]
  $region49: #{_lambda_.6} parent=0
    _
  %s7 = ssub.s32 1, %s5
  %s8 = scalar_select 0, %s7, %s5
  loop: start=0, step=1, limit=6
  $region2: #{_lambda_.6} parent=0 // loop_pre_header
    _
  $region3: #{_lambda_.6} parent=0 // loop_header
    %s10 = sphi 0, %s14
    %p11 = scmp.ge.s32.totalorder %s10, 6
    %s17 = sphi 0, %s29
    %s18 = sphi 0, %s25
    %s19 = sphi 0, %s17
    %s20 = sphi 0, %s18
    %s21 = sphi 0, %s19
    %s22 = sphi 0, %s20
    %s34 = sphi 0, %s36
    %s37 = sphi 0, %s34
    %s38 = sphi 0, %s37
    %s54 = sphi 0, %s38
    %s64 = sphi 0, %s66
    %s67 = sphi 0, %s64
    %s68 = sphi 0, %s67
    %s84 = sphi 0, %s68
    %s88 = sphi 0, %s88
    %s90 = sphi 0, %s88
    %s91 = sphi 0, %s90
    %s105 = sphi 0, %s91
    %s109 = sphi 0, %s109
    %s111 = sphi 0, %s109
    %s112 = sphi 0, %s111
    %s126 = sphi 0, %s112
    %s134 = sphi 0, %s136
    %s137 = sphi 0, %s134
    %s138 = sphi 0, %s137
    %s154 = sphi 0, %s138
  $region4: #{_lambda_.6} parent=0 // loop_header_branch
    %13 = sbr.rel (%p11) target = $region8
  $region5: #{_lambda_.6} parent=0 // loop_body
    %s15 = ssub.s32 %s10, 1
    %s16 = ssub.s32 %s10, 2
    %s23 = sadd.s32 1, %s18
    %p24 = scmp.ge.s32.totalorder %s23, 2
    %s25 = scalar_select %p24, 0, %s23
    %s26 = sadd.s32 1, %s17
    %s27 = scalar_select %p24, %s26, %s17
    %p28 = scmp.ge.s32.totalorder %s27, 2
    %s29 = scalar_select %p28, 0, %s27
    %s30 = ssub.s32 %s17, %s29
    %s31 = ssub.s32 %s18, %s25
    %s32 = sor.u32 %s30, %s31
    %p33 = scmp.eq.s32.totalorder %s32, 0
    %s35 = sadd.s32 %s34, 1
    %s36 = scalar_select %p33, %s34, %s35
    %p39 = pneg %p33
    %p40 = scmp.eq.s32.totalorder %s10, 3
    %p41 = por %p39, %p40
    %p42 = scmp.ne.s32.totalorder %s34, %s37
    %p43 = scmp.eq.s32.totalorder %s10, 0
    %p44 = por %p42, %p43
    %p45 = scmp.ne.s32.totalorder %s34, %s37
    %p46 = scmp.eq.s32.totalorder %s15, 3
    %p47 = por %p45, %p46
    %p48 = scmp.ne.s32.totalorder %s37, %s38
    %p49 = scmp.eq.s32.totalorder %s15, 0
    %p50 = por %p48, %p49
    %p51 = scmp.ne.s32.totalorder %s37, %s38
    %p52 = scmp.eq.s32.totalorder %s16, 3
    %p53 = por %p51, %p52
    %p55 = scmp.ne.s32.totalorder %s38, %s54
    %p56 = scmp.eq.s32.totalorder %s16, 0
    %p57 = por %p55, %p56
    %s58 = sadd.s32 %s18, 1
    %s59 = sadd.s32 %s25, 1
    %s60 = ssub.s32 %s17, %s29
    %s61 = ssub.s32 %s58, %s59
    %s62 = sor.u32 %s60, %s61
    %p63 = scmp.eq.s32.totalorder %s62, 0
    %s65 = sadd.s32 %s64, 1
    %s66 = scalar_select %p63, %s64, %s65
    %p69 = pneg %p63
    %p70 = scmp.eq.s32.totalorder %s10, 3
    %p71 = por %p69, %p70
    %p72 = scmp.ne.s32.totalorder %s64, %s67
    %p73 = scmp.eq.s32.totalorder %s10, 0
    %p74 = por %p72, %p73
    %p75 = scmp.ne.s32.totalorder %s64, %s67
    %p76 = scmp.eq.s32.totalorder %s15, 3
    %p77 = por %p75, %p76
    %p78 = scmp.ne.s32.totalorder %s67, %s68
    %p79 = scmp.eq.s32.totalorder %s15, 0
    %p80 = por %p78, %p79
    %p81 = scmp.ne.s32.totalorder %s67, %s68
    %p82 = scmp.eq.s32.totalorder %s16, 3
    %p83 = por %p81, %p82
    %p85 = scmp.ne.s32.totalorder %s68, %s84
    %p86 = scmp.eq.s32.totalorder %s16, 0
    %p87 = por %p85, %p86
    %s89 = sadd.s32 %s88, 1
    %p92 = scmp.eq.s32.totalorder %s10, 3
    %p93 = scmp.ne.s32.totalorder %s88, %s90
    %p94 = scmp.eq.s32.totalorder %s10, 0
    %p95 = por %p93, %p94
    %p96 = scmp.ne.s32.totalorder %s88, %s90
    %p97 = scmp.eq.s32.totalorder %s15, 3
    %p98 = por %p96, %p97
    %p99 = scmp.ne.s32.totalorder %s90, %s91
    %p100 = scmp.eq.s32.totalorder %s15, 0
    %p101 = por %p99, %p100
    %p102 = scmp.ne.s32.totalorder %s90, %s91
    %p103 = scmp.eq.s32.totalorder %s16, 3
    %p104 = por %p102, %p103
    %p106 = scmp.ne.s32.totalorder %s91, %s105
    %p107 = scmp.eq.s32.totalorder %s16, 0
    %p108 = por %p106, %p107
    %s110 = sadd.s32 %s109, 1
    %p113 = scmp.eq.s32.totalorder %s10, 3
    %p114 = scmp.ne.s32.totalorder %s109, %s111
    %p115 = scmp.eq.s32.totalorder %s10, 0
    %p116 = por %p114, %p115
    %p117 = scmp.ne.s32.totalorder %s109, %s111
    %p118 = scmp.eq.s32.totalorder %s15, 3
    %p119 = por %p117, %p118
    %p120 = scmp.ne.s32.totalorder %s111, %s112
    %p121 = scmp.eq.s32.totalorder %s15, 0
    %p122 = por %p120, %p121
    %p123 = scmp.ne.s32.totalorder %s111, %s112
    %p124 = scmp.eq.s32.totalorder %s16, 3
    %p125 = por %p123, %p124
    %p127 = scmp.ne.s32.totalorder %s112, %s126
    %p128 = scmp.eq.s32.totalorder %s16, 0
    %p129 = por %p127, %p128
    %s130 = ssub.s32 %s17, %s29
    %s131 = ssub.s32 %s18, %s25
    %s132 = sor.u32 %s130, %s131
    %p133 = scmp.eq.s32.totalorder %s132, 0
    %s135 = sadd.s32 %s134, 1
    %s136 = scalar_select %p133, %s134, %s135
    %p139 = pneg %p133
    %p140 = scmp.eq.s32.totalorder %s10, 3
    %p141 = por %p139, %p140
    %p142 = scmp.ne.s32.totalorder %s134, %s137
    %p143 = scmp.eq.s32.totalorder %s10, 0
    %p144 = por %p142, %p143
    %p145 = scmp.ne.s32.totalorder %s134, %s137
    %p146 = scmp.eq.s32.totalorder %s15, 3
    %p147 = por %p145, %p146
    %p148 = scmp.ne.s32.totalorder %s137, %s138
    %p149 = scmp.eq.s32.totalorder %s15, 0
    %p150 = por %p148, %p149
    %p151 = scmp.ne.s32.totalorder %s137, %s138
    %p152 = scmp.eq.s32.totalorder %s16, 3
    %p153 = por %p151, %p152
    %p155 = scmp.ne.s32.totalorder %s138, %s154
    %p156 = scmp.eq.s32.totalorder %s16, 0
    %p157 = por %p155, %p156
    %p158 = scmp.le.s32.totalorder 1, %s10
    %p159 = scmp.lt.s32.totalorder %s10, 5
    %p160 = pnand %p158, %p159
    %p161 = pneg %p160
    // Predicated region
    $region9: #{_lambda_.6} parent=5 // pred_check
      _
    $region10: #{_lambda_.6} parent=5 // pred_check_branch
      %163 = sbr.rel (%p160) target = $region12
    $region11: #{_lambda_.6} parent=5 // pred_region
      %s164 = ssub.s32 %s10, 1
      // Predicated region
      $region13: #{_lambda_.6} parent=11 // pred_check
        %p165 = pneg %p101
      $region14: #{_lambda_.6} parent=11 // pred_check_branch
        %167 = sbr.rel (%p165) target = $region16
      $region15: #{_lambda_.6} parent=11 // pred_region
        _
      $region16: #{_lambda_.6} parent=11 // pred_fallthru
        _
      // Predicated region
      $region17: #{_lambda_.6} parent=11 // pred_check
        %p168 = pneg %p122
      $region18: #{_lambda_.6} parent=11 // pred_check_branch
        %170 = sbr.rel (%p168) target = $region20
      $region19: #{_lambda_.6} parent=11 // pred_region
        _
      $region20: #{_lambda_.6} parent=11 // pred_fallthru
        _
    $region12: #{_lambda_.6} parent=5 // pred_fallthru
      _
    %p171 = scmp.lt.s32.totalorder %s10, 4
    // Predicated region
    $region21: #{_lambda_.6} parent=5 // pred_check
      %p172 = pneg %p171
    $region22: #{_lambda_.6} parent=5 // pred_check_branch
      %174 = sbr.rel (%p172) target = $region24
    $region23: #{_lambda_.6} parent=5 // pred_region
      // Predicated region
      $region25: #{_lambda_.6} parent=23 // pred_check
        %p175 = pneg %p44
      $region26: #{_lambda_.6} parent=23 // pred_check_branch
        %177 = sbr.rel (%p175) target = $region28
      $region27: #{_lambda_.6} parent=23 // pred_region
        %p178 = scmp.lt.s32.totalorder %s17, 1
        %s179 = scalar_select %p178, %s17, 1
        %p180 = scmp.lt.s32.totalorder %s18, 2
        %s181 = scalar_select %p180, %s18, 2
        %s182 = smul.addr %s181, 4
        %s183 = smul.addr %s179, 12
        %s184 = sadd.s32 %s182, %s183
        %s185 = smul.addr %s184, 2
        %s186 = scalar_lea.vmem %s0, %s185
      $region28: #{_lambda_.6} parent=23 // pred_fallthru
        _
      // Predicated region
      $region29: #{_lambda_.6} parent=23 // pred_check
        %p187 = pneg %p74
      $region30: #{_lambda_.6} parent=23 // pred_check_branch
        %189 = sbr.rel (%p187) target = $region32
      $region31: #{_lambda_.6} parent=23 // pred_region
        %s190 = sadd.s32 %s18, 1
        %p191 = scmp.lt.s32.totalorder %s17, 1
        %s192 = scalar_select %p191, %s17, 1
        %p193 = scmp.lt.s32.totalorder %s190, 2
        %s194 = scalar_select %p193, %s190, 2
        %s195 = smul.addr %s194, 4
        %s196 = smul.addr %s192, 12
        %s197 = sadd.s32 %s195, %s196
        %s198 = smul.addr %s197, 2
        %s199 = scalar_lea.vmem %s1, %s198
        %s200 = sadd.s32 %s18, 1
      $region32: #{_lambda_.6} parent=23 // pred_fallthru
        _
    $region24: #{_lambda_.6} parent=5 // pred_fallthru
      _
    %p201 = scmp.le.s32.totalorder 1, %s10
    %p202 = scmp.lt.s32.totalorder %s10, 5
    %p203 = pnand %p201, %p202
    %p204 = pneg %p203
    // Predicated region
    $region33: #{_lambda_.6} parent=5 // pred_check
      _
    $region34: #{_lambda_.6} parent=5 // pred_check_branch
      %206 = sbr.rel (%p203) target = $region36
    $region35: #{_lambda_.6} parent=5 // pred_region
      %s207 = ssub.s32 %s10, 1
      %p208 = scmp.lt.s32.totalorder %s19, 1
      %s209 = scalar_select %p208, %s19, 1
      %p210 = scmp.lt.s32.totalorder %s20, 2
      %s211 = scalar_select %p210, %s20, 2
      %s212 = smul.addr %s211, 4
      %s213 = smul.addr %s209, 12
      %s214 = sadd.s32 %s212, %s213
      %s215 = smul.addr %s214, 2
      %s216 = scalar_lea.vmem %s0, %s215
      %p217 = pneg %p50
      %p218 = pneg %p47
      %s219 = sadd.s32 %s20, 1
      %p220 = scmp.lt.s32.totalorder %s19, 1
      %s221 = scalar_select %p220, %s19, 1
      %p222 = scmp.lt.s32.totalorder %s219, 2
      %s223 = scalar_select %p222, %s219, 2
      %s224 = smul.addr %s223, 4
      %s225 = smul.addr %s221, 12
      %s226 = sadd.s32 %s224, %s225
      %s227 = smul.addr %s226, 2
      %s228 = scalar_lea.vmem %s1, %s227
      %p229 = pneg %p80
      %p230 = pneg %p77
      %p231 = pneg %p101
      %p232 = pneg %p98
      %p233 = pneg %p122
      %p234 = pneg %p119
      %p235 = pneg %p150
      %p236 = pneg %p147
      %p237 = scmp.lt.s32.totalorder %s19, 1
      %s238 = scalar_select %p237, %s19, 1
      %p239 = scmp.lt.s32.totalorder %s20, 1
      %s240 = scalar_select %p239, %s20, 1
      %s241 = smul.addr %s238, 2
      %s242 = sadd.s32 %s240, %s241
      %s243 = scalar_lea.vmem %s4, %s242
      %p244 = scmp.lt.s32.totalorder %s19, 1
      %s245 = scalar_select %p244, %s19, 1
      %p246 = scmp.lt.s32.totalorder %s20, 2
      %s247 = scalar_select %p246, %s20, 2
      %s248 = smul.addr %s247, 4
      %s249 = smul.addr %s245, 12
      %s250 = sadd.s32 %s248, %s249
      %s251 = smul.addr %s250, 2
      %s252 = scalar_lea.vmem %s0, %s251
      %s253 = sadd.s32 %s20, 1
      %p254 = scmp.lt.s32.totalorder %s19, 1
      %s255 = scalar_select %p254, %s19, 1
      %p256 = scmp.lt.s32.totalorder %s253, 2
      %s257 = scalar_select %p256, %s253, 2
      %s258 = smul.addr %s257, 4
      %s259 = smul.addr %s255, 12
      %s260 = sadd.s32 %s258, %s259
      %s261 = smul.addr %s260, 2
      %s262 = scalar_lea.vmem %s1, %s261
      %s263 = sadd.s32 %s20, 1
      %p264 = scmp.lt.s32.totalorder %s19, 1
      %s265 = scalar_select %p264, %s19, 1
      %p266 = scmp.lt.s32.totalorder %s20, 1
      %s267 = scalar_select %p266, %s20, 1
      %s268 = smul.addr %s265, 2
      %s269 = sadd.s32 %s267, %s268
      %s270 = scalar_lea.vmem %s4, %s269
      %v272 = vld [vmem:[%s252] sm:$0x55]
      %v273 = vld [vmem:[%s2] sm:$0xf]
      %v274 = vld [vmem:[%s2 + $0x4] sm:$0xf]
      %v275 = vld [vmem:[%s2 + $0x8] sm:$0xf]
      %v276 = vld [vmem:[%s2 + $0xc] sm:$0xf]
      %v277 = vld [vmem:[%s2 + $0x10] sm:$0xf]
      %v278 = vld [vmem:[%s2 + $0x14] sm:$0xf]
      %v279 = vld [vmem:[%s2 + $0x18] sm:$0xf]
      %v280 = vld [vmem:[%s2 + $0x1c] sm:$0xf]
      %v281 = vld [vmem:[%s2 + $0x20] sm:$0xf]
      %v282 = vld [vmem:[%s2 + $0x24] sm:$0xf]
      %v283 = vld [vmem:[%s2 + $0x28] sm:$0xf]
      %v284 = vld [vmem:[%s2 + $0x2c] sm:$0xf]
      %v285 = vld [vmem:[%s2 + $0x30] sm:$0xf]
      %v286 = vld [vmem:[%s2 + $0x34] sm:$0xf]
      %v287 = vld [vmem:[%s2 + $0x38] sm:$0xf]
      %v288 = vld [vmem:[%s2 + $0x3c] sm:$0xf]
      %v289 = vld [vmem:[%s2 + $0x40] sm:$0xf]
      %v290 = vld [vmem:[%s2 + $0x44] sm:$0xf]
      %v291 = vld [vmem:[%s2 + $0x48] sm:$0xf]
      %v292 = vld [vmem:[%s2 + $0x4c] sm:$0xf]
      %v293 = vld [vmem:[%s2 + $0x50] sm:$0xf]
      %v294 = vld [vmem:[%s2 + $0x54] sm:$0xf]
      %v295 = vld [vmem:[%s2 + $0x58] sm:$0xf]
      %v296 = vld [vmem:[%s2 + $0x5c] sm:$0xf]
      %v297 = vld [vmem:[%s2 + $0x60] sm:$0xf]
      %v298 = vld [vmem:[%s2 + $0x64] sm:$0xf]
      %v299 = vld [vmem:[%s2 + $0x68] sm:$0xf]
      %v300 = vld [vmem:[%s2 + $0x6c] sm:$0xf]
      %v301 = vld [vmem:[%s2 + $0x70] sm:$0xf]
      %v302 = vld [vmem:[%s2 + $0x74] sm:$0xf]
      %v303 = vld [vmem:[%s2 + $0x78] sm:$0xf]
      %v304 = vld [vmem:[%s2 + $0x7c] sm:$0xf]
      %v305 = vld [vmem:[%s2 + $0x80] sm:$0xf]
      %v306 = vld [vmem:[%s2 + $0x84] sm:$0xf]
      %v307 = vld [vmem:[%s2 + $0x88] sm:$0xf]
      %v308 = vld [vmem:[%s2 + $0x8c] sm:$0xf]
      %v309 = vld [vmem:[%s2 + $0x90] sm:$0xf]
      %v310 = vld [vmem:[%s2 + $0x94] sm:$0xf]
      %v311 = vld [vmem:[%s2 + $0x98] sm:$0xf]
      %v312 = vld [vmem:[%s2 + $0x9c] sm:$0xf]
      %v313 = vld [vmem:[%s2 + $0xa0] sm:$0xf]
      %v314 = vld [vmem:[%s2 + $0xa4] sm:$0xf]
      %v315 = vld [vmem:[%s2 + $0xa8] sm:$0xf]
      %v316 = vld [vmem:[%s2 + $0xac] sm:$0xf]
      %v317 = vld [vmem:[%s2 + $0xb0] sm:$0xf]
      %v318 = vld [vmem:[%s2 + $0xb4] sm:$0xf]
      %v319 = vld [vmem:[%s2 + $0xb8] sm:$0xf]
      %v320 = vld [vmem:[%s2 + $0xbc] sm:$0xf]
      %v321 = vld [vmem:[%s2 + $0xc0] sm:$0xf]
      %v322 = vld [vmem:[%s2 + $0xc4] sm:$0xf]
      %v323 = vld [vmem:[%s2 + $0xc8] sm:$0xf]
      %v324 = vld [vmem:[%s2 + $0xcc] sm:$0xf]
      %v325 = vld [vmem:[%s2 + $0xd0] sm:$0xf]
      %v326 = vld [vmem:[%s2 + $0xd4] sm:$0xf]
      %v327 = vld [vmem:[%s2 + $0xd8] sm:$0xf]
      %v328 = vld [vmem:[%s2 + $0xdc] sm:$0xf]
      %v329 = vld [vmem:[%s2 + $0xe0] sm:$0xf]
      %v330 = vld [vmem:[%s2 + $0xe4] sm:$0xf]
      %v331 = vld [vmem:[%s2 + $0xe8] sm:$0xf]
      %v332 = vld [vmem:[%s2 + $0xec] sm:$0xf]
      %v333 = vld [vmem:[%s2 + $0xf0] sm:$0xf]
      %v334 = vld [vmem:[%s2 + $0xf4] sm:$0xf]
      %v335 = vld [vmem:[%s2 + $0xf8] sm:$0xf]
      %v336 = vld [vmem:[%s2 + $0xfc] sm:$0xf]
      %v337 = vld [vmem:[%s252] sm:$0xff]
      %s338 = scalar_lea.vmem %s2, 256
      %v339 = vld [vmem:[%s338] sm:$0xf]
      %v340 = vld [vmem:[%s338 + $0x4] sm:$0xf]
      %v341 = vld [vmem:[%s338 + $0x8] sm:$0xf]
      %v342 = vld [vmem:[%s338 + $0xc] sm:$0xf]
      %v343 = vld [vmem:[%s338 + $0x10] sm:$0xf]
      %v344 = vld [vmem:[%s338 + $0x14] sm:$0xf]
      %v345 = vld [vmem:[%s338 + $0x18] sm:$0xf]
      %v346 = vld [vmem:[%s338 + $0x1c] sm:$0xf]
      %v347 = vld [vmem:[%s338 + $0x20] sm:$0xf]
      %v348 = vld [vmem:[%s338 + $0x24] sm:$0xf]
      %v349 = vld [vmem:[%s338 + $0x28] sm:$0xf]
      %v350 = vld [vmem:[%s338 + $0x2c] sm:$0xf]
      %v351 = vld [vmem:[%s338 + $0x30] sm:$0xf]
      %v352 = vld [vmem:[%s338 + $0x34] sm:$0xf]
      %v353 = vld [vmem:[%s338 + $0x38] sm:$0xf]
      %v354 = vld [vmem:[%s338 + $0x3c] sm:$0xf]
      %v355 = vld [vmem:[%s338 + $0x40] sm:$0xf]
      %v356 = vld [vmem:[%s338 + $0x44] sm:$0xf]
      %v357 = vld [vmem:[%s338 + $0x48] sm:$0xf]
      %v358 = vld [vmem:[%s338 + $0x4c] sm:$0xf]
      %v359 = vld [vmem:[%s338 + $0x50] sm:$0xf]
      %v360 = vld [vmem:[%s338 + $0x54] sm:$0xf]
      %v361 = vld [vmem:[%s338 + $0x58] sm:$0xf]
      %v362 = vld [vmem:[%s338 + $0x5c] sm:$0xf]
      %v363 = vld [vmem:[%s338 + $0x60] sm:$0xf]
      %v364 = vld [vmem:[%s338 + $0x64] sm:$0xf]
      %v365 = vld [vmem:[%s338 + $0x68] sm:$0xf]
      %v366 = vld [vmem:[%s338 + $0x6c] sm:$0xf]
      %v367 = vld [vmem:[%s338 + $0x70] sm:$0xf]
      %v368 = vld [vmem:[%s338 + $0x74] sm:$0xf]
      %v369 = vld [vmem:[%s338 + $0x78] sm:$0xf]
      %v370 = vld [vmem:[%s338 + $0x7c] sm:$0xf]
      %v371 = vld [vmem:[%s338 + $0x80] sm:$0xf]
      %v372 = vld [vmem:[%s338 + $0x84] sm:$0xf]
      %v373 = vld [vmem:[%s338 + $0x88] sm:$0xf]
      %v374 = vld [vmem:[%s338 + $0x8c] sm:$0xf]
      %v375 = vld [vmem:[%s338 + $0x90] sm:$0xf]
      %v376 = vld [vmem:[%s338 + $0x94] sm:$0xf]
      %v377 = vld [vmem:[%s338 + $0x98] sm:$0xf]
      %v378 = vld [vmem:[%s338 + $0x9c] sm:$0xf]
      %v379 = vld [vmem:[%s338 + $0xa0] sm:$0xf]
      %v380 = vld [vmem:[%s338 + $0xa4] sm:$0xf]
      %v381 = vld [vmem:[%s338 + $0xa8] sm:$0xf]
      %v382 = vld [vmem:[%s338 + $0xac] sm:$0xf]
      %v383 = vld [vmem:[%s338 + $0xb0] sm:$0xf]
      %v384 = vld [vmem:[%s338 + $0xb4] sm:$0xf]
      %v385 = vld [vmem:[%s338 + $0xb8] sm:$0xf]
      %v386 = vld [vmem:[%s338 + $0xbc] sm:$0xf]
      %v387 = vld [vmem:[%s338 + $0xc0] sm:$0xf]
      %v388 = vld [vmem:[%s338 + $0xc4] sm:$0xf]
      %v389 = vld [vmem:[%s338 + $0xc8] sm:$0xf]
      %v390 = vld [vmem:[%s338 + $0xcc] sm:$0xf]
      %v391 = vld [vmem:[%s338 + $0xd0] sm:$0xf]
      %v392 = vld [vmem:[%s338 + $0xd4] sm:$0xf]
      %v393 = vld [vmem:[%s338 + $0xd8] sm:$0xf]
      %v394 = vld [vmem:[%s338 + $0xdc] sm:$0xf]
      %v395 = vld [vmem:[%s338 + $0xe0] sm:$0xf]
      %v396 = vld [vmem:[%s338 + $0xe4] sm:$0xf]
      %v397 = vld [vmem:[%s338 + $0xe8] sm:$0xf]
      %v398 = vld [vmem:[%s338 + $0xec] sm:$0xf]
      %v399 = vld [vmem:[%s338 + $0xf0] sm:$0xf]
      %v400 = vld [vmem:[%s338 + $0xf4] sm:$0xf]
      %v401 = vld [vmem:[%s338 + $0xf8] sm:$0xf]
      %v402 = vld [vmem:[%s338 + $0xfc] sm:$0xf]
      %v404 = vcombine.high %v337, %v337
      %v406 = vunpack.c.l.s4 1983009808
      %v407 = vunpack.c.0.s8 %v406
      %v408 = vlaneseq
      %v409 = vshrl.u32 %v408, 7
      %v410 = vsub.s32 %v407, %v409
      %v411 = vrot.slane %v337, %v410
      %v413 = vunpack.c.l.s4 1983009808
      %v414 = vunpack.c.0.s8 %v413
      %v415 = vlaneseq
      %v416 = vshrl.u32 %v415, 7
      %v417 = vsub.s32 %v414, %v416
      %v418 = vrot.slane %v404, %v417
      %v419 = vcombine.high %v411, %v411
      %v420 = vcombine.high %v418, %v418
      %v422 = vshrl.u32 %v411, 16
      %v424 = vshll.u32 %v411, 16
      %v426 = vrot.slane %v424, 1
      %v427 = vor.u32 %v422, %v426
      %v429 = vshrl.u32 %v419, 16
      %v431 = vshll.u32 %v419, 16
      %v433 = vrot.slane %v431, 1
      %v434 = vor.u32 %v429, %v433
      %v436 = vshrl.u32 %v418, 16
      %v438 = vshll.u32 %v418, 16
      %v440 = vrot.slane %v438, 1
      %v441 = vor.u32 %v436, %v440
      %v443 = vshrl.u32 %v420, 16
      %v445 = vshll.u32 %v420, 16
      %v447 = vrot.slane %v445, 1
      %v448 = vor.u32 %v443, %v447
      %v517 = vunpack.c.l.b16 %v339
      %v518 = vunpack.c.l.b16 %v340
      %v519 = vunpack.c.l.b16 %v341
      %v520 = vunpack.c.l.b16 %v342
      %v521 = vunpack.c.l.b16 %v343
      %v522 = vunpack.c.l.b16 %v344
      %v523 = vunpack.c.l.b16 %v345
      %v524 = vunpack.c.l.b16 %v346
      %v525 = vunpack.c.l.b16 %v347
      %v526 = vunpack.c.l.b16 %v348
      %v527 = vunpack.c.l.b16 %v349
      %v528 = vunpack.c.l.b16 %v350
      %v529 = vunpack.c.l.b16 %v351
      %v530 = vunpack.c.l.b16 %v352
      %v531 = vunpack.c.l.b16 %v353
      %v532 = vunpack.c.l.b16 %v354
      %v533 = vunpack.c.l.b16 %v355
      %v534 = vunpack.c.l.b16 %v356
      %v535 = vunpack.c.l.b16 %v357
      %v536 = vunpack.c.l.b16 %v358
      %v537 = vunpack.c.l.b16 %v359
      %v538 = vunpack.c.l.b16 %v360
      %v539 = vunpack.c.l.b16 %v361
      %v540 = vunpack.c.l.b16 %v362
      %v541 = vunpack.c.l.b16 %v363
      %v542 = vunpack.c.l.b16 %v364
      %v543 = vunpack.c.l.b16 %v365
      %v544 = vunpack.c.l.b16 %v366
      %v545 = vunpack.c.l.b16 %v367
      %v546 = vunpack.c.l.b16 %v368
      %v547 = vunpack.c.l.b16 %v369
      %v548 = vunpack.c.l.b16 %v370
      %v549 = vunpack.c.l.b16 %v371
      %v550 = vunpack.c.l.b16 %v372
      %v551 = vunpack.c.l.b16 %v373
      %v552 = vunpack.c.l.b16 %v374
      %v553 = vunpack.c.l.b16 %v375
      %v554 = vunpack.c.l.b16 %v376
      %v555 = vunpack.c.l.b16 %v377
      %v556 = vunpack.c.l.b16 %v378
      %v557 = vunpack.c.l.b16 %v379
      %v558 = vunpack.c.l.b16 %v380
      %v559 = vunpack.c.l.b16 %v381
      %v560 = vunpack.c.l.b16 %v382
      %v561 = vunpack.c.l.b16 %v383
      %v562 = vunpack.c.l.b16 %v384
      %v563 = vunpack.c.l.b16 %v385
      %v564 = vunpack.c.l.b16 %v386
      %v565 = vunpack.c.l.b16 %v387
      %v566 = vunpack.c.l.b16 %v388
      %v567 = vunpack.c.l.b16 %v389
      %v568 = vunpack.c.l.b16 %v390
      %v569 = vunpack.c.l.b16 %v391
      %v570 = vunpack.c.l.b16 %v392
      %v571 = vunpack.c.l.b16 %v393
      %v572 = vunpack.c.l.b16 %v394
      %v573 = vunpack.c.l.b16 %v395
      %v574 = vunpack.c.l.b16 %v396
      %v575 = vunpack.c.l.b16 %v397
      %v576 = vunpack.c.l.b16 %v398
      %v577 = vunpack.c.l.b16 %v399
      %v578 = vunpack.c.l.b16 %v400
      %v579 = vunpack.c.l.b16 %v401
      %v580 = vunpack.c.l.b16 %v402
      %v581 = vpack.c.b16 %v518, %v517
      %v582 = vpack.c.b16 %v520, %v519
      %v583 = vpack.c.b16 %v522, %v521
      %v584 = vpack.c.b16 %v524, %v523
      %v585 = vpack.c.b16 %v526, %v525
      %v586 = vpack.c.b16 %v528, %v527
      %v587 = vpack.c.b16 %v530, %v529
      %v588 = vpack.c.b16 %v532, %v531
      %v589 = vpack.c.b16 %v534, %v533
      %v590 = vpack.c.b16 %v536, %v535
      %v591 = vpack.c.b16 %v538, %v537
      %v592 = vpack.c.b16 %v540, %v539
      %v593 = vpack.c.b16 %v542, %v541
      %v594 = vpack.c.b16 %v544, %v543
      %v595 = vpack.c.b16 %v546, %v545
      %v596 = vpack.c.b16 %v548, %v547
      %v597 = vpack.c.b16 %v550, %v549
      %v598 = vpack.c.b16 %v552, %v551
      %v599 = vpack.c.b16 %v554, %v553
      %v600 = vpack.c.b16 %v556, %v555
      %v601 = vpack.c.b16 %v558, %v557
      %v602 = vpack.c.b16 %v560, %v559
      %v603 = vpack.c.b16 %v562, %v561
      %v604 = vpack.c.b16 %v564, %v563
      %v605 = vpack.c.b16 %v566, %v565
      %v606 = vpack.c.b16 %v568, %v567
      %v607 = vpack.c.b16 %v570, %v569
      %v608 = vpack.c.b16 %v572, %v571
      %v609 = vpack.c.b16 %v574, %v573
      %v610 = vpack.c.b16 %v576, %v575
      %v611 = vpack.c.b16 %v578, %v577
      %v612 = vpack.c.b16 %v580, %v579
      %645 = vmatprep.subr.bf16.mxu0 0
      %646 = vmatpush1.bf16.msra.mxu0 %v581
      %647 = vmatprep.subr.bf16.mxu0 0
      %648 = vmatpush1.bf16.msra.mxu0 %v582
      %649 = vmatprep.subr.bf16.mxu0 0
      %650 = vmatpush1.bf16.msra.mxu0 %v583
      %651 = vmatprep.subr.bf16.mxu0 0
      %652 = vmatpush1.bf16.msra.mxu0 %v584
      %653 = vmatprep.subr.bf16.mxu0 0
      %654 = vmatpush1.bf16.msra.mxu0 %v585
      %655 = vmatprep.subr.bf16.mxu0 0
      %656 = vmatpush1.bf16.msra.mxu0 %v586
      %657 = vmatprep.subr.bf16.mxu0 0
      %658 = vmatpush1.bf16.msra.mxu0 %v587
      %659 = vmatprep.subr.bf16.mxu0 0
      %660 = vmatpush1.bf16.msra.mxu0 %v588
      %661 = vmatprep.subr.bf16.mxu0 0
      %662 = vmatpush1.bf16.msra.mxu0 %v589
      %663 = vmatprep.subr.bf16.mxu0 0
      %664 = vmatpush1.bf16.msra.mxu0 %v590
      %665 = vmatprep.subr.bf16.mxu0 0
      %666 = vmatpush1.bf16.msra.mxu0 %v591
      %667 = vmatprep.subr.bf16.mxu0 0
      %668 = vmatpush1.bf16.msra.mxu0 %v592
      %669 = vmatprep.subr.bf16.mxu0 0
      %670 = vmatpush1.bf16.msra.mxu0 %v593
      %671 = vmatprep.subr.bf16.mxu0 0
      %672 = vmatpush1.bf16.msra.mxu0 %v594
      %673 = vmatprep.subr.bf16.mxu0 0
      %674 = vmatpush1.bf16.msra.mxu0 %v595
      %675 = vmatprep.subr.bf16.mxu0 0
      %676 = vmatpush1.bf16.msra.mxu0 %v596
      %677 = vmatprep.mubr.bf16.mxu0 %v434
      %678 = vmatmul.mubr.bf16.gmra.mrb[0].mxu0 %v427
      %v679 = vpop.f32.mrb[0].mxu0
      %v680 = vadd.f32 0.0, %v679
      %v681 = vpop.f32.mrb[0].mxu0
      %v682 = vpop.f32.mrb[0].mxu0
      %v683 = vpop.f32.mrb[0].mxu0
      %684 = vdwg.mxu0
      %685 = vmatprep.subr.bf16.mxu0 0
      %686 = vmatpush1.bf16.msra.mxu0 %v597
      %687 = vmatprep.subr.bf16.mxu0 0
      %688 = vmatpush1.bf16.msra.mxu0 %v598
      %689 = vmatprep.subr.bf16.mxu0 0
      %690 = vmatpush1.bf16.msra.mxu0 %v599
      %691 = vmatprep.subr.bf16.mxu0 0
      %692 = vmatpush1.bf16.msra.mxu0 %v600
      %693 = vmatprep.subr.bf16.mxu0 0
      %694 = vmatpush1.bf16.msra.mxu0 %v601
      %695 = vmatprep.subr.bf16.mxu0 0
      %696 = vmatpush1.bf16.msra.mxu0 %v602
      %697 = vmatprep.subr.bf16.mxu0 0
      %698 = vmatpush1.bf16.msra.mxu0 %v603
      %699 = vmatprep.subr.bf16.mxu0 0
      %700 = vmatpush1.bf16.msra.mxu0 %v604
      %701 = vmatprep.subr.bf16.mxu0 0
      %702 = vmatpush1.bf16.msra.mxu0 %v605
      %703 = vmatprep.subr.bf16.mxu0 0
      %704 = vmatpush1.bf16.msra.mxu0 %v606
      %705 = vmatprep.subr.bf16.mxu0 0
      %706 = vmatpush1.bf16.msra.mxu0 %v607
      %707 = vmatprep.subr.bf16.mxu0 0
      %708 = vmatpush1.bf16.msra.mxu0 %v608
      %709 = vmatprep.subr.bf16.mxu0 0
      %710 = vmatpush1.bf16.msra.mxu0 %v609
      %711 = vmatprep.subr.bf16.mxu0 0
      %712 = vmatpush1.bf16.msra.mxu0 %v610
      %713 = vmatprep.subr.bf16.mxu0 0
      %714 = vmatpush1.bf16.msra.mxu0 %v611
      %715 = vmatprep.subr.bf16.mxu0 0
      %716 = vmatpush1.bf16.msra.mxu0 %v612
      %717 = vmatprep.mubr.bf16.mxu0 %v448
      %718 = vmatmul.mubr.bf16.gmra.mrb[0].mxu0 %v441
      %v719 = vpop.f32.mrb[0].mxu0
      %v720 = vadd.f32 %v680, %v719
      %v721 = vpop.f32.mrb[0].mxu0
      %v722 = vpop.f32.mrb[0].mxu0
      %v723 = vpop.f32.mrb[0].mxu0
      %724 = vdwg.mxu0
      %v726 = vcombine.high %v272, %v272
      %v728 = vunpack.c.l.s4 1983009808
      %v729 = vunpack.c.0.s8 %v728
      %v730 = vlaneseq
      %v731 = vshrl.u32 %v730, 7
      %v732 = vsub.s32 %v729, %v731
      %v733 = vrot.slane %v272, %v732
      %v735 = vunpack.c.l.s4 1983009808
      %v736 = vunpack.c.0.s8 %v735
      %v737 = vlaneseq
      %v738 = vshrl.u32 %v737, 7
      %v739 = vsub.s32 %v736, %v738
      %v740 = vrot.slane %v726, %v739
      %v741 = vcombine.high %v733, %v733
      %v742 = vcombine.high %v740, %v740
      %v811 = vunpack.c.l.b16 %v273
      %v812 = vunpack.c.l.b16 %v274
      %v813 = vunpack.c.l.b16 %v275
      %v814 = vunpack.c.l.b16 %v276
      %v815 = vunpack.c.l.b16 %v277
      %v816 = vunpack.c.l.b16 %v278
      %v817 = vunpack.c.l.b16 %v279
      %v818 = vunpack.c.l.b16 %v280
      %v819 = vunpack.c.l.b16 %v281
      %v820 = vunpack.c.l.b16 %v282
      %v821 = vunpack.c.l.b16 %v283
      %v822 = vunpack.c.l.b16 %v284
      %v823 = vunpack.c.l.b16 %v285
      %v824 = vunpack.c.l.b16 %v286
      %v825 = vunpack.c.l.b16 %v287
      %v826 = vunpack.c.l.b16 %v288
      %v827 = vunpack.c.l.b16 %v289
      %v828 = vunpack.c.l.b16 %v290
      %v829 = vunpack.c.l.b16 %v291
      %v830 = vunpack.c.l.b16 %v292
      %v831 = vunpack.c.l.b16 %v293
      %v832 = vunpack.c.l.b16 %v294
      %v833 = vunpack.c.l.b16 %v295
      %v834 = vunpack.c.l.b16 %v296
      %v835 = vunpack.c.l.b16 %v297
      %v836 = vunpack.c.l.b16 %v298
      %v837 = vunpack.c.l.b16 %v299
      %v838 = vunpack.c.l.b16 %v300
      %v839 = vunpack.c.l.b16 %v301
      %v840 = vunpack.c.l.b16 %v302
      %v841 = vunpack.c.l.b16 %v303
      %v842 = vunpack.c.l.b16 %v304
      %v843 = vunpack.c.l.b16 %v305
      %v844 = vunpack.c.l.b16 %v306
      %v845 = vunpack.c.l.b16 %v307
      %v846 = vunpack.c.l.b16 %v308
      %v847 = vunpack.c.l.b16 %v309
      %v848 = vunpack.c.l.b16 %v310
      %v849 = vunpack.c.l.b16 %v311
      %v850 = vunpack.c.l.b16 %v312
      %v851 = vunpack.c.l.b16 %v313
      %v852 = vunpack.c.l.b16 %v314
      %v853 = vunpack.c.l.b16 %v315
      %v854 = vunpack.c.l.b16 %v316
      %v855 = vunpack.c.l.b16 %v317
      %v856 = vunpack.c.l.b16 %v318
      %v857 = vunpack.c.l.b16 %v319
      %v858 = vunpack.c.l.b16 %v320
      %v859 = vunpack.c.l.b16 %v321
      %v860 = vunpack.c.l.b16 %v322
      %v861 = vunpack.c.l.b16 %v323
      %v862 = vunpack.c.l.b16 %v324
      %v863 = vunpack.c.l.b16 %v325
      %v864 = vunpack.c.l.b16 %v326
      %v865 = vunpack.c.l.b16 %v327
      %v866 = vunpack.c.l.b16 %v328
      %v867 = vunpack.c.l.b16 %v329
      %v868 = vunpack.c.l.b16 %v330
      %v869 = vunpack.c.l.b16 %v331
      %v870 = vunpack.c.l.b16 %v332
      %v871 = vunpack.c.l.b16 %v333
      %v872 = vunpack.c.l.b16 %v334
      %v873 = vunpack.c.l.b16 %v335
      %v874 = vunpack.c.l.b16 %v336
      %v875 = vpack.c.b16 %v812, %v811
      %v876 = vpack.c.b16 %v814, %v813
      %v877 = vpack.c.b16 %v816, %v815
      %v878 = vpack.c.b16 %v818, %v817
      %v879 = vpack.c.b16 %v820, %v819
      %v880 = vpack.c.b16 %v822, %v821
      %v881 = vpack.c.b16 %v824, %v823
      %v882 = vpack.c.b16 %v826, %v825
      %v883 = vpack.c.b16 %v828, %v827
      %v884 = vpack.c.b16 %v830, %v829
      %v885 = vpack.c.b16 %v832, %v831
      %v886 = vpack.c.b16 %v834, %v833
      %v887 = vpack.c.b16 %v836, %v835
      %v888 = vpack.c.b16 %v838, %v837
      %v889 = vpack.c.b16 %v840, %v839
      %v890 = vpack.c.b16 %v842, %v841
      %v891 = vpack.c.b16 %v844, %v843
      %v892 = vpack.c.b16 %v846, %v845
      %v893 = vpack.c.b16 %v848, %v847
      %v894 = vpack.c.b16 %v850, %v849
      %v895 = vpack.c.b16 %v852, %v851
      %v896 = vpack.c.b16 %v854, %v853
      %v897 = vpack.c.b16 %v856, %v855
      %v898 = vpack.c.b16 %v858, %v857
      %v899 = vpack.c.b16 %v860, %v859
      %v900 = vpack.c.b16 %v862, %v861
      %v901 = vpack.c.b16 %v864, %v863
      %v902 = vpack.c.b16 %v866, %v865
      %v903 = vpack.c.b16 %v868, %v867
      %v904 = vpack.c.b16 %v870, %v869
      %v905 = vpack.c.b16 %v872, %v871
      %v906 = vpack.c.b16 %v874, %v873
      %939 = vmatprep.subr.bf16.mxu0 0
      %940 = vmatpush1.bf16.msra.mxu0 %v875
      %941 = vmatprep.subr.bf16.mxu0 0
      %942 = vmatpush1.bf16.msra.mxu0 %v876
      %943 = vmatprep.subr.bf16.mxu0 0
      %944 = vmatpush1.bf16.msra.mxu0 %v877
      %945 = vmatprep.subr.bf16.mxu0 0
      %946 = vmatpush1.bf16.msra.mxu0 %v878
      %947 = vmatprep.subr.bf16.mxu0 0
      %948 = vmatpush1.bf16.msra.mxu0 %v879
      %949 = vmatprep.subr.bf16.mxu0 0
      %950 = vmatpush1.bf16.msra.mxu0 %v880
      %951 = vmatprep.subr.bf16.mxu0 0
      %952 = vmatpush1.bf16.msra.mxu0 %v881
      %953 = vmatprep.subr.bf16.mxu0 0
      %954 = vmatpush1.bf16.msra.mxu0 %v882
      %955 = vmatprep.subr.bf16.mxu0 0
      %956 = vmatpush1.bf16.msra.mxu0 %v883
      %957 = vmatprep.subr.bf16.mxu0 0
      %958 = vmatpush1.bf16.msra.mxu0 %v884
      %959 = vmatprep.subr.bf16.mxu0 0
      %960 = vmatpush1.bf16.msra.mxu0 %v885
      %961 = vmatprep.subr.bf16.mxu0 0
      %962 = vmatpush1.bf16.msra.mxu0 %v886
      %963 = vmatprep.subr.bf16.mxu0 0
      %964 = vmatpush1.bf16.msra.mxu0 %v887
      %965 = vmatprep.subr.bf16.mxu0 0
      %966 = vmatpush1.bf16.msra.mxu0 %v888
      %967 = vmatprep.subr.bf16.mxu0 0
      %968 = vmatpush1.bf16.msra.mxu0 %v889
      %969 = vmatprep.subr.bf16.mxu0 0
      %970 = vmatpush1.bf16.msra.mxu0 %v890
      %971 = vmatprep.mubr.bf16.mxu0 %v741
      %972 = vmatmul.mubr.bf16.gmra.mrb[0].mxu0 %v733
      %v973 = vpop.f32.mrb[0].mxu0
      %v974 = vadd.f32 %v720, %v973
      %v975 = vpop.f32.mrb[0].mxu0
      %v976 = vpop.f32.mrb[0].mxu0
      %v977 = vpop.f32.mrb[0].mxu0
      %978 = vdwg.mxu0
      %979 = vmatprep.subr.bf16.mxu0 0
      %980 = vmatpush1.bf16.msra.mxu0 %v891
      %981 = vmatprep.subr.bf16.mxu0 0
      %982 = vmatpush1.bf16.msra.mxu0 %v892
      %983 = vmatprep.subr.bf16.mxu0 0
      %984 = vmatpush1.bf16.msra.mxu0 %v893
      %985 = vmatprep.subr.bf16.mxu0 0
      %986 = vmatpush1.bf16.msra.mxu0 %v894
      %987 = vmatprep.subr.bf16.mxu0 0
      %988 = vmatpush1.bf16.msra.mxu0 %v895
      %989 = vmatprep.subr.bf16.mxu0 0
      %990 = vmatpush1.bf16.msra.mxu0 %v896
      %991 = vmatprep.subr.bf16.mxu0 0
      %992 = vmatpush1.bf16.msra.mxu0 %v897
      %993 = vmatprep.subr.bf16.mxu0 0
      %994 = vmatpush1.bf16.msra.mxu0 %v898
      %995 = vmatprep.subr.bf16.mxu0 0
      %996 = vmatpush1.bf16.msra.mxu0 %v899
      %997 = vmatprep.subr.bf16.mxu0 0
      %998 = vmatpush1.bf16.msra.mxu0 %v900
      %999 = vmatprep.subr.bf16.mxu0 0
      %1000 = vmatpush1.bf16.msra.mxu0 %v901
      %1001 = vmatprep.subr.bf16.mxu0 0
      %1002 = vmatpush1.bf16.msra.mxu0 %v902
      %1003 = vmatprep.subr.bf16.mxu0 0
      %1004 = vmatpush1.bf16.msra.mxu0 %v903
      %1005 = vmatprep.subr.bf16.mxu0 0
      %1006 = vmatpush1.bf16.msra.mxu0 %v904
      %1007 = vmatprep.subr.bf16.mxu0 0
      %1008 = vmatpush1.bf16.msra.mxu0 %v905
      %1009 = vmatprep.subr.bf16.mxu0 0
      %1010 = vmatpush1.bf16.msra.mxu0 %v906
      %1011 = vmatprep.mubr.bf16.mxu0 %v742
      %1012 = vmatmul.mubr.bf16.gmra.mrb[0].mxu0 %v740
      %v1013 = vpop.f32.mrb[0].mxu0
      %v1014 = vadd.f32 %v974, %v1013
      %v1015 = vpop.f32.mrb[0].mxu0
      %v1016 = vpop.f32.mrb[0].mxu0
      %v1017 = vpop.f32.mrb[0].mxu0
      %1018 = vdwg.mxu0
      %v1019 = vld [vmem:[%s262] sm:$0x55]
      %s1020 = scalar_lea.vmem %s2, 512
      %v1021 = vld [vmem:[%s1020] sm:$0xf]
      %v1022 = vld [vmem:[%s1020 + $0x4] sm:$0xf]
      %v1023 = vld [vmem:[%s1020 + $0x8] sm:$0xf]
      %v1024 = vld [vmem:[%s1020 + $0xc] sm:$0xf]
      %v1025 = vld [vmem:[%s1020 + $0x10] sm:$0xf]
      %v1026 = vld [vmem:[%s1020 + $0x14] sm:$0xf]
      %v1027 = vld [vmem:[%s1020 + $0x18] sm:$0xf]
      %v1028 = vld [vmem:[%s1020 + $0x1c] sm:$0xf]
      %v1029 = vld [vmem:[%s1020 + $0x20] sm:$0xf]
      %v1030 = vld [vmem:[%s1020 + $0x24] sm:$0xf]
      %v1031 = vld [vmem:[%s1020 + $0x28] sm:$0xf]
      %v1032 = vld [vmem:[%s1020 + $0x2c] sm:$0xf]
      %v1033 = vld [vmem:[%s1020 + $0x30] sm:$0xf]
      %v1034 = vld [vmem:[%s1020 + $0x34] sm:$0xf]
      %v1035 = vld [vmem:[%s1020 + $0x38] sm:$0xf]
      %v1036 = vld [vmem:[%s1020 + $0x3c] sm:$0xf]
      %v1037 = vld [vmem:[%s1020 + $0x40] sm:$0xf]
      %v1038 = vld [vmem:[%s1020 + $0x44] sm:$0xf]
      %v1039 = vld [vmem:[%s1020 + $0x48] sm:$0xf]
      %v1040 = vld [vmem:[%s1020 + $0x4c] sm:$0xf]
      %v1041 = vld [vmem:[%s1020 + $0x50] sm:$0xf]
      %v1042 = vld [vmem:[%s1020 + $0x54] sm:$0xf]
      %v1043 = vld [vmem:[%s1020 + $0x58] sm:$0xf]
      %v1044 = vld [vmem:[%s1020 + $0x5c] sm:$0xf]
      %v1045 = vld [vmem:[%s1020 + $0x60] sm:$0xf]
      %v1046 = vld [vmem:[%s1020 + $0x64] sm:$0xf]
      %v1047 = vld [vmem:[%s1020 + $0x68] sm:$0xf]
      %v1048 = vld [vmem:[%s1020 + $0x6c] sm:$0xf]
      %v1049 = vld [vmem:[%s1020 + $0x70] sm:$0xf]
      %v1050 = vld [vmem:[%s1020 + $0x74] sm:$0xf]
      %v1051 = vld [vmem:[%s1020 + $0x78] sm:$0xf]
      %v1052 = vld [vmem:[%s1020 + $0x7c] sm:$0xf]
      %v1053 = vld [vmem:[%s1020 + $0x80] sm:$0xf]
      %v1054 = vld [vmem:[%s1020 + $0x84] sm:$0xf]
      %v1055 = vld [vmem:[%s1020 + $0x88] sm:$0xf]
      %v1056 = vld [vmem:[%s1020 + $0x8c] sm:$0xf]
      %v1057 = vld [vmem:[%s1020 + $0x90] sm:$0xf]
      %v1058 = vld [vmem:[%s1020 + $0x94] sm:$0xf]
      %v1059 = vld [vmem:[%s1020 + $0x98] sm:$0xf]
      %v1060 = vld [vmem:[%s1020 + $0x9c] sm:$0xf]
      %v1061 = vld [vmem:[%s1020 + $0xa0] sm:$0xf]
      %v1062 = vld [vmem:[%s1020 + $0xa4] sm:$0xf]
      %v1063 = vld [vmem:[%s1020 + $0xa8] sm:$0xf]
      %v1064 = vld [vmem:[%s1020 + $0xac] sm:$0xf]
      %v1065 = vld [vmem:[%s1020 + $0xb0] sm:$0xf]
      %v1066 = vld [vmem:[%s1020 + $0xb4] sm:$0xf]
      %v1067 = vld [vmem:[%s1020 + $0xb8] sm:$0xf]
      %v1068 = vld [vmem:[%s1020 + $0xbc] sm:$0xf]
      %v1069 = vld [vmem:[%s1020 + $0xc0] sm:$0xf]
      %v1070 = vld [vmem:[%s1020 + $0xc4] sm:$0xf]
      %v1071 = vld [vmem:[%s1020 + $0xc8] sm:$0xf]
      %v1072 = vld [vmem:[%s1020 + $0xcc] sm:$0xf]
      %v1073 = vld [vmem:[%s1020 + $0xd0] sm:$0xf]
      %v1074 = vld [vmem:[%s1020 + $0xd4] sm:$0xf]
      %v1075 = vld [vmem:[%s1020 + $0xd8] sm:$0xf]
      %v1076 = vld [vmem:[%s1020 + $0xdc] sm:$0xf]
      %v1077 = vld [vmem:[%s1020 + $0xe0] sm:$0xf]
      %v1078 = vld [vmem:[%s1020 + $0xe4] sm:$0xf]
      %v1079 = vld [vmem:[%s1020 + $0xe8] sm:$0xf]
      %v1080 = vld [vmem:[%s1020 + $0xec] sm:$0xf]
      %v1081 = vld [vmem:[%s1020 + $0xf0] sm:$0xf]
      %v1082 = vld [vmem:[%s1020 + $0xf4] sm:$0xf]
      %v1083 = vld [vmem:[%s1020 + $0xf8] sm:$0xf]
      %v1084 = vld [vmem:[%s1020 + $0xfc] sm:$0xf]
      %v1086 = vcombine.high %v1019, %v1019
      %v1088 = vunpack.c.l.s4 1983009808
      %v1089 = vunpack.c.0.s8 %v1088
      %v1090 = vlaneseq
      %v1091 = vshrl.u32 %v1090, 7
      %v1092 = vsub.s32 %v1089, %v1091
      %v1093 = vrot.slane %v1019, %v1092
      %v1095 = vunpack.c.l.s4 1983009808
      %v1096 = vunpack.c.0.s8 %v1095
      %v1097 = vlaneseq
      %v1098 = vshrl.u32 %v1097, 7
      %v1099 = vsub.s32 %v1096, %v1098
      %v1100 = vrot.slane %v1086, %v1099
      %v1101 = vcombine.high %v1093, %v1093
      %v1102 = vcombine.high %v1100, %v1100
      %v1171 = vunpack.c.l.b16 %v1021
      %v1172 = vunpack.c.l.b16 %v1022
      %v1173 = vunpack.c.l.b16 %v1023
      %v1174 = vunpack.c.l.b16 %v1024
      %v1175 = vunpack.c.l.b16 %v1025
      %v1176 = vunpack.c.l.b16 %v1026
      %v1177 = vunpack.c.l.b16 %v1027
      %v1178 = vunpack.c.l.b16 %v1028
      %v1179 = vunpack.c.l.b16 %v1029
      %v1180 = vunpack.c.l.b16 %v1030
      %v1181 = vunpack.c.l.b16 %v1031
      %v1182 = vunpack.c.l.b16 %v1032
      %v1183 = vunpack.c.l.b16 %v1033
      %v1184 = vunpack.c.l.b16 %v1034
      %v1185 = vunpack.c.l.b16 %v1035
      %v1186 = vunpack.c.l.b16 %v1036
      %v1187 = vunpack.c.l.b16 %v1037
      %v1188 = vunpack.c.l.b16 %v1038
      %v1189 = vunpack.c.l.b16 %v1039
      %v1190 = vunpack.c.l.b16 %v1040
      %v1191 = vunpack.c.l.b16 %v1041
      %v1192 = vunpack.c.l.b16 %v1042
      %v1193 = vunpack.c.l.b16 %v1043
      %v1194 = vunpack.c.l.b16 %v1044
      %v1195 = vunpack.c.l.b16 %v1045
      %v1196 = vunpack.c.l.b16 %v1046
      %v1197 = vunpack.c.l.b16 %v1047
      %v1198 = vunpack.c.l.b16 %v1048
      %v1199 = vunpack.c.l.b16 %v1049
      %v1200 = vunpack.c.l.b16 %v1050
      %v1201 = vunpack.c.l.b16 %v1051
      %v1202 = vunpack.c.l.b16 %v1052
      %v1203 = vunpack.c.l.b16 %v1053
      %v1204 = vunpack.c.l.b16 %v1054
      %v1205 = vunpack.c.l.b16 %v1055
      %v1206 = vunpack.c.l.b16 %v1056
      %v1207 = vunpack.c.l.b16 %v1057
      %v1208 = vunpack.c.l.b16 %v1058
      %v1209 = vunpack.c.l.b16 %v1059
      %v1210 = vunpack.c.l.b16 %v1060
      %v1211 = vunpack.c.l.b16 %v1061
      %v1212 = vunpack.c.l.b16 %v1062
      %v1213 = vunpack.c.l.b16 %v1063
      %v1214 = vunpack.c.l.b16 %v1064
      %v1215 = vunpack.c.l.b16 %v1065
      %v1216 = vunpack.c.l.b16 %v1066
      %v1217 = vunpack.c.l.b16 %v1067
      %v1218 = vunpack.c.l.b16 %v1068
      %v1219 = vunpack.c.l.b16 %v1069
      %v1220 = vunpack.c.l.b16 %v1070
      %v1221 = vunpack.c.l.b16 %v1071
      %v1222 = vunpack.c.l.b16 %v1072
      %v1223 = vunpack.c.l.b16 %v1073
      %v1224 = vunpack.c.l.b16 %v1074
      %v1225 = vunpack.c.l.b16 %v1075
      %v1226 = vunpack.c.l.b16 %v1076
      %v1227 = vunpack.c.l.b16 %v1077
      %v1228 = vunpack.c.l.b16 %v1078
      %v1229 = vunpack.c.l.b16 %v1079
      %v1230 = vunpack.c.l.b16 %v1080
      %v1231 = vunpack.c.l.b16 %v1081
      %v1232 = vunpack.c.l.b16 %v1082
      %v1233 = vunpack.c.l.b16 %v1083
      %v1234 = vunpack.c.l.b16 %v1084
      %v1235 = vpack.c.b16 %v1172, %v1171
      %v1236 = vpack.c.b16 %v1174, %v1173
      %v1237 = vpack.c.b16 %v1176, %v1175
      %v1238 = vpack.c.b16 %v1178, %v1177
      %v1239 = vpack.c.b16 %v1180, %v1179
      %v1240 = vpack.c.b16 %v1182, %v1181
      %v1241 = vpack.c.b16 %v1184, %v1183
      %v1242 = vpack.c.b16 %v1186, %v1185
      %v1243 = vpack.c.b16 %v1188, %v1187
      %v1244 = vpack.c.b16 %v1190, %v1189
      %v1245 = vpack.c.b16 %v1192, %v1191
      %v1246 = vpack.c.b16 %v1194, %v1193
      %v1247 = vpack.c.b16 %v1196, %v1195
      %v1248 = vpack.c.b16 %v1198, %v1197
      %v1249 = vpack.c.b16 %v1200, %v1199
      %v1250 = vpack.c.b16 %v1202, %v1201
      %v1251 = vpack.c.b16 %v1204, %v1203
      %v1252 = vpack.c.b16 %v1206, %v1205
      %v1253 = vpack.c.b16 %v1208, %v1207
      %v1254 = vpack.c.b16 %v1210, %v1209
      %v1255 = vpack.c.b16 %v1212, %v1211
      %v1256 = vpack.c.b16 %v1214, %v1213
      %v1257 = vpack.c.b16 %v1216, %v1215
      %v1258 = vpack.c.b16 %v1218, %v1217
      %v1259 = vpack.c.b16 %v1220, %v1219
      %v1260 = vpack.c.b16 %v1222, %v1221
      %v1261 = vpack.c.b16 %v1224, %v1223
      %v1262 = vpack.c.b16 %v1226, %v1225
      %v1263 = vpack.c.b16 %v1228, %v1227
      %v1264 = vpack.c.b16 %v1230, %v1229
      %v1265 = vpack.c.b16 %v1232, %v1231
      %v1266 = vpack.c.b16 %v1234, %v1233
      %1299 = vmatprep.subr.bf16.mxu0 0
      %1300 = vmatpush1.bf16.msra.mxu0 %v1235
      %1301 = vmatprep.subr.bf16.mxu0 0
      %1302 = vmatpush1.bf16.msra.mxu0 %v1236
      %1303 = vmatprep.subr.bf16.mxu0 0
      %1304 = vmatpush1.bf16.msra.mxu0 %v1237
      %1305 = vmatprep.subr.bf16.mxu0 0
      %1306 = vmatpush1.bf16.msra.mxu0 %v1238
      %1307 = vmatprep.subr.bf16.mxu0 0
      %1308 = vmatpush1.bf16.msra.mxu0 %v1239
      %1309 = vmatprep.subr.bf16.mxu0 0
      %1310 = vmatpush1.bf16.msra.mxu0 %v1240
      %1311 = vmatprep.subr.bf16.mxu0 0
      %1312 = vmatpush1.bf16.msra.mxu0 %v1241
      %1313 = vmatprep.subr.bf16.mxu0 0
      %1314 = vmatpush1.bf16.msra.mxu0 %v1242
      %1315 = vmatprep.subr.bf16.mxu0 0
      %1316 = vmatpush1.bf16.msra.mxu0 %v1243
      %1317 = vmatprep.subr.bf16.mxu0 0
      %1318 = vmatpush1.bf16.msra.mxu0 %v1244
      %1319 = vmatprep.subr.bf16.mxu0 0
      %1320 = vmatpush1.bf16.msra.mxu0 %v1245
      %1321 = vmatprep.subr.bf16.mxu0 0
      %1322 = vmatpush1.bf16.msra.mxu0 %v1246
      %1323 = vmatprep.subr.bf16.mxu0 0
      %1324 = vmatpush1.bf16.msra.mxu0 %v1247
      %1325 = vmatprep.subr.bf16.mxu0 0
      %1326 = vmatpush1.bf16.msra.mxu0 %v1248
      %1327 = vmatprep.subr.bf16.mxu0 0
      %1328 = vmatpush1.bf16.msra.mxu0 %v1249
      %1329 = vmatprep.subr.bf16.mxu0 0
      %1330 = vmatpush1.bf16.msra.mxu0 %v1250
      %1331 = vmatprep.mubr.bf16.mxu0 %v1101
      %1332 = vmatmul.mubr.bf16.gmra.mrb[0].mxu0 %v1093
      %v1333 = vpop.f32.mrb[0].mxu0
      %v1334 = vadd.f32 0.0, %v1333
      %v1335 = vpop.f32.mrb[0].mxu0
      %v1336 = vpop.f32.mrb[0].mxu0
      %v1337 = vpop.f32.mrb[0].mxu0
      %1338 = vdwg.mxu0
      %1339 = vmatprep.subr.bf16.mxu0 0
      %1340 = vmatpush1.bf16.msra.mxu0 %v1251
      %1341 = vmatprep.subr.bf16.mxu0 0
      %1342 = vmatpush1.bf16.msra.mxu0 %v1252
      %1343 = vmatprep.subr.bf16.mxu0 0
      %1344 = vmatpush1.bf16.msra.mxu0 %v1253
      %1345 = vmatprep.subr.bf16.mxu0 0
      %1346 = vmatpush1.bf16.msra.mxu0 %v1254
      %1347 = vmatprep.subr.bf16.mxu0 0
      %1348 = vmatpush1.bf16.msra.mxu0 %v1255
      %1349 = vmatprep.subr.bf16.mxu0 0
      %1350 = vmatpush1.bf16.msra.mxu0 %v1256
      %1351 = vmatprep.subr.bf16.mxu0 0
      %1352 = vmatpush1.bf16.msra.mxu0 %v1257
      %1353 = vmatprep.subr.bf16.mxu0 0
      %1354 = vmatpush1.bf16.msra.mxu0 %v1258
      %1355 = vmatprep.subr.bf16.mxu0 0
      %1356 = vmatpush1.bf16.msra.mxu0 %v1259
      %1357 = vmatprep.subr.bf16.mxu0 0
      %1358 = vmatpush1.bf16.msra.mxu0 %v1260
      %1359 = vmatprep.subr.bf16.mxu0 0
      %1360 = vmatpush1.bf16.msra.mxu0 %v1261
      %1361 = vmatprep.subr.bf16.mxu0 0
      %1362 = vmatpush1.bf16.msra.mxu0 %v1262
      %1363 = vmatprep.subr.bf16.mxu0 0
      %1364 = vmatpush1.bf16.msra.mxu0 %v1263
      %1365 = vmatprep.subr.bf16.mxu0 0
      %1366 = vmatpush1.bf16.msra.mxu0 %v1264
      %1367 = vmatprep.subr.bf16.mxu0 0
      %1368 = vmatpush1.bf16.msra.mxu0 %v1265
      %1369 = vmatprep.subr.bf16.mxu0 0
      %1370 = vmatpush1.bf16.msra.mxu0 %v1266
      %1371 = vmatprep.mubr.bf16.mxu0 %v1102
      %1372 = vmatmul.mubr.bf16.gmra.mrb[0].mxu0 %v1100
      %v1373 = vpop.f32.mrb[0].mxu0
      %v1374 = vadd.f32 %v1334, %v1373
      %v1375 = vpop.f32.mrb[0].mxu0
      %v1376 = vpop.f32.mrb[0].mxu0
      %v1377 = vpop.f32.mrb[0].mxu0
      %1378 = vdwg.mxu0
      %v1379 = vadd.f32 %v1014, %v1374
      %v1380 = vld [vmem:[%s262] sm:$0xff]
      %s1381 = scalar_lea.vmem %s2, 768
      %v1382 = vld [vmem:[%s1381] sm:$0xf]
      %v1383 = vld [vmem:[%s1381 + $0x4] sm:$0xf]
      %v1384 = vld [vmem:[%s1381 + $0x8] sm:$0xf]
      %v1385 = vld [vmem:[%s1381 + $0xc] sm:$0xf]
      %v1386 = vld [vmem:[%s1381 + $0x10] sm:$0xf]
      %v1387 = vld [vmem:[%s1381 + $0x14] sm:$0xf]
      %v1388 = vld [vmem:[%s1381 + $0x18] sm:$0xf]
      %v1389 = vld [vmem:[%s1381 + $0x1c] sm:$0xf]
      %v1390 = vld [vmem:[%s1381 + $0x20] sm:$0xf]
      %v1391 = vld [vmem:[%s1381 + $0x24] sm:$0xf]
      %v1392 = vld [vmem:[%s1381 + $0x28] sm:$0xf]
      %v1393 = vld [vmem:[%s1381 + $0x2c] sm:$0xf]
      %v1394 = vld [vmem:[%s1381 + $0x30] sm:$0xf]
      %v1395 = vld [vmem:[%s1381 + $0x34] sm:$0xf]
      %v1396 = vld [vmem:[%s1381 + $0x38] sm:$0xf]
      %v1397 = vld [vmem:[%s1381 + $0x3c] sm:$0xf]
      %v1398 = vld [vmem:[%s1381 + $0x40] sm:$0xf]
      %v1399 = vld [vmem:[%s1381 + $0x44] sm:$0xf]
      %v1400 = vld [vmem:[%s1381 + $0x48] sm:$0xf]
      %v1401 = vld [vmem:[%s1381 + $0x4c] sm:$0xf]
      %v1402 = vld [vmem:[%s1381 + $0x50] sm:$0xf]
      %v1403 = vld [vmem:[%s1381 + $0x54] sm:$0xf]
      %v1404 = vld [vmem:[%s1381 + $0x58] sm:$0xf]
      %v1405 = vld [vmem:[%s1381 + $0x5c] sm:$0xf]
      %v1406 = vld [vmem:[%s1381 + $0x60] sm:$0xf]
      %v1407 = vld [vmem:[%s1381 + $0x64] sm:$0xf]
      %v1408 = vld [vmem:[%s1381 + $0x68] sm:$0xf]
      %v1409 = vld [vmem:[%s1381 + $0x6c] sm:$0xf]
      %v1410 = vld [vmem:[%s1381 + $0x70] sm:$0xf]
      %v1411 = vld [vmem:[%s1381 + $0x74] sm:$0xf]
      %v1412 = vld [vmem:[%s1381 + $0x78] sm:$0xf]
      %v1413 = vld [vmem:[%s1381 + $0x7c] sm:$0xf]
      %v1414 = vld [vmem:[%s1381 + $0x80] sm:$0xf]
      %v1415 = vld [vmem:[%s1381 + $0x84] sm:$0xf]
      %v1416 = vld [vmem:[%s1381 + $0x88] sm:$0xf]
      %v1417 = vld [vmem:[%s1381 + $0x8c] sm:$0xf]
      %v1418 = vld [vmem:[%s1381 + $0x90] sm:$0xf]
      %v1419 = vld [vmem:[%s1381 + $0x94] sm:$0xf]
      %v1420 = vld [vmem:[%s1381 + $0x98] sm:$0xf]
      %v1421 = vld [vmem:[%s1381 + $0x9c] sm:$0xf]
      %v1422 = vld [vmem:[%s1381 + $0xa0] sm:$0xf]
      %v1423 = vld [vmem:[%s1381 + $0xa4] sm:$0xf]
      %v1424 = vld [vmem:[%s1381 + $0xa8] sm:$0xf]
      %v1425 = vld [vmem:[%s1381 + $0xac] sm:$0xf]
      %v1426 = vld [vmem:[%s1381 + $0xb0] sm:$0xf]
      %v1427 = vld [vmem:[%s1381 + $0xb4] sm:$0xf]
      %v1428 = vld [vmem:[%s1381 + $0xb8] sm:$0xf]
      %v1429 = vld [vmem:[%s1381 + $0xbc] sm:$0xf]
      %v1430 = vld [vmem:[%s1381 + $0xc0] sm:$0xf]
      %v1431 = vld [vmem:[%s1381 + $0xc4] sm:$0xf]
      %v1432 = vld [vmem:[%s1381 + $0xc8] sm:$0xf]
      %v1433 = vld [vmem:[%s1381 + $0xcc] sm:$0xf]
      %v1434 = vld [vmem:[%s1381 + $0xd0] sm:$0xf]
      %v1435 = vld [vmem:[%s1381 + $0xd4] sm:$0xf]
      %v1436 = vld [vmem:[%s1381 + $0xd8] sm:$0xf]
      %v1437 = vld [vmem:[%s1381 + $0xdc] sm:$0xf]
      %v1438 = vld [vmem:[%s1381 + $0xe0] sm:$0xf]
      %v1439 = vld [vmem:[%s1381 + $0xe4] sm:$0xf]
      %v1440 = vld [vmem:[%s1381 + $0xe8] sm:$0xf]
      %v1441 = vld [vmem:[%s1381 + $0xec] sm:$0xf]
      %v1442 = vld [vmem:[%s1381 + $0xf0] sm:$0xf]
      %v1443 = vld [vmem:[%s1381 + $0xf4] sm:$0xf]
      %v1444 = vld [vmem:[%s1381 + $0xf8] sm:$0xf]
      %v1445 = vld [vmem:[%s1381 + $0xfc] sm:$0xf]
      %v1447 = vcombine.high %v1380, %v1380
      %v1449 = vunpack.c.l.s4 1983009808
      %v1450 = vunpack.c.0.s8 %v1449
      %v1451 = vlaneseq
      %v1452 = vshrl.u32 %v1451, 7
      %v1453 = vsub.s32 %v1450, %v1452
      %v1454 = vrot.slane %v1380, %v1453
      %v1456 = vunpack.c.l.s4 1983009808
      %v1457 = vunpack.c.0.s8 %v1456
      %v1458 = vlaneseq
      %v1459 = vshrl.u32 %v1458, 7
      %v1460 = vsub.s32 %v1457, %v1459
      %v1461 = vrot.slane %v1447, %v1460
      %v1462 = vcombine.high %v1454, %v1454
      %v1463 = vcombine.high %v1461, %v1461
      %v1465 = vshrl.u32 %v1454, 16
      %v1467 = vshll.u32 %v1454, 16
      %v1469 = vrot.slane %v1467, 1
      %v1470 = vor.u32 %v1465, %v1469
      %v1472 = vshrl.u32 %v1462, 16
      %v1474 = vshll.u32 %v1462, 16
      %v1476 = vrot.slane %v1474, 1
      %v1477 = vor.u32 %v1472, %v1476
      %v1479 = vshrl.u32 %v1461, 16
      %v1481 = vshll.u32 %v1461, 16
      %v1483 = vrot.slane %v1481, 1
      %v1484 = vor.u32 %v1479, %v1483
      %v1486 = vshrl.u32 %v1463, 16
      %v1488 = vshll.u32 %v1463, 16
      %v1490 = vrot.slane %v1488, 1
      %v1491 = vor.u32 %v1486, %v1490
      %v1560 = vunpack.c.l.b16 %v1382
      %v1561 = vunpack.c.l.b16 %v1383
      %v1562 = vunpack.c.l.b16 %v1384
      %v1563 = vunpack.c.l.b16 %v1385
      %v1564 = vunpack.c.l.b16 %v1386
      %v1565 = vunpack.c.l.b16 %v1387
      %v1566 = vunpack.c.l.b16 %v1388
      %v1567 = vunpack.c.l.b16 %v1389
      %v1568 = vunpack.c.l.b16 %v1390
      %v1569 = vunpack.c.l.b16 %v1391
      %v1570 = vunpack.c.l.b16 %v1392
      %v1571 = vunpack.c.l.b16 %v1393
      %v1572 = vunpack.c.l.b16 %v1394
      %v1573 = vunpack.c.l.b16 %v1395
      %v1574 = vunpack.c.l.b16 %v1396
      %v1575 = vunpack.c.l.b16 %v1397
      %v1576 = vunpack.c.l.b16 %v1398
      %v1577 = vunpack.c.l.b16 %v1399
      %v1578 = vunpack.c.l.b16 %v1400
      %v1579 = vunpack.c.l.b16 %v1401
      %v1580 = vunpack.c.l.b16 %v1402
      %v1581 = vunpack.c.l.b16 %v1403
      %v1582 = vunpack.c.l.b16 %v1404
      %v1583 = vunpack.c.l.b16 %v1405
      %v1584 = vunpack.c.l.b16 %v1406
      %v1585 = vunpack.c.l.b16 %v1407
      %v1586 = vunpack.c.l.b16 %v1408
      %v1587 = vunpack.c.l.b16 %v1409
      %v1588 = vunpack.c.l.b16 %v1410
      %v1589 = vunpack.c.l.b16 %v1411
      %v1590 = vunpack.c.l.b16 %v1412
      %v1591 = vunpack.c.l.b16 %v1413
      %v1592 = vunpack.c.l.b16 %v1414
      %v1593 = vunpack.c.l.b16 %v1415
      %v1594 = vunpack.c.l.b16 %v1416
      %v1595 = vunpack.c.l.b16 %v1417
      %v1596 = vunpack.c.l.b16 %v1418
      %v1597 = vunpack.c.l.b16 %v1419
      %v1598 = vunpack.c.l.b16 %v1420
      %v1599 = vunpack.c.l.b16 %v1421
      %v1600 = vunpack.c.l.b16 %v1422
      %v1601 = vunpack.c.l.b16 %v1423
      %v1602 = vunpack.c.l.b16 %v1424
      %v1603 = vunpack.c.l.b16 %v1425
      %v1604 = vunpack.c.l.b16 %v1426
      %v1605 = vunpack.c.l.b16 %v1427
      %v1606 = vunpack.c.l.b16 %v1428
      %v1607 = vunpack.c.l.b16 %v1429
      %v1608 = vunpack.c.l.b16 %v1430
      %v1609 = vunpack.c.l.b16 %v1431
      %v1610 = vunpack.c.l.b16 %v1432
      %v1611 = vunpack.c.l.b16 %v1433
      %v1612 = vunpack.c.l.b16 %v1434
      %v1613 = vunpack.c.l.b16 %v1435
      %v1614 = vunpack.c.l.b16 %v1436
      %v1615 = vunpack.c.l.b16 %v1437
      %v1616 = vunpack.c.l.b16 %v1438
      %v1617 = vunpack.c.l.b16 %v1439
      %v1618 = vunpack.c.l.b16 %v1440
      %v1619 = vunpack.c.l.b16 %v1441
      %v1620 = vunpack.c.l.b16 %v1442
      %v1621 = vunpack.c.l.b16 %v1443
      %v1622 = vunpack.c.l.b16 %v1444
      %v1623 = vunpack.c.l.b16 %v1445
      %v1624 = vpack.c.b16 %v1561, %v1560
      %v1625 = vpack.c.b16 %v1563, %v1562
      %v1626 = vpack.c.b16 %v1565, %v1564
      %v1627 = vpack.c.b16 %v1567, %v1566
      %v1628 = vpack.c.b16 %v1569, %v1568
      %v1629 = vpack.c.b16 %v1571, %v1570
      %v1630 = vpack.c.b16 %v1573, %v1572
      %v1631 = vpack.c.b16 %v1575, %v1574
      %v1632 = vpack.c.b16 %v1577, %v1576
      %v1633 = vpack.c.b16 %v1579, %v1578
      %v1634 = vpack.c.b16 %v1581, %v1580
      %v1635 = vpack.c.b16 %v1583, %v1582
      %v1636 = vpack.c.b16 %v1585, %v1584
      %v1637 = vpack.c.b16 %v1587, %v1586
      %v1638 = vpack.c.b16 %v1589, %v1588
      %v1639 = vpack.c.b16 %v1591, %v1590
      %v1640 = vpack.c.b16 %v1593, %v1592
      %v1641 = vpack.c.b16 %v1595, %v1594
      %v1642 = vpack.c.b16 %v1597, %v1596
      %v1643 = vpack.c.b16 %v1599, %v1598
      %v1644 = vpack.c.b16 %v1601, %v1600
      %v1645 = vpack.c.b16 %v1603, %v1602
      %v1646 = vpack.c.b16 %v1605, %v1604
      %v1647 = vpack.c.b16 %v1607, %v1606
      %v1648 = vpack.c.b16 %v1609, %v1608
      %v1649 = vpack.c.b16 %v1611, %v1610
      %v1650 = vpack.c.b16 %v1613, %v1612
      %v1651 = vpack.c.b16 %v1615, %v1614
      %v1652 = vpack.c.b16 %v1617, %v1616
      %v1653 = vpack.c.b16 %v1619, %v1618
      %v1654 = vpack.c.b16 %v1621, %v1620
      %v1655 = vpack.c.b16 %v1623, %v1622
      %1688 = vmatprep.subr.bf16.mxu0 0
      %1689 = vmatpush1.bf16.msra.mxu0 %v1624
      %1690 = vmatprep.subr.bf16.mxu0 0
      %1691 = vmatpush1.bf16.msra.mxu0 %v1625
      %1692 = vmatprep.subr.bf16.mxu0 0
      %1693 = vmatpush1.bf16.msra.mxu0 %v1626
      %1694 = vmatprep.subr.bf16.mxu0 0
      %1695 = vmatpush1.bf16.msra.mxu0 %v1627
      %1696 = vmatprep.subr.bf16.mxu0 0
      %1697 = vmatpush1.bf16.msra.mxu0 %v1628
      %1698 = vmatprep.subr.bf16.mxu0 0
      %1699 = vmatpush1.bf16.msra.mxu0 %v1629
      %1700 = vmatprep.subr.bf16.mxu0 0
      %1701 = vmatpush1.bf16.msra.mxu0 %v1630
      %1702 = vmatprep.subr.bf16.mxu0 0
      %1703 = vmatpush1.bf16.msra.mxu0 %v1631
      %1704 = vmatprep.subr.bf16.mxu0 0
      %1705 = vmatpush1.bf16.msra.mxu0 %v1632
      %1706 = vmatprep.subr.bf16.mxu0 0
      %1707 = vmatpush1.bf16.msra.mxu0 %v1633
      %1708 = vmatprep.subr.bf16.mxu0 0
      %1709 = vmatpush1.bf16.msra.mxu0 %v1634
      %1710 = vmatprep.subr.bf16.mxu0 0
      %1711 = vmatpush1.bf16.msra.mxu0 %v1635
      %1712 = vmatprep.subr.bf16.mxu0 0
      %1713 = vmatpush1.bf16.msra.mxu0 %v1636
      %1714 = vmatprep.subr.bf16.mxu0 0
      %1715 = vmatpush1.bf16.msra.mxu0 %v1637
      %1716 = vmatprep.subr.bf16.mxu0 0
      %1717 = vmatpush1.bf16.msra.mxu0 %v1638
      %1718 = vmatprep.subr.bf16.mxu0 0
      %1719 = vmatpush1.bf16.msra.mxu0 %v1639
      %1720 = vmatprep.mubr.bf16.mxu0 %v1477
      %1721 = vmatmul.mubr.bf16.gmra.mrb[0].mxu0 %v1470
      %v1722 = vpop.f32.mrb[0].mxu0
      %v1723 = vadd.f32 0.0, %v1722
      %v1724 = vpop.f32.mrb[0].mxu0
      %v1725 = vpop.f32.mrb[0].mxu0
      %v1726 = vpop.f32.mrb[0].mxu0
      %1727 = vdwg.mxu0
      %1728 = vmatprep.subr.bf16.mxu0 0
      %1729 = vmatpush1.bf16.msra.mxu0 %v1640
      %1730 = vmatprep.subr.bf16.mxu0 0
      %1731 = vmatpush1.bf16.msra.mxu0 %v1641
      %1732 = vmatprep.subr.bf16.mxu0 0
      %1733 = vmatpush1.bf16.msra.mxu0 %v1642
      %1734 = vmatprep.subr.bf16.mxu0 0
      %1735 = vmatpush1.bf16.msra.mxu0 %v1643
      %1736 = vmatprep.subr.bf16.mxu0 0
      %1737 = vmatpush1.bf16.msra.mxu0 %v1644
      %1738 = vmatprep.subr.bf16.mxu0 0
      %1739 = vmatpush1.bf16.msra.mxu0 %v1645
      %1740 = vmatprep.subr.bf16.mxu0 0
      %1741 = vmatpush1.bf16.msra.mxu0 %v1646
      %1742 = vmatprep.subr.bf16.mxu0 0
      %1743 = vmatpush1.bf16.msra.mxu0 %v1647
      %1744 = vmatprep.subr.bf16.mxu0 0
      %1745 = vmatpush1.bf16.msra.mxu0 %v1648
      %1746 = vmatprep.subr.bf16.mxu0 0
      %1747 = vmatpush1.bf16.msra.mxu0 %v1649
      %1748 = vmatprep.subr.bf16.mxu0 0
      %1749 = vmatpush1.bf16.msra.mxu0 %v1650
      %1750 = vmatprep.subr.bf16.mxu0 0
      %1751 = vmatpush1.bf16.msra.mxu0 %v1651
      %1752 = vmatprep.subr.bf16.mxu0 0
      %1753 = vmatpush1.bf16.msra.mxu0 %v1652
      %1754 = vmatprep.subr.bf16.mxu0 0
      %1755 = vmatpush1.bf16.msra.mxu0 %v1653
      %1756 = vmatprep.subr.bf16.mxu0 0
      %1757 = vmatpush1.bf16.msra.mxu0 %v1654
      %1758 = vmatprep.subr.bf16.mxu0 0
      %1759 = vmatpush1.bf16.msra.mxu0 %v1655
      %1760 = vmatprep.mubr.bf16.mxu0 %v1491
      %1761 = vmatmul.mubr.bf16.gmra.mrb[0].mxu0 %v1484
      %v1762 = vpop.f32.mrb[0].mxu0
      %v1763 = vadd.f32 %v1723, %v1762
      %v1764 = vpop.f32.mrb[0].mxu0
      %v1765 = vpop.f32.mrb[0].mxu0
      %v1766 = vpop.f32.mrb[0].mxu0
      %1767 = vdwg.mxu0
      %v1768 = vadd.f32 %v1379, %v1763
      %v1769 = vld [vmem:[%s3] sm:$0x1]
      %v1771 = vlaneseq
      %v1772 = vshrl.u32 %v1771, 7
      %v1773 = vsub.s32 0, %v1772
      %v1774 = vrot.slane %v1769, %v1773
      %v1776 = vadd.f32 %v1768, %v1774
      %v1777 = vmax.f32 %v1776, 0.0
      %v1778 = vpack.c.bf16 %v1777, %v1777
      %1779 = vst [vmem:[%s270] sm:$0x1] %v1778
      %p1780 = scmp.lt.s32.totalorder %s19, 1
      %s1781 = scalar_select %p1780, %s19, 1
      %p1782 = scmp.lt.s32.totalorder %s20, 1
      %s1783 = scalar_select %p1782, %s20, 1
      %s1784 = smul.addr %s1781, 2
      %s1785 = sadd.s32 %s1783, %s1784
      %s1786 = scalar_lea.vmem %s4, %s1785
      // Predicated region
      $region37: #{_lambda_.6} parent=35 // pred_check
        %p1787 = pneg %p147
      $region38: #{_lambda_.6} parent=35 // pred_check_branch
        %1789 = sbr.rel (%p1787) target = $region40
      $region39: #{_lambda_.6} parent=35 // pred_region
        _
      $region40: #{_lambda_.6} parent=35 // pred_fallthru
        _
    $region36: #{_lambda_.6} parent=5 // pred_fallthru
      _
    %p1790 = scmp.le.s32.totalorder 2, %s10
    // Predicated region
    $region41: #{_lambda_.6} parent=5 // pred_check
      %p1791 = pneg %p1790
    $region42: #{_lambda_.6} parent=5 // pred_check_branch
      %1793 = sbr.rel (%p1791) target = $region44
    $region43: #{_lambda_.6} parent=5 // pred_region
      %s1794 = ssub.s32 %s10, 2
      // Predicated region
      $region45: #{_lambda_.6} parent=43 // pred_check
        %p1795 = pneg %p153
      $region46: #{_lambda_.6} parent=43 // pred_check_branch
        %1797 = sbr.rel (%p1795) target = $region48
      $region47: #{_lambda_.6} parent=43 // pred_region
        %p1798 = scmp.lt.s32.totalorder %s21, 1
        %s1799 = scalar_select %p1798, %s21, 1
        %p1800 = scmp.lt.s32.totalorder %s22, 1
        %s1801 = scalar_select %p1800, %s22, 1
        %s1802 = smul.addr %s1799, 2
        %s1803 = sadd.s32 %s1801, %s1802
        %s1804 = scalar_lea.vmem %s4, %s1803
      $region48: #{_lambda_.6} parent=43 // pred_fallthru
        _
    $region44: #{_lambda_.6} parent=5 // pred_fallthru
      _
  $region6: #{_lambda_.6} parent=0 // loop_footer
    %s14 = sadd.s32 1, %s10
  $region7: #{_lambda_.6} parent=0 // loop_footer_branch
    %9 = sbr.rel target = $region3
  $region8: #{_lambda_.6} parent=0 // loop_exit
    _

// kernel: _lambda_.7
$region0: #{_lambda_.7}
  #allocation0 [shape = 'u32[]', space=smem, size = 0x4, offset = 0x4, fixed_abs, tag = 'smem constant byte address 0x4 - core index']
  #allocation1 [shape = 'u32[144,128]{1,0:T(1,128)}', space=vmem, size = 0x12000, scoped, tag = 'internal scratch']
  %s0 = inlined_call_operand.vmem [shape: bf16[2,2,2,512], index: 0, kind: input, shape index: {}, may-alias: {0,1}]
  %s1 = inlined_call_operand.vmem [shape: bf16[2,2,2,512], index: 1, kind: input, shape index: {}, may-alias: {0,1}]
  %s2 = inlined_call_operand.vmem [shape: bf16[2,2,512,256], index: 2, kind: input, shape index: {}]
  %s3 = inlined_call_operand.vmem [shape: f32[1,256], index: 3, kind: input, shape index: {}]
  %s4 = inlined_call_operand.hbm [shape: f32[2,1,1,256], index: 4, kind: output, shape index: {}]
  %s5 = sld [smem:[#allocation0]]
  $region49: #{_lambda_.7} parent=0
    _
  %s7 = ssub.s32 1, %s5
  %s8 = scalar_select 0, %s7, %s5
  $region1: #{_lambda_.7} parent=0
    #allocation2 [shape = 'u8[2048]{0}', space=vmem, size = 0x800, scoped, tag = 'output window, operand 0']
    #allocation3 [shape = 's32[2]{0}', space=sflag, size = 0x8, scoped, tag = 'scoped memory for _lambda_.7']
    %9 = vsyncpa [#allocation3], 0
    %s10 = scalar_lea.sflag [#allocation3], 1
    %11 = vsyncpa %s10, 0
    loop: start=0, step=1, limit=4
    $region2: #{_lambda_.7} parent=1 // loop_pre_header
      _
    $region3: #{_lambda_.7} parent=1 // loop_header
      %s13 = sphi 0, %s17
      %p14 = scmp.ge.s32.totalorder %s13, 4
      %s20 = sphi 0, %s32
      %s21 = sphi 0, %s28
      %s22 = sphi 0, %s20
      %s23 = sphi 0, %s21
      %s24 = sphi 0, %s22
      %s25 = sphi 0, %s23
      %s37 = sphi 0, %s39
      %s40 = sphi 0, %s37
      %s41 = sphi 0, %s40
      %s57 = sphi 0, %s41
      %s67 = sphi 0, %s69
      %s70 = sphi 0, %s67
      %s71 = sphi 0, %s70
      %s87 = sphi 0, %s71
      %s91 = sphi 0, %s91
      %s93 = sphi 0, %s91
      %s94 = sphi 0, %s93
      %s108 = sphi 0, %s94
      %s112 = sphi 0, %s112
      %s114 = sphi 0, %s112
      %s115 = sphi 0, %s114
      %s129 = sphi 0, %s115
      %s137 = sphi 0, %s139
      %s140 = sphi 0, %s137
      %s141 = sphi 0, %s140
      %s157 = sphi 0, %s141
    $region4: #{_lambda_.7} parent=1 // loop_header_branch
      %16 = sbr.rel (%p14) target = $region8
    $region5: #{_lambda_.7} parent=1 // loop_body
      %s18 = ssub.s32 %s13, 1
      %s19 = ssub.s32 %s13, 2
      %s26 = sadd.s32 1, %s21
      %p27 = scmp.ge.s32.totalorder %s26, 1
      %s28 = scalar_select %p27, 0, %s26
      %s29 = sadd.s32 1, %s20
      %s30 = scalar_select %p27, %s29, %s20
      %p31 = scmp.ge.s32.totalorder %s30, 2
      %s32 = scalar_select %p31, 0, %s30
      %s33 = ssub.s32 %s20, %s32
      %s34 = ssub.s32 %s21, %s28
      %s35 = sor.u32 %s33, %s34
      %p36 = scmp.eq.s32.totalorder %s35, 0
      %s38 = sadd.s32 %s37, 1
      %s39 = scalar_select %p36, %s37, %s38
      %p42 = pneg %p36
      %p43 = scmp.eq.s32.totalorder %s13, 1
      %p44 = por %p42, %p43
      %p45 = scmp.ne.s32.totalorder %s37, %s40
      %p46 = scmp.eq.s32.totalorder %s13, 0
      %p47 = por %p45, %p46
      %p48 = scmp.ne.s32.totalorder %s37, %s40
      %p49 = scmp.eq.s32.totalorder %s18, 1
      %p50 = por %p48, %p49
      %p51 = scmp.ne.s32.totalorder %s40, %s41
      %p52 = scmp.eq.s32.totalorder %s18, 0
      %p53 = por %p51, %p52
      %p54 = scmp.ne.s32.totalorder %s40, %s41
      %p55 = scmp.eq.s32.totalorder %s19, 1
      %p56 = por %p54, %p55
      %p58 = scmp.ne.s32.totalorder %s41, %s57
      %p59 = scmp.eq.s32.totalorder %s19, 0
      %p60 = por %p58, %p59
      %s61 = sadd.s32 %s21, 1
      %s62 = sadd.s32 %s28, 1
      %s63 = ssub.s32 %s20, %s32
      %s64 = ssub.s32 %s61, %s62
      %s65 = sor.u32 %s63, %s64
      %p66 = scmp.eq.s32.totalorder %s65, 0
      %s68 = sadd.s32 %s67, 1
      %s69 = scalar_select %p66, %s67, %s68
      %p72 = pneg %p66
      %p73 = scmp.eq.s32.totalorder %s13, 1
      %p74 = por %p72, %p73
      %p75 = scmp.ne.s32.totalorder %s67, %s70
      %p76 = scmp.eq.s32.totalorder %s13, 0
      %p77 = por %p75, %p76
      %p78 = scmp.ne.s32.totalorder %s67, %s70
      %p79 = scmp.eq.s32.totalorder %s18, 1
      %p80 = por %p78, %p79
      %p81 = scmp.ne.s32.totalorder %s70, %s71
      %p82 = scmp.eq.s32.totalorder %s18, 0
      %p83 = por %p81, %p82
      %p84 = scmp.ne.s32.totalorder %s70, %s71
      %p85 = scmp.eq.s32.totalorder %s19, 1
      %p86 = por %p84, %p85
      %p88 = scmp.ne.s32.totalorder %s71, %s87
      %p89 = scmp.eq.s32.totalorder %s19, 0
      %p90 = por %p88, %p89
      %s92 = sadd.s32 %s91, 1
      %p95 = scmp.eq.s32.totalorder %s13, 1
      %p96 = scmp.ne.s32.totalorder %s91, %s93
      %p97 = scmp.eq.s32.totalorder %s13, 0
      %p98 = por %p96, %p97
      %p99 = scmp.ne.s32.totalorder %s91, %s93
      %p100 = scmp.eq.s32.totalorder %s18, 1
      %p101 = por %p99, %p100
      %p102 = scmp.ne.s32.totalorder %s93, %s94
      %p103 = scmp.eq.s32.totalorder %s18, 0
      %p104 = por %p102, %p103
      %p105 = scmp.ne.s32.totalorder %s93, %s94
      %p106 = scmp.eq.s32.totalorder %s19, 1
      %p107 = por %p105, %p106
      %p109 = scmp.ne.s32.totalorder %s94, %s108
      %p110 = scmp.eq.s32.totalorder %s19, 0
      %p111 = por %p109, %p110
      %s113 = sadd.s32 %s112, 1
      %p116 = scmp.eq.s32.totalorder %s13, 1
      %p117 = scmp.ne.s32.totalorder %s112, %s114
      %p118 = scmp.eq.s32.totalorder %s13, 0
      %p119 = por %p117, %p118
      %p120 = scmp.ne.s32.totalorder %s112, %s114
      %p121 = scmp.eq.s32.totalorder %s18, 1
      %p122 = por %p120, %p121
      %p123 = scmp.ne.s32.totalorder %s114, %s115
      %p124 = scmp.eq.s32.totalorder %s18, 0
      %p125 = por %p123, %p124
      %p126 = scmp.ne.s32.totalorder %s114, %s115
      %p127 = scmp.eq.s32.totalorder %s19, 1
      %p128 = por %p126, %p127
      %p130 = scmp.ne.s32.totalorder %s115, %s129
      %p131 = scmp.eq.s32.totalorder %s19, 0
      %p132 = por %p130, %p131
      %s133 = ssub.s32 %s20, %s32
      %s134 = ssub.s32 %s21, %s28
      %s135 = sor.u32 %s133, %s134
      %p136 = scmp.eq.s32.totalorder %s135, 0
      %s138 = sadd.s32 %s137, 1
      %s139 = scalar_select %p136, %s137, %s138
      %p142 = pneg %p136
      %p143 = scmp.eq.s32.totalorder %s13, 1
      %p144 = por %p142, %p143
      %p145 = scmp.ne.s32.totalorder %s137, %s140
      %p146 = scmp.eq.s32.totalorder %s13, 0
      %p147 = por %p145, %p146
      %p148 = scmp.ne.s32.totalorder %s137, %s140
      %p149 = scmp.eq.s32.totalorder %s18, 1
      %p150 = por %p148, %p149
      %p151 = scmp.ne.s32.totalorder %s140, %s141
      %p152 = scmp.eq.s32.totalorder %s18, 0
      %p153 = por %p151, %p152
      %p154 = scmp.ne.s32.totalorder %s140, %s141
      %p155 = scmp.eq.s32.totalorder %s19, 1
      %p156 = por %p154, %p155
      %p158 = scmp.ne.s32.totalorder %s141, %s157
      %p159 = scmp.eq.s32.totalorder %s19, 0
      %p160 = por %p158, %p159
      %p161 = scmp.le.s32.totalorder 1, %s13
      %p162 = scmp.lt.s32.totalorder %s13, 3
      %p163 = pnand %p161, %p162
      %p164 = pneg %p163
      // Predicated region
      $region9: #{_lambda_.7} parent=5 // pred_check
        _
      $region10: #{_lambda_.7} parent=5 // pred_check_branch
        %166 = sbr.rel (%p163) target = $region12
      $region11: #{_lambda_.7} parent=5 // pred_region
        %s167 = ssub.s32 %s13, 1
        // Predicated region
        $region13: #{_lambda_.7} parent=11 // pred_check
          %p168 = pneg %p104
        $region14: #{_lambda_.7} parent=11 // pred_check_branch
          %170 = sbr.rel (%p168) target = $region16
        $region15: #{_lambda_.7} parent=11 // pred_region
          _
        $region16: #{_lambda_.7} parent=11 // pred_fallthru
          _
        // Predicated region
        $region17: #{_lambda_.7} parent=11 // pred_check
          %p171 = pneg %p125
        $region18: #{_lambda_.7} parent=11 // pred_check_branch
          %173 = sbr.rel (%p171) target = $region20
        $region19: #{_lambda_.7} parent=11 // pred_region
          _
        $region20: #{_lambda_.7} parent=11 // pred_fallthru
          _
      $region12: #{_lambda_.7} parent=5 // pred_fallthru
        _
      %p174 = scmp.lt.s32.totalorder %s13, 2
      // Predicated region
      $region21: #{_lambda_.7} parent=5 // pred_check
        %p175 = pneg %p174
      $region22: #{_lambda_.7} parent=5 // pred_check_branch
        %177 = sbr.rel (%p175) target = $region24
      $region23: #{_lambda_.7} parent=5 // pred_region
        // Predicated region
        $region25: #{_lambda_.7} parent=23 // pred_check
          %p178 = pneg %p47
        $region26: #{_lambda_.7} parent=23 // pred_check_branch
          %180 = sbr.rel (%p178) target = $region28
        $region27: #{_lambda_.7} parent=23 // pred_region
          %p181 = scmp.lt.s32.totalorder %s20, 1
          %s182 = scalar_select %p181, %s20, 1
          %p183 = scmp.lt.s32.totalorder %s21, 1
          %s184 = scalar_select %p183, %s21, 1
          %s185 = smul.addr %s184, 4
          %s186 = smul.addr %s182, 8
          %s187 = sadd.s32 %s185, %s186
          %s188 = scalar_lea.vmem %s0, %s187
        $region28: #{_lambda_.7} parent=23 // pred_fallthru
          _
        // Predicated region
        $region29: #{_lambda_.7} parent=23 // pred_check
          %p189 = pneg %p77
        $region30: #{_lambda_.7} parent=23 // pred_check_branch
          %191 = sbr.rel (%p189) target = $region32
        $region31: #{_lambda_.7} parent=23 // pred_region
          %s192 = sadd.s32 %s21, 1
          %p193 = scmp.lt.s32.totalorder %s20, 1
          %s194 = scalar_select %p193, %s20, 1
          %p195 = scmp.lt.s32.totalorder %s192, 1
          %s196 = scalar_select %p195, %s192, 1
          %s197 = smul.addr %s196, 4
          %s198 = smul.addr %s194, 8
          %s199 = sadd.s32 %s197, %s198
          %s200 = scalar_lea.vmem %s1, %s199
          %s201 = sadd.s32 %s21, 1
        $region32: #{_lambda_.7} parent=23 // pred_fallthru
          _
      $region24: #{_lambda_.7} parent=5 // pred_fallthru
        _
      %p202 = scmp.le.s32.totalorder 1, %s13
      %p203 = scmp.lt.s32.totalorder %s13, 3
      %p204 = pnand %p202, %p203
      %p205 = pneg %p204
      // Predicated region
      $region33: #{_lambda_.7} parent=5 // pred_check
        _
      $region34: #{_lambda_.7} parent=5 // pred_check_branch
        %207 = sbr.rel (%p204) target = $region36
      $region35: #{_lambda_.7} parent=5 // pred_region
        %s208 = ssub.s32 %s13, 1
        %p209 = scmp.lt.s32.totalorder %s22, 1
        %s210 = scalar_select %p209, %s22, 1
        %p211 = scmp.lt.s32.totalorder %s23, 1
        %s212 = scalar_select %p211, %s23, 1
        %s213 = smul.addr %s212, 4
        %s214 = smul.addr %s210, 8
        %s215 = sadd.s32 %s213, %s214
        %s216 = scalar_lea.vmem %s0, %s215
        %p217 = pneg %p53
        %p218 = pneg %p50
        %s219 = sadd.s32 %s23, 1
        %p220 = scmp.lt.s32.totalorder %s22, 1
        %s221 = scalar_select %p220, %s22, 1
        %p222 = scmp.lt.s32.totalorder %s219, 1
        %s223 = scalar_select %p222, %s219, 1
        %s224 = smul.addr %s223, 4
        %s225 = smul.addr %s221, 8
        %s226 = sadd.s32 %s224, %s225
        %s227 = scalar_lea.vmem %s1, %s226
        %p228 = pneg %p83
        %p229 = pneg %p80
        %p230 = pneg %p104
        %p231 = pneg %p101
        %p232 = pneg %p125
        %p233 = pneg %p122
        %p234 = pneg %p153
        %p235 = pneg %p150
        %s236 = sand.u32 %s140, 1
        %s237 = scalar_lea.sflag [#allocation3], %s236
        %s238 = sand.u32 %s140, 1
        %s239 = smul.addr %s238, 2
        %s240 = scalar_lea.vmem [#allocation2], %s239
        %p241 = scmp.lt.s32.totalorder %s22, 1
        %s242 = scalar_select %p241, %s22, 1
        %p243 = scmp.lt.s32.totalorder %s23, 1
        %s244 = scalar_select %p243, %s23, 1
        %s245 = smul.addr %s244, 4
        %s246 = smul.addr %s242, 8
        %s247 = sadd.s32 %s245, %s246
        %s248 = scalar_lea.vmem %s0, %s247
        %s249 = sadd.s32 %s23, 1
        %p250 = scmp.lt.s32.totalorder %s22, 1
        %s251 = scalar_select %p250, %s22, 1
        %p252 = scmp.lt.s32.totalorder %s249, 1
        %s253 = scalar_select %p252, %s249, 1
        %s254 = smul.addr %s253, 4
        %s255 = smul.addr %s251, 8
        %s256 = sadd.s32 %s254, %s255
        %s257 = scalar_lea.vmem %s1, %s256
        %s258 = sadd.s32 %s23, 1
        %v259 = vld [vmem:[%s248] sm:$0xf]
        %v260 = vld [vmem:[%s2] sm:$0xff]
        %v261 = vld [vmem:[%s2 + $0x8] sm:$0xff]
        %v262 = vld [vmem:[%s2 + $0x10] sm:$0xff]
        %v263 = vld [vmem:[%s2 + $0x18] sm:$0xff]
        %v264 = vld [vmem:[%s2 + $0x20] sm:$0xff]
        %v265 = vld [vmem:[%s2 + $0x28] sm:$0xff]
        %v266 = vld [vmem:[%s2 + $0x30] sm:$0xff]
        %v267 = vld [vmem:[%s2 + $0x38] sm:$0xff]
        %v268 = vld [vmem:[%s2 + $0x40] sm:$0xff]
        %v269 = vld [vmem:[%s2 + $0x48] sm:$0xff]
        %v270 = vld [vmem:[%s2 + $0x50] sm:$0xff]
        %v271 = vld [vmem:[%s2 + $0x58] sm:$0xff]
        %v272 = vld [vmem:[%s2 + $0x60] sm:$0xff]
        %v273 = vld [vmem:[%s2 + $0x68] sm:$0xff]
        %v274 = vld [vmem:[%s2 + $0x70] sm:$0xff]
        %v275 = vld [vmem:[%s2 + $0x78] sm:$0xff]
        %v276 = vld [vmem:[%s2 + $0x80] sm:$0xff]
        %v277 = vld [vmem:[%s2 + $0x88] sm:$0xff]
        %v278 = vld [vmem:[%s2 + $0x90] sm:$0xff]
        %v279 = vld [vmem:[%s2 + $0x98] sm:$0xff]
        %v280 = vld [vmem:[%s2 + $0xa0] sm:$0xff]
        %v281 = vld [vmem:[%s2 + $0xa8] sm:$0xff]
        %v282 = vld [vmem:[%s2 + $0xb0] sm:$0xff]
        %v283 = vld [vmem:[%s2 + $0xb8] sm:$0xff]
        %v284 = vld [vmem:[%s2 + $0xc0] sm:$0xff]
        %v285 = vld [vmem:[%s2 + $0xc8] sm:$0xff]
        %v286 = vld [vmem:[%s2 + $0xd0] sm:$0xff]
        %v287 = vld [vmem:[%s2 + $0xd8] sm:$0xff]
        %v288 = vld [vmem:[%s2 + $0xe0] sm:$0xff]
        %v289 = vld [vmem:[%s2 + $0xe8] sm:$0xff]
        %v290 = vld [vmem:[%s2 + $0xf0] sm:$0xff]
        %v291 = vld [vmem:[%s2 + $0xf8] sm:$0xff]
        %v292 = vld [vmem:[%s2 + $0x100] sm:$0xff]
        %v293 = vld [vmem:[%s2 + $0x108] sm:$0xff]
        %v294 = vld [vmem:[%s2 + $0x110] sm:$0xff]
        %v295 = vld [vmem:[%s2 + $0x118] sm:$0xff]
        %v296 = vld [vmem:[%s2 + $0x120] sm:$0xff]
        %v297 = vld [vmem:[%s2 + $0x128] sm:$0xff]
        %v298 = vld [vmem:[%s2 + $0x130] sm:$0xff]
        %v299 = vld [vmem:[%s2 + $0x138] sm:$0xff]
        %v300 = vld [vmem:[%s2 + $0x140] sm:$0xff]
        %v301 = vld [vmem:[%s2 + $0x148] sm:$0xff]
        %v302 = vld [vmem:[%s2 + $0x150] sm:$0xff]
        %v303 = vld [vmem:[%s2 + $0x158] sm:$0xff]
        %v304 = vld [vmem:[%s2 + $0x160] sm:$0xff]
        %v305 = vld [vmem:[%s2 + $0x168] sm:$0xff]
        %v306 = vld [vmem:[%s2 + $0x170] sm:$0xff]
        %v307 = vld [vmem:[%s2 + $0x178] sm:$0xff]
        %v308 = vld [vmem:[%s2 + $0x180] sm:$0xff]
        %v309 = vld [vmem:[%s2 + $0x188] sm:$0xff]
        %v310 = vld [vmem:[%s2 + $0x190] sm:$0xff]
        %v311 = vld [vmem:[%s2 + $0x198] sm:$0xff]
        %v312 = vld [vmem:[%s2 + $0x1a0] sm:$0xff]
        %v313 = vld [vmem:[%s2 + $0x1a8] sm:$0xff]
        %v314 = vld [vmem:[%s2 + $0x1b0] sm:$0xff]
        %v315 = vld [vmem:[%s2 + $0x1b8] sm:$0xff]
        %v316 = vld [vmem:[%s2 + $0x1c0] sm:$0xff]
        %v317 = vld [vmem:[%s2 + $0x1c8] sm:$0xff]
        %v318 = vld [vmem:[%s2 + $0x1d0] sm:$0xff]
        %v319 = vld [vmem:[%s2 + $0x1d8] sm:$0xff]
        %v320 = vld [vmem:[%s2 + $0x1e0] sm:$0xff]
        %v321 = vld [vmem:[%s2 + $0x1e8] sm:$0xff]
        %v322 = vld [vmem:[%s2 + $0x1f0] sm:$0xff]
        %v323 = vld [vmem:[%s2 + $0x1f8] sm:$0xff]
        %s324 = scalar_lea.vmem %s2, 512
        %v325 = vld [vmem:[%s324] sm:$0xff]
        %v326 = vld [vmem:[%s324 + $0x8] sm:$0xff]
        %v327 = vld [vmem:[%s324 + $0x10] sm:$0xff]
        %v328 = vld [vmem:[%s324 + $0x18] sm:$0xff]
        %v329 = vld [vmem:[%s324 + $0x20] sm:$0xff]
        %v330 = vld [vmem:[%s324 + $0x28] sm:$0xff]
        %v331 = vld [vmem:[%s324 + $0x30] sm:$0xff]
        %v332 = vld [vmem:[%s324 + $0x38] sm:$0xff]
        %v333 = vld [vmem:[%s324 + $0x40] sm:$0xff]
        %v334 = vld [vmem:[%s324 + $0x48] sm:$0xff]
        %v335 = vld [vmem:[%s324 + $0x50] sm:$0xff]
        %v336 = vld [vmem:[%s324 + $0x58] sm:$0xff]
        %v337 = vld [vmem:[%s324 + $0x60] sm:$0xff]
        %v338 = vld [vmem:[%s324 + $0x68] sm:$0xff]
        %v339 = vld [vmem:[%s324 + $0x70] sm:$0xff]
        %v340 = vld [vmem:[%s324 + $0x78] sm:$0xff]
        %v341 = vld [vmem:[%s324 + $0x80] sm:$0xff]
        %v342 = vld [vmem:[%s324 + $0x88] sm:$0xff]
        %v343 = vld [vmem:[%s324 + $0x90] sm:$0xff]
        %v344 = vld [vmem:[%s324 + $0x98] sm:$0xff]
        %v345 = vld [vmem:[%s324 + $0xa0] sm:$0xff]
        %v346 = vld [vmem:[%s324 + $0xa8] sm:$0xff]
        %v347 = vld [vmem:[%s324 + $0xb0] sm:$0xff]
        %v348 = vld [vmem:[%s324 + $0xb8] sm:$0xff]
        %v349 = vld [vmem:[%s324 + $0xc0] sm:$0xff]
        %v350 = vld [vmem:[%s324 + $0xc8] sm:$0xff]
        %v351 = vld [vmem:[%s324 + $0xd0] sm:$0xff]
        %v352 = vld [vmem:[%s324 + $0xd8] sm:$0xff]
        %v353 = vld [vmem:[%s324 + $0xe0] sm:$0xff]
        %v354 = vld [vmem:[%s324 + $0xe8] sm:$0xff]
        %v355 = vld [vmem:[%s324 + $0xf0] sm:$0xff]
        %v356 = vld [vmem:[%s324 + $0xf8] sm:$0xff]
        %v357 = vld [vmem:[%s324 + $0x100] sm:$0xff]
        %v358 = vld [vmem:[%s324 + $0x108] sm:$0xff]
        %v359 = vld [vmem:[%s324 + $0x110] sm:$0xff]
        %v360 = vld [vmem:[%s324 + $0x118] sm:$0xff]
        %v361 = vld [vmem:[%s324 + $0x120] sm:$0xff]
        %v362 = vld [vmem:[%s324 + $0x128] sm:$0xff]
        %v363 = vld [vmem:[%s324 + $0x130] sm:$0xff]
        %v364 = vld [vmem:[%s324 + $0x138] sm:$0xff]
        %v365 = vld [vmem:[%s324 + $0x140] sm:$0xff]
        %v366 = vld [vmem:[%s324 + $0x148] sm:$0xff]
        %v367 = vld [vmem:[%s324 + $0x150] sm:$0xff]
        %v368 = vld [vmem:[%s324 + $0x158] sm:$0xff]
        %v369 = vld [vmem:[%s324 + $0x160] sm:$0xff]
        %v370 = vld [vmem:[%s324 + $0x168] sm:$0xff]
        %v371 = vld [vmem:[%s324 + $0x170] sm:$0xff]
        %v372 = vld [vmem:[%s324 + $0x178] sm:$0xff]
        %v373 = vld [vmem:[%s324 + $0x180] sm:$0xff]
        %v374 = vld [vmem:[%s324 + $0x188] sm:$0xff]
        %v375 = vld [vmem:[%s324 + $0x190] sm:$0xff]
        %v376 = vld [vmem:[%s324 + $0x198] sm:$0xff]
        %v377 = vld [vmem:[%s324 + $0x1a0] sm:$0xff]
        %v378 = vld [vmem:[%s324 + $0x1a8] sm:$0xff]
        %v379 = vld [vmem:[%s324 + $0x1b0] sm:$0xff]
        %v380 = vld [vmem:[%s324 + $0x1b8] sm:$0xff]
        %v381 = vld [vmem:[%s324 + $0x1c0] sm:$0xff]
        %v382 = vld [vmem:[%s324 + $0x1c8] sm:$0xff]
        %v383 = vld [vmem:[%s324 + $0x1d0] sm:$0xff]
        %v384 = vld [vmem:[%s324 + $0x1d8] sm:$0xff]
        %v385 = vld [vmem:[%s324 + $0x1e0] sm:$0xff]
        %v386 = vld [vmem:[%s324 + $0x1e8] sm:$0xff]
        %v387 = vld [vmem:[%s324 + $0x1f0] sm:$0xff]
        %v388 = vld [vmem:[%s324 + $0x1f8] sm:$0xff]
        %v391 = vunpack.c.l.s4 1966171168
        %v392 = vunpack.c.0.s8 %v391
        %v393 = vlaneseq
        %v394 = vshrl.u32 %v393, 7
        %v395 = vsub.s32 %v392, %v394
        %v396 = vrot.slane %v259, %v395
        %v397 = vcombine.high %v396, %v396
        %v399 = vunpack.c.l.s4 1966171168
        %v400 = vunpack.c.0.s8 %v399
        %v401 = vlaneseq
        %v402 = vshrl.u32 %v401, 7
        %v403 = vsub.s32 %v400, %v402
        %v404 = vrot.slane %v396, %v403
        %v406 = vunpack.c.l.s4 1966171168
        %v407 = vunpack.c.0.s8 %v406
        %v408 = vlaneseq
        %v409 = vshrl.u32 %v408, 7
        %v410 = vsub.s32 %v407, %v409
        %v411 = vrot.slane %v397, %v410
        %v412 = vcombine.high %v404, %v404
        %v413 = vcombine.high %v411, %v411
        %v415 = vshrl.u32 %v404, 16
        %v418 = vshrl.u32 %v411, 16
        %v421 = vshrl.u32 %v412, 16
        %v424 = vshrl.u32 %v413, 16
        %v494 = vunpack.c.l.b16 %v325
        %v495 = vunpack.c.h.b16 %v325
        %v496 = vunpack.c.l.b16 %v326
        %v497 = vunpack.c.h.b16 %v326
        %v498 = vunpack.c.l.b16 %v327
        %v499 = vunpack.c.h.b16 %v327
        %v500 = vunpack.c.l.b16 %v328
        %v501 = vunpack.c.h.b16 %v328
        %v502 = vunpack.c.l.b16 %v329
        %v503 = vunpack.c.h.b16 %v329
        %v504 = vunpack.c.l.b16 %v330
        %v505 = vunpack.c.h.b16 %v330
        %v506 = vunpack.c.l.b16 %v331
        %v507 = vunpack.c.h.b16 %v331
        %v508 = vunpack.c.l.b16 %v332
        %v509 = vunpack.c.h.b16 %v332
        %v510 = vunpack.c.l.b16 %v333
        %v511 = vunpack.c.h.b16 %v333
        %v512 = vunpack.c.l.b16 %v334
        %v513 = vunpack.c.h.b16 %v334
        %v514 = vunpack.c.l.b16 %v335
        %v515 = vunpack.c.h.b16 %v335
        %v516 = vunpack.c.l.b16 %v336
        %v517 = vunpack.c.h.b16 %v336
        %v518 = vunpack.c.l.b16 %v337
        %v519 = vunpack.c.h.b16 %v337
        %v520 = vunpack.c.l.b16 %v338
        %v521 = vunpack.c.h.b16 %v338
        %v522 = vunpack.c.l.b16 %v339
        %v523 = vunpack.c.h.b16 %v339
        %v524 = vunpack.c.l.b16 %v340
        %v525 = vunpack.c.h.b16 %v340
        %v526 = vunpack.c.l.b16 %v341
        %v527 = vunpack.c.h.b16 %v341
        %v528 = vunpack.c.l.b16 %v342
        %v529 = vunpack.c.h.b16 %v342
        %v530 = vunpack.c.l.b16 %v343
        %v531 = vunpack.c.h.b16 %v343
        %v532 = vunpack.c.l.b16 %v344
        %v533 = vunpack.c.h.b16 %v344
        %v534 = vunpack.c.l.b16 %v345
        %v535 = vunpack.c.h.b16 %v345
        %v536 = vunpack.c.l.b16 %v346
        %v537 = vunpack.c.h.b16 %v346
        %v538 = vunpack.c.l.b16 %v347
        %v539 = vunpack.c.h.b16 %v347
        %v540 = vunpack.c.l.b16 %v348
        %v541 = vunpack.c.h.b16 %v348
        %v542 = vunpack.c.l.b16 %v349
        %v543 = vunpack.c.h.b16 %v349
        %v544 = vunpack.c.l.b16 %v350
        %v545 = vunpack.c.h.b16 %v350
        %v546 = vunpack.c.l.b16 %v351
        %v547 = vunpack.c.h.b16 %v351
        %v548 = vunpack.c.l.b16 %v352
        %v549 = vunpack.c.h.b16 %v352
        %v550 = vunpack.c.l.b16 %v353
        %v551 = vunpack.c.h.b16 %v353
        %v552 = vunpack.c.l.b16 %v354
        %v553 = vunpack.c.h.b16 %v354
        %v554 = vunpack.c.l.b16 %v355
        %v555 = vunpack.c.h.b16 %v355
        %v556 = vunpack.c.l.b16 %v356
        %v557 = vunpack.c.h.b16 %v356
        %v558 = vunpack.c.l.b16 %v357
        %v559 = vunpack.c.h.b16 %v357
        %v560 = vunpack.c.l.b16 %v358
        %v561 = vunpack.c.h.b16 %v358
        %v562 = vunpack.c.l.b16 %v359
        %v563 = vunpack.c.h.b16 %v359
        %v564 = vunpack.c.l.b16 %v360
        %v565 = vunpack.c.h.b16 %v360
        %v566 = vunpack.c.l.b16 %v361
        %v567 = vunpack.c.h.b16 %v361
        %v568 = vunpack.c.l.b16 %v362
        %v569 = vunpack.c.h.b16 %v362
        %v570 = vunpack.c.l.b16 %v363
        %v571 = vunpack.c.h.b16 %v363
        %v572 = vunpack.c.l.b16 %v364
        %v573 = vunpack.c.h.b16 %v364
        %v574 = vunpack.c.l.b16 %v365
        %v575 = vunpack.c.h.b16 %v365
        %v576 = vunpack.c.l.b16 %v366
        %v577 = vunpack.c.h.b16 %v366
        %v578 = vunpack.c.l.b16 %v367
        %v579 = vunpack.c.h.b16 %v367
        %v580 = vunpack.c.l.b16 %v368
        %v581 = vunpack.c.h.b16 %v368
        %v582 = vunpack.c.l.b16 %v369
        %v583 = vunpack.c.h.b16 %v369
        %v584 = vunpack.c.l.b16 %v370
        %v585 = vunpack.c.h.b16 %v370
        %v586 = vunpack.c.l.b16 %v371
        %v587 = vunpack.c.h.b16 %v371
        %v588 = vunpack.c.l.b16 %v372
        %v589 = vunpack.c.h.b16 %v372
        %v590 = vunpack.c.l.b16 %v373
        %v591 = vunpack.c.h.b16 %v373
        %v592 = vunpack.c.l.b16 %v374
        %v593 = vunpack.c.h.b16 %v374
        %v594 = vunpack.c.l.b16 %v375
        %v595 = vunpack.c.h.b16 %v375
        %v596 = vunpack.c.l.b16 %v376
        %v597 = vunpack.c.h.b16 %v376
        %v598 = vunpack.c.l.b16 %v377
        %v599 = vunpack.c.h.b16 %v377
        %v600 = vunpack.c.l.b16 %v378
        %v601 = vunpack.c.h.b16 %v378
        %v602 = vunpack.c.l.b16 %v379
        %v603 = vunpack.c.h.b16 %v379
        %v604 = vunpack.c.l.b16 %v380
        %v605 = vunpack.c.h.b16 %v380
        %v606 = vunpack.c.l.b16 %v381
        %v607 = vunpack.c.h.b16 %v381
        %v608 = vunpack.c.l.b16 %v382
        %v609 = vunpack.c.h.b16 %v382
        %v610 = vunpack.c.l.b16 %v383
        %v611 = vunpack.c.h.b16 %v383
        %v612 = vunpack.c.l.b16 %v384
        %v613 = vunpack.c.h.b16 %v384
        %v614 = vunpack.c.l.b16 %v385
        %v615 = vunpack.c.h.b16 %v385
        %v616 = vunpack.c.l.b16 %v386
        %v617 = vunpack.c.h.b16 %v386
        %v618 = vunpack.c.l.b16 %v387
        %v619 = vunpack.c.h.b16 %v387
        %v620 = vunpack.c.l.b16 %v388
        %v621 = vunpack.c.h.b16 %v388
        %v622 = vpack.c.b16 %v496, %v494
        %v623 = vpack.c.b16 %v497, %v495
        %v624 = vpack.c.b16 %v500, %v498
        %v625 = vpack.c.b16 %v501, %v499
        %v626 = vpack.c.b16 %v504, %v502
        %v627 = vpack.c.b16 %v505, %v503
        %v628 = vpack.c.b16 %v508, %v506
        %v629 = vpack.c.b16 %v509, %v507
        %v630 = vpack.c.b16 %v512, %v510
        %v631 = vpack.c.b16 %v513, %v511
        %v632 = vpack.c.b16 %v516, %v514
        %v633 = vpack.c.b16 %v517, %v515
        %v634 = vpack.c.b16 %v520, %v518
        %v635 = vpack.c.b16 %v521, %v519
        %v636 = vpack.c.b16 %v524, %v522
        %v637 = vpack.c.b16 %v525, %v523
        %v638 = vpack.c.b16 %v528, %v526
        %v639 = vpack.c.b16 %v529, %v527
        %v640 = vpack.c.b16 %v532, %v530
        %v641 = vpack.c.b16 %v533, %v531
        %v642 = vpack.c.b16 %v536, %v534
        %v643 = vpack.c.b16 %v537, %v535
        %v644 = vpack.c.b16 %v540, %v538
        %v645 = vpack.c.b16 %v541, %v539
        %v646 = vpack.c.b16 %v544, %v542
        %v647 = vpack.c.b16 %v545, %v543
        %v648 = vpack.c.b16 %v548, %v546
        %v649 = vpack.c.b16 %v549, %v547
        %v650 = vpack.c.b16 %v552, %v550
        %v651 = vpack.c.b16 %v553, %v551
        %v652 = vpack.c.b16 %v556, %v554
        %v653 = vpack.c.b16 %v557, %v555
        %v654 = vpack.c.b16 %v560, %v558
        %v655 = vpack.c.b16 %v561, %v559
        %v656 = vpack.c.b16 %v564, %v562
        %v657 = vpack.c.b16 %v565, %v563
        %v658 = vpack.c.b16 %v568, %v566
        %v659 = vpack.c.b16 %v569, %v567
        %v660 = vpack.c.b16 %v572, %v570
        %v661 = vpack.c.b16 %v573, %v571
        %v662 = vpack.c.b16 %v576, %v574
        %v663 = vpack.c.b16 %v577, %v575
        %v664 = vpack.c.b16 %v580, %v578
        %v665 = vpack.c.b16 %v581, %v579
        %v666 = vpack.c.b16 %v584, %v582
        %v667 = vpack.c.b16 %v585, %v583
        %v668 = vpack.c.b16 %v588, %v586
        %v669 = vpack.c.b16 %v589, %v587
        %v670 = vpack.c.b16 %v592, %v590
        %v671 = vpack.c.b16 %v593, %v591
        %v672 = vpack.c.b16 %v596, %v594
        %v673 = vpack.c.b16 %v597, %v595
        %v674 = vpack.c.b16 %v600, %v598
        %v675 = vpack.c.b16 %v601, %v599
        %v676 = vpack.c.b16 %v604, %v602
        %v677 = vpack.c.b16 %v605, %v603
        %v678 = vpack.c.b16 %v608, %v606
        %v679 = vpack.c.b16 %v609, %v607
        %v680 = vpack.c.b16 %v612, %v610
        %v681 = vpack.c.b16 %v613, %v611
        %v682 = vpack.c.b16 %v616, %v614
        %v683 = vpack.c.b16 %v617, %v615
        %v684 = vpack.c.b16 %v620, %v618
        %v685 = vpack.c.b16 %v621, %v619
        %750 = vmatprep.subr.bf16.mxu0 %v623
        %751 = vmatpush1.bf16.msra.mxu0 %v622
        %752 = vmatprep.subr.bf16.mxu0 %v625
        %753 = vmatpush1.bf16.msra.mxu0 %v624
        %754 = vmatprep.subr.bf16.mxu0 %v627
        %755 = vmatpush1.bf16.msra.mxu0 %v626
        %756 = vmatprep.subr.bf16.mxu0 %v629
        %757 = vmatpush1.bf16.msra.mxu0 %v628
        %758 = vmatprep.subr.bf16.mxu0 %v631
        %759 = vmatpush1.bf16.msra.mxu0 %v630
        %760 = vmatprep.subr.bf16.mxu0 %v633
        %761 = vmatpush1.bf16.msra.mxu0 %v632
        %762 = vmatprep.subr.bf16.mxu0 %v635
        %763 = vmatpush1.bf16.msra.mxu0 %v634
        %764 = vmatprep.subr.bf16.mxu0 %v637
        %765 = vmatpush1.bf16.msra.mxu0 %v636
        %766 = vmatprep.subr.bf16.mxu0 %v639
        %767 = vmatpush1.bf16.msra.mxu0 %v638
        %768 = vmatprep.subr.bf16.mxu0 %v641
        %769 = vmatpush1.bf16.msra.mxu0 %v640
        %770 = vmatprep.subr.bf16.mxu0 %v643
        %771 = vmatpush1.bf16.msra.mxu0 %v642
        %772 = vmatprep.subr.bf16.mxu0 %v645
        %773 = vmatpush1.bf16.msra.mxu0 %v644
        %774 = vmatprep.subr.bf16.mxu0 %v647
        %775 = vmatpush1.bf16.msra.mxu0 %v646
        %776 = vmatprep.subr.bf16.mxu0 %v649
        %777 = vmatpush1.bf16.msra.mxu0 %v648
        %778 = vmatprep.subr.bf16.mxu0 %v651
        %779 = vmatpush1.bf16.msra.mxu0 %v650
        %780 = vmatprep.subr.bf16.mxu0 %v653
        %781 = vmatpush1.bf16.msra.mxu0 %v652
        %782 = vmatprep.mubr.bf16.mxu0 %v418
        %783 = vmatmul.mubr.bf16.gmra.mrb[0].mxu0 %v415
        %v784 = vpop.f32.mrb[0].mxu0
        %v785 = vadd.f32 0.0, %v784
        %v786 = vpop.f32.mrb[0].mxu0
        %v787 = vadd.f32 0.0, %v786
        %v788 = vpop.f32.mrb[0].mxu0
        %v789 = vpop.f32.mrb[0].mxu0
        %790 = vdwg.mxu0
        %791 = vmatprep.subr.bf16.mxu0 %v655
        %792 = vmatpush1.bf16.msra.mxu0 %v654
        %793 = vmatprep.subr.bf16.mxu0 %v657
        %794 = vmatpush1.bf16.msra.mxu0 %v656
        %795 = vmatprep.subr.bf16.mxu0 %v659
        %796 = vmatpush1.bf16.msra.mxu0 %v658
        %797 = vmatprep.subr.bf16.mxu0 %v661
        %798 = vmatpush1.bf16.msra.mxu0 %v660
        %799 = vmatprep.subr.bf16.mxu0 %v663
        %800 = vmatpush1.bf16.msra.mxu0 %v662
        %801 = vmatprep.subr.bf16.mxu0 %v665
        %802 = vmatpush1.bf16.msra.mxu0 %v664
        %803 = vmatprep.subr.bf16.mxu0 %v667
        %804 = vmatpush1.bf16.msra.mxu0 %v666
        %805 = vmatprep.subr.bf16.mxu0 %v669
        %806 = vmatpush1.bf16.msra.mxu0 %v668
        %807 = vmatprep.subr.bf16.mxu0 %v671
        %808 = vmatpush1.bf16.msra.mxu0 %v670
        %809 = vmatprep.subr.bf16.mxu0 %v673
        %810 = vmatpush1.bf16.msra.mxu0 %v672
        %811 = vmatprep.subr.bf16.mxu0 %v675
        %812 = vmatpush1.bf16.msra.mxu0 %v674
        %813 = vmatprep.subr.bf16.mxu0 %v677
        %814 = vmatpush1.bf16.msra.mxu0 %v676
        %815 = vmatprep.subr.bf16.mxu0 %v679
        %816 = vmatpush1.bf16.msra.mxu0 %v678
        %817 = vmatprep.subr.bf16.mxu0 %v681
        %818 = vmatpush1.bf16.msra.mxu0 %v680
        %819 = vmatprep.subr.bf16.mxu0 %v683
        %820 = vmatpush1.bf16.msra.mxu0 %v682
        %821 = vmatprep.subr.bf16.mxu0 %v685
        %822 = vmatpush1.bf16.msra.mxu0 %v684
        %823 = vmatprep.mubr.bf16.mxu0 %v424
        %824 = vmatmul.mubr.bf16.gmra.mrb[0].mxu0 %v421
        %v825 = vpop.f32.mrb[0].mxu0
        %v826 = vadd.f32 %v785, %v825
        %v827 = vpop.f32.mrb[0].mxu0
        %v828 = vadd.f32 %v787, %v827
        %v829 = vpop.f32.mrb[0].mxu0
        %v830 = vpop.f32.mrb[0].mxu0
        %831 = vdwg.mxu0
        %v900 = vunpack.c.l.b16 %v260
        %v901 = vunpack.c.h.b16 %v260
        %v902 = vunpack.c.l.b16 %v261
        %v903 = vunpack.c.h.b16 %v261
        %v904 = vunpack.c.l.b16 %v262
        %v905 = vunpack.c.h.b16 %v262
        %v906 = vunpack.c.l.b16 %v263
        %v907 = vunpack.c.h.b16 %v263
        %v908 = vunpack.c.l.b16 %v264
        %v909 = vunpack.c.h.b16 %v264
        %v910 = vunpack.c.l.b16 %v265
        %v911 = vunpack.c.h.b16 %v265
        %v912 = vunpack.c.l.b16 %v266
        %v913 = vunpack.c.h.b16 %v266
        %v914 = vunpack.c.l.b16 %v267
        %v915 = vunpack.c.h.b16 %v267
        %v916 = vunpack.c.l.b16 %v268
        %v917 = vunpack.c.h.b16 %v268
        %v918 = vunpack.c.l.b16 %v269
        %v919 = vunpack.c.h.b16 %v269
        %v920 = vunpack.c.l.b16 %v270
        %v921 = vunpack.c.h.b16 %v270
        %v922 = vunpack.c.l.b16 %v271
        %v923 = vunpack.c.h.b16 %v271
        %v924 = vunpack.c.l.b16 %v272
        %v925 = vunpack.c.h.b16 %v272
        %v926 = vunpack.c.l.b16 %v273
        %v927 = vunpack.c.h.b16 %v273
        %v928 = vunpack.c.l.b16 %v274
        %v929 = vunpack.c.h.b16 %v274
        %v930 = vunpack.c.l.b16 %v275
        %v931 = vunpack.c.h.b16 %v275
        %v932 = vunpack.c.l.b16 %v276
        %v933 = vunpack.c.h.b16 %v276
        %v934 = vunpack.c.l.b16 %v277
        %v935 = vunpack.c.h.b16 %v277
        %v936 = vunpack.c.l.b16 %v278
        %v937 = vunpack.c.h.b16 %v278
        %v938 = vunpack.c.l.b16 %v279
        %v939 = vunpack.c.h.b16 %v279
        %v940 = vunpack.c.l.b16 %v280
        %v941 = vunpack.c.h.b16 %v280
        %v942 = vunpack.c.l.b16 %v281
        %v943 = vunpack.c.h.b16 %v281
        %v944 = vunpack.c.l.b16 %v282
        %v945 = vunpack.c.h.b16 %v282
        %v946 = vunpack.c.l.b16 %v283
        %v947 = vunpack.c.h.b16 %v283
        %v948 = vunpack.c.l.b16 %v284
        %v949 = vunpack.c.h.b16 %v284
        %v950 = vunpack.c.l.b16 %v285
        %v951 = vunpack.c.h.b16 %v285
        %v952 = vunpack.c.l.b16 %v286
        %v953 = vunpack.c.h.b16 %v286
        %v954 = vunpack.c.l.b16 %v287
        %v955 = vunpack.c.h.b16 %v287
        %v956 = vunpack.c.l.b16 %v288
        %v957 = vunpack.c.h.b16 %v288
        %v958 = vunpack.c.l.b16 %v289
        %v959 = vunpack.c.h.b16 %v289
        %v960 = vunpack.c.l.b16 %v290
        %v961 = vunpack.c.h.b16 %v290
        %v962 = vunpack.c.l.b16 %v291
        %v963 = vunpack.c.h.b16 %v291
        %v964 = vunpack.c.l.b16 %v292
        %v965 = vunpack.c.h.b16 %v292
        %v966 = vunpack.c.l.b16 %v293
        %v967 = vunpack.c.h.b16 %v293
        %v968 = vunpack.c.l.b16 %v294
        %v969 = vunpack.c.h.b16 %v294
        %v970 = vunpack.c.l.b16 %v295
        %v971 = vunpack.c.h.b16 %v295
        %v972 = vunpack.c.l.b16 %v296
        %v973 = vunpack.c.h.b16 %v296
        %v974 = vunpack.c.l.b16 %v297
        %v975 = vunpack.c.h.b16 %v297
        %v976 = vunpack.c.l.b16 %v298
        %v977 = vunpack.c.h.b16 %v298
        %v978 = vunpack.c.l.b16 %v299
        %v979 = vunpack.c.h.b16 %v299
        %v980 = vunpack.c.l.b16 %v300
        %v981 = vunpack.c.h.b16 %v300
        %v982 = vunpack.c.l.b16 %v301
        %v983 = vunpack.c.h.b16 %v301
        %v984 = vunpack.c.l.b16 %v302
        %v985 = vunpack.c.h.b16 %v302
        %v986 = vunpack.c.l.b16 %v303
        %v987 = vunpack.c.h.b16 %v303
        %v988 = vunpack.c.l.b16 %v304
        %v989 = vunpack.c.h.b16 %v304
        %v990 = vunpack.c.l.b16 %v305
        %v991 = vunpack.c.h.b16 %v305
        %v992 = vunpack.c.l.b16 %v306
        %v993 = vunpack.c.h.b16 %v306
        %v994 = vunpack.c.l.b16 %v307
        %v995 = vunpack.c.h.b16 %v307
        %v996 = vunpack.c.l.b16 %v308
        %v997 = vunpack.c.h.b16 %v308
        %v998 = vunpack.c.l.b16 %v309
        %v999 = vunpack.c.h.b16 %v309
        %v1000 = vunpack.c.l.b16 %v310
        %v1001 = vunpack.c.h.b16 %v310
        %v1002 = vunpack.c.l.b16 %v311
        %v1003 = vunpack.c.h.b16 %v311
        %v1004 = vunpack.c.l.b16 %v312
        %v1005 = vunpack.c.h.b16 %v312
        %v1006 = vunpack.c.l.b16 %v313
        %v1007 = vunpack.c.h.b16 %v313
        %v1008 = vunpack.c.l.b16 %v314
        %v1009 = vunpack.c.h.b16 %v314
        %v1010 = vunpack.c.l.b16 %v315
        %v1011 = vunpack.c.h.b16 %v315
        %v1012 = vunpack.c.l.b16 %v316
        %v1013 = vunpack.c.h.b16 %v316
        %v1014 = vunpack.c.l.b16 %v317
        %v1015 = vunpack.c.h.b16 %v317
        %v1016 = vunpack.c.l.b16 %v318
        %v1017 = vunpack.c.h.b16 %v318
        %v1018 = vunpack.c.l.b16 %v319
        %v1019 = vunpack.c.h.b16 %v319
        %v1020 = vunpack.c.l.b16 %v320
        %v1021 = vunpack.c.h.b16 %v320
        %v1022 = vunpack.c.l.b16 %v321
        %v1023 = vunpack.c.h.b16 %v321
        %v1024 = vunpack.c.l.b16 %v322
        %v1025 = vunpack.c.h.b16 %v322
        %v1026 = vunpack.c.l.b16 %v323
        %v1027 = vunpack.c.h.b16 %v323
        %v1028 = vpack.c.b16 %v902, %v900
        %v1029 = vpack.c.b16 %v903, %v901
        %v1030 = vpack.c.b16 %v906, %v904
        %v1031 = vpack.c.b16 %v907, %v905
        %v1032 = vpack.c.b16 %v910, %v908
        %v1033 = vpack.c.b16 %v911, %v909
        %v1034 = vpack.c.b16 %v914, %v912
        %v1035 = vpack.c.b16 %v915, %v913
        %v1036 = vpack.c.b16 %v918, %v916
        %v1037 = vpack.c.b16 %v919, %v917
        %v1038 = vpack.c.b16 %v922, %v920
        %v1039 = vpack.c.b16 %v923, %v921
        %v1040 = vpack.c.b16 %v926, %v924
        %v1041 = vpack.c.b16 %v927, %v925
        %v1042 = vpack.c.b16 %v930, %v928
        %v1043 = vpack.c.b16 %v931, %v929
        %v1044 = vpack.c.b16 %v934, %v932
        %v1045 = vpack.c.b16 %v935, %v933
        %v1046 = vpack.c.b16 %v938, %v936
        %v1047 = vpack.c.b16 %v939, %v937
        %v1048 = vpack.c.b16 %v942, %v940
        %v1049 = vpack.c.b16 %v943, %v941
        %v1050 = vpack.c.b16 %v946, %v944
        %v1051 = vpack.c.b16 %v947, %v945
        %v1052 = vpack.c.b16 %v950, %v948
        %v1053 = vpack.c.b16 %v951, %v949
        %v1054 = vpack.c.b16 %v954, %v952
        %v1055 = vpack.c.b16 %v955, %v953
        %v1056 = vpack.c.b16 %v958, %v956
        %v1057 = vpack.c.b16 %v959, %v957
        %v1058 = vpack.c.b16 %v962, %v960
        %v1059 = vpack.c.b16 %v963, %v961
        %v1060 = vpack.c.b16 %v966, %v964
        %v1061 = vpack.c.b16 %v967, %v965
        %v1062 = vpack.c.b16 %v970, %v968
        %v1063 = vpack.c.b16 %v971, %v969
        %v1064 = vpack.c.b16 %v974, %v972
        %v1065 = vpack.c.b16 %v975, %v973
        %v1066 = vpack.c.b16 %v978, %v976
        %v1067 = vpack.c.b16 %v979, %v977
        %v1068 = vpack.c.b16 %v982, %v980
        %v1069 = vpack.c.b16 %v983, %v981
        %v1070 = vpack.c.b16 %v986, %v984
        %v1071 = vpack.c.b16 %v987, %v985
        %v1072 = vpack.c.b16 %v990, %v988
        %v1073 = vpack.c.b16 %v991, %v989
        %v1074 = vpack.c.b16 %v994, %v992
        %v1075 = vpack.c.b16 %v995, %v993
        %v1076 = vpack.c.b16 %v998, %v996
        %v1077 = vpack.c.b16 %v999, %v997
        %v1078 = vpack.c.b16 %v1002, %v1000
        %v1079 = vpack.c.b16 %v1003, %v1001
        %v1080 = vpack.c.b16 %v1006, %v1004
        %v1081 = vpack.c.b16 %v1007, %v1005
        %v1082 = vpack.c.b16 %v1010, %v1008
        %v1083 = vpack.c.b16 %v1011, %v1009
        %v1084 = vpack.c.b16 %v1014, %v1012
        %v1085 = vpack.c.b16 %v1015, %v1013
        %v1086 = vpack.c.b16 %v1018, %v1016
        %v1087 = vpack.c.b16 %v1019, %v1017
        %v1088 = vpack.c.b16 %v1022, %v1020
        %v1089 = vpack.c.b16 %v1023, %v1021
        %v1090 = vpack.c.b16 %v1026, %v1024
        %v1091 = vpack.c.b16 %v1027, %v1025
        %1156 = vmatprep.subr.bf16.mxu0 %v1029
        %1157 = vmatpush1.bf16.msra.mxu0 %v1028
        %1158 = vmatprep.subr.bf16.mxu0 %v1031
        %1159 = vmatpush1.bf16.msra.mxu0 %v1030
        %1160 = vmatprep.subr.bf16.mxu0 %v1033
        %1161 = vmatpush1.bf16.msra.mxu0 %v1032
        %1162 = vmatprep.subr.bf16.mxu0 %v1035
        %1163 = vmatpush1.bf16.msra.mxu0 %v1034
        %1164 = vmatprep.subr.bf16.mxu0 %v1037
        %1165 = vmatpush1.bf16.msra.mxu0 %v1036
        %1166 = vmatprep.subr.bf16.mxu0 %v1039
        %1167 = vmatpush1.bf16.msra.mxu0 %v1038
        %1168 = vmatprep.subr.bf16.mxu0 %v1041
        %1169 = vmatpush1.bf16.msra.mxu0 %v1040
        %1170 = vmatprep.subr.bf16.mxu0 %v1043
        %1171 = vmatpush1.bf16.msra.mxu0 %v1042
        %1172 = vmatprep.subr.bf16.mxu0 %v1045
        %1173 = vmatpush1.bf16.msra.mxu0 %v1044
        %1174 = vmatprep.subr.bf16.mxu0 %v1047
        %1175 = vmatpush1.bf16.msra.mxu0 %v1046
        %1176 = vmatprep.subr.bf16.mxu0 %v1049
        %1177 = vmatpush1.bf16.msra.mxu0 %v1048
        %1178 = vmatprep.subr.bf16.mxu0 %v1051
        %1179 = vmatpush1.bf16.msra.mxu0 %v1050
        %1180 = vmatprep.subr.bf16.mxu0 %v1053
        %1181 = vmatpush1.bf16.msra.mxu0 %v1052
        %1182 = vmatprep.subr.bf16.mxu0 %v1055
        %1183 = vmatpush1.bf16.msra.mxu0 %v1054
        %1184 = vmatprep.subr.bf16.mxu0 %v1057
        %1185 = vmatpush1.bf16.msra.mxu0 %v1056
        %1186 = vmatprep.subr.bf16.mxu0 %v1059
        %1187 = vmatpush1.bf16.msra.mxu0 %v1058
        %1188 = vmatprep.mubr.bf16.mxu0 %v411
        %1189 = vmatmul.mubr.bf16.gmra.mrb[0].mxu0 %v404
        %v1190 = vpop.f32.mrb[0].mxu0
        %v1191 = vadd.f32 %v826, %v1190
        %v1192 = vpop.f32.mrb[0].mxu0
        %v1193 = vadd.f32 %v828, %v1192
        %v1194 = vpop.f32.mrb[0].mxu0
        %v1195 = vpop.f32.mrb[0].mxu0
        %1196 = vdwg.mxu0
        %1197 = vmatprep.subr.bf16.mxu0 %v1061
        %1198 = vmatpush1.bf16.msra.mxu0 %v1060
        %1199 = vmatprep.subr.bf16.mxu0 %v1063
        %1200 = vmatpush1.bf16.msra.mxu0 %v1062
        %1201 = vmatprep.subr.bf16.mxu0 %v1065
        %1202 = vmatpush1.bf16.msra.mxu0 %v1064
        %1203 = vmatprep.subr.bf16.mxu0 %v1067
        %1204 = vmatpush1.bf16.msra.mxu0 %v1066
        %1205 = vmatprep.subr.bf16.mxu0 %v1069
        %1206 = vmatpush1.bf16.msra.mxu0 %v1068
        %1207 = vmatprep.subr.bf16.mxu0 %v1071
        %1208 = vmatpush1.bf16.msra.mxu0 %v1070
        %1209 = vmatprep.subr.bf16.mxu0 %v1073
        %1210 = vmatpush1.bf16.msra.mxu0 %v1072
        %1211 = vmatprep.subr.bf16.mxu0 %v1075
        %1212 = vmatpush1.bf16.msra.mxu0 %v1074
        %1213 = vmatprep.subr.bf16.mxu0 %v1077
        %1214 = vmatpush1.bf16.msra.mxu0 %v1076
        %1215 = vmatprep.subr.bf16.mxu0 %v1079
        %1216 = vmatpush1.bf16.msra.mxu0 %v1078
        %1217 = vmatprep.subr.bf16.mxu0 %v1081
        %1218 = vmatpush1.bf16.msra.mxu0 %v1080
        %1219 = vmatprep.subr.bf16.mxu0 %v1083
        %1220 = vmatpush1.bf16.msra.mxu0 %v1082
        %1221 = vmatprep.subr.bf16.mxu0 %v1085
        %1222 = vmatpush1.bf16.msra.mxu0 %v1084
        %1223 = vmatprep.subr.bf16.mxu0 %v1087
        %1224 = vmatpush1.bf16.msra.mxu0 %v1086
        %1225 = vmatprep.subr.bf16.mxu0 %v1089
        %1226 = vmatpush1.bf16.msra.mxu0 %v1088
        %1227 = vmatprep.subr.bf16.mxu0 %v1091
        %1228 = vmatpush1.bf16.msra.mxu0 %v1090
        %1229 = vmatprep.mubr.bf16.mxu0 %v413
        %1230 = vmatmul.mubr.bf16.gmra.mrb[0].mxu0 %v412
        %v1231 = vpop.f32.mrb[0].mxu0
        %v1232 = vadd.f32 %v1191, %v1231
        %v1233 = vpop.f32.mrb[0].mxu0
        %v1234 = vadd.f32 %v1193, %v1233
        %v1235 = vpop.f32.mrb[0].mxu0
        %v1236 = vpop.f32.mrb[0].mxu0
        %1237 = vdwg.mxu0
        %v1238 = vld [vmem:[%s257] sm:$0xf]
        %s1239 = scalar_lea.vmem %s2, 1024
        %v1240 = vld [vmem:[%s1239] sm:$0xff]
        %v1241 = vld [vmem:[%s1239 + $0x8] sm:$0xff]
        %v1242 = vld [vmem:[%s1239 + $0x10] sm:$0xff]
        %v1243 = vld [vmem:[%s1239 + $0x18] sm:$0xff]
        %v1244 = vld [vmem:[%s1239 + $0x20] sm:$0xff]
        %v1245 = vld [vmem:[%s1239 + $0x28] sm:$0xff]
        %v1246 = vld [vmem:[%s1239 + $0x30] sm:$0xff]
        %v1247 = vld [vmem:[%s1239 + $0x38] sm:$0xff]
        %v1248 = vld [vmem:[%s1239 + $0x40] sm:$0xff]
        %v1249 = vld [vmem:[%s1239 + $0x48] sm:$0xff]
        %v1250 = vld [vmem:[%s1239 + $0x50] sm:$0xff]
        %v1251 = vld [vmem:[%s1239 + $0x58] sm:$0xff]
        %v1252 = vld [vmem:[%s1239 + $0x60] sm:$0xff]
        %v1253 = vld [vmem:[%s1239 + $0x68] sm:$0xff]
        %v1254 = vld [vmem:[%s1239 + $0x70] sm:$0xff]
        %v1255 = vld [vmem:[%s1239 + $0x78] sm:$0xff]
        %v1256 = vld [vmem:[%s1239 + $0x80] sm:$0xff]
        %v1257 = vld [vmem:[%s1239 + $0x88] sm:$0xff]
        %v1258 = vld [vmem:[%s1239 + $0x90] sm:$0xff]
        %v1259 = vld [vmem:[%s1239 + $0x98] sm:$0xff]
        %v1260 = vld [vmem:[%s1239 + $0xa0] sm:$0xff]
        %v1261 = vld [vmem:[%s1239 + $0xa8] sm:$0xff]
        %v1262 = vld [vmem:[%s1239 + $0xb0] sm:$0xff]
        %v1263 = vld [vmem:[%s1239 + $0xb8] sm:$0xff]
        %v1264 = vld [vmem:[%s1239 + $0xc0] sm:$0xff]
        %v1265 = vld [vmem:[%s1239 + $0xc8] sm:$0xff]
        %v1266 = vld [vmem:[%s1239 + $0xd0] sm:$0xff]
        %v1267 = vld [vmem:[%s1239 + $0xd8] sm:$0xff]
        %v1268 = vld [vmem:[%s1239 + $0xe0] sm:$0xff]
        %v1269 = vld [vmem:[%s1239 + $0xe8] sm:$0xff]
        %v1270 = vld [vmem:[%s1239 + $0xf0] sm:$0xff]
        %v1271 = vld [vmem:[%s1239 + $0xf8] sm:$0xff]
        %v1272 = vld [vmem:[%s1239 + $0x100] sm:$0xff]
        %v1273 = vld [vmem:[%s1239 + $0x108] sm:$0xff]
        %v1274 = vld [vmem:[%s1239 + $0x110] sm:$0xff]
        %v1275 = vld [vmem:[%s1239 + $0x118] sm:$0xff]
        %v1276 = vld [vmem:[%s1239 + $0x120] sm:$0xff]
        %v1277 = vld [vmem:[%s1239 + $0x128] sm:$0xff]
        %v1278 = vld [vmem:[%s1239 + $0x130] sm:$0xff]
        %v1279 = vld [vmem:[%s1239 + $0x138] sm:$0xff]
        %v1280 = vld [vmem:[%s1239 + $0x140] sm:$0xff]
        %v1281 = vld [vmem:[%s1239 + $0x148] sm:$0xff]
        %v1282 = vld [vmem:[%s1239 + $0x150] sm:$0xff]
        %v1283 = vld [vmem:[%s1239 + $0x158] sm:$0xff]
        %v1284 = vld [vmem:[%s1239 + $0x160] sm:$0xff]
        %v1285 = vld [vmem:[%s1239 + $0x168] sm:$0xff]
        %v1286 = vld [vmem:[%s1239 + $0x170] sm:$0xff]
        %v1287 = vld [vmem:[%s1239 + $0x178] sm:$0xff]
        %v1288 = vld [vmem:[%s1239 + $0x180] sm:$0xff]
        %v1289 = vld [vmem:[%s1239 + $0x188] sm:$0xff]
        %v1290 = vld [vmem:[%s1239 + $0x190] sm:$0xff]
        %v1291 = vld [vmem:[%s1239 + $0x198] sm:$0xff]
        %v1292 = vld [vmem:[%s1239 + $0x1a0] sm:$0xff]
        %v1293 = vld [vmem:[%s1239 + $0x1a8] sm:$0xff]
        %v1294 = vld [vmem:[%s1239 + $0x1b0] sm:$0xff]
        %v1295 = vld [vmem:[%s1239 + $0x1b8] sm:$0xff]
        %v1296 = vld [vmem:[%s1239 + $0x1c0] sm:$0xff]
        %v1297 = vld [vmem:[%s1239 + $0x1c8] sm:$0xff]
        %v1298 = vld [vmem:[%s1239 + $0x1d0] sm:$0xff]
        %v1299 = vld [vmem:[%s1239 + $0x1d8] sm:$0xff]
        %v1300 = vld [vmem:[%s1239 + $0x1e0] sm:$0xff]
        %v1301 = vld [vmem:[%s1239 + $0x1e8] sm:$0xff]
        %v1302 = vld [vmem:[%s1239 + $0x1f0] sm:$0xff]
        %v1303 = vld [vmem:[%s1239 + $0x1f8] sm:$0xff]
        %v1306 = vunpack.c.l.s4 1966171168
        %v1307 = vunpack.c.0.s8 %v1306
        %v1308 = vlaneseq
        %v1309 = vshrl.u32 %v1308, 7
        %v1310 = vsub.s32 %v1307, %v1309
        %v1311 = vrot.slane %v1238, %v1310
        %v1312 = vcombine.high %v1311, %v1311
        %v1314 = vunpack.c.l.s4 1966171168
        %v1315 = vunpack.c.0.s8 %v1314
        %v1316 = vlaneseq
        %v1317 = vshrl.u32 %v1316, 7
        %v1318 = vsub.s32 %v1315, %v1317
        %v1319 = vrot.slane %v1311, %v1318
        %v1321 = vunpack.c.l.s4 1966171168
        %v1322 = vunpack.c.0.s8 %v1321
        %v1323 = vlaneseq
        %v1324 = vshrl.u32 %v1323, 7
        %v1325 = vsub.s32 %v1322, %v1324
        %v1326 = vrot.slane %v1312, %v1325
        %v1327 = vcombine.high %v1319, %v1319
        %v1328 = vcombine.high %v1326, %v1326
        %v1397 = vunpack.c.l.b16 %v1240
        %v1398 = vunpack.c.h.b16 %v1240
        %v1399 = vunpack.c.l.b16 %v1241
        %v1400 = vunpack.c.h.b16 %v1241
        %v1401 = vunpack.c.l.b16 %v1242
        %v1402 = vunpack.c.h.b16 %v1242
        %v1403 = vunpack.c.l.b16 %v1243
        %v1404 = vunpack.c.h.b16 %v1243
        %v1405 = vunpack.c.l.b16 %v1244
        %v1406 = vunpack.c.h.b16 %v1244
        %v1407 = vunpack.c.l.b16 %v1245
        %v1408 = vunpack.c.h.b16 %v1245
        %v1409 = vunpack.c.l.b16 %v1246
        %v1410 = vunpack.c.h.b16 %v1246
        %v1411 = vunpack.c.l.b16 %v1247
        %v1412 = vunpack.c.h.b16 %v1247
        %v1413 = vunpack.c.l.b16 %v1248
        %v1414 = vunpack.c.h.b16 %v1248
        %v1415 = vunpack.c.l.b16 %v1249
        %v1416 = vunpack.c.h.b16 %v1249
        %v1417 = vunpack.c.l.b16 %v1250
        %v1418 = vunpack.c.h.b16 %v1250
        %v1419 = vunpack.c.l.b16 %v1251
        %v1420 = vunpack.c.h.b16 %v1251
        %v1421 = vunpack.c.l.b16 %v1252
        %v1422 = vunpack.c.h.b16 %v1252
        %v1423 = vunpack.c.l.b16 %v1253
        %v1424 = vunpack.c.h.b16 %v1253
        %v1425 = vunpack.c.l.b16 %v1254
        %v1426 = vunpack.c.h.b16 %v1254
        %v1427 = vunpack.c.l.b16 %v1255
        %v1428 = vunpack.c.h.b16 %v1255
        %v1429 = vunpack.c.l.b16 %v1256
        %v1430 = vunpack.c.h.b16 %v1256
        %v1431 = vunpack.c.l.b16 %v1257
        %v1432 = vunpack.c.h.b16 %v1257
        %v1433 = vunpack.c.l.b16 %v1258
        %v1434 = vunpack.c.h.b16 %v1258
        %v1435 = vunpack.c.l.b16 %v1259
        %v1436 = vunpack.c.h.b16 %v1259
        %v1437 = vunpack.c.l.b16 %v1260
        %v1438 = vunpack.c.h.b16 %v1260
        %v1439 = vunpack.c.l.b16 %v1261
        %v1440 = vunpack.c.h.b16 %v1261
        %v1441 = vunpack.c.l.b16 %v1262
        %v1442 = vunpack.c.h.b16 %v1262
        %v1443 = vunpack.c.l.b16 %v1263
        %v1444 = vunpack.c.h.b16 %v1263
        %v1445 = vunpack.c.l.b16 %v1264
        %v1446 = vunpack.c.h.b16 %v1264
        %v1447 = vunpack.c.l.b16 %v1265
        %v1448 = vunpack.c.h.b16 %v1265
        %v1449 = vunpack.c.l.b16 %v1266
        %v1450 = vunpack.c.h.b16 %v1266
        %v1451 = vunpack.c.l.b16 %v1267
        %v1452 = vunpack.c.h.b16 %v1267
        %v1453 = vunpack.c.l.b16 %v1268
        %v1454 = vunpack.c.h.b16 %v1268
        %v1455 = vunpack.c.l.b16 %v1269
        %v1456 = vunpack.c.h.b16 %v1269
        %v1457 = vunpack.c.l.b16 %v1270
        %v1458 = vunpack.c.h.b16 %v1270
        %v1459 = vunpack.c.l.b16 %v1271
        %v1460 = vunpack.c.h.b16 %v1271
        %v1461 = vunpack.c.l.b16 %v1272
        %v1462 = vunpack.c.h.b16 %v1272
        %v1463 = vunpack.c.l.b16 %v1273
        %v1464 = vunpack.c.h.b16 %v1273
        %v1465 = vunpack.c.l.b16 %v1274
        %v1466 = vunpack.c.h.b16 %v1274
        %v1467 = vunpack.c.l.b16 %v1275
        %v1468 = vunpack.c.h.b16 %v1275
        %v1469 = vunpack.c.l.b16 %v1276
        %v1470 = vunpack.c.h.b16 %v1276
        %v1471 = vunpack.c.l.b16 %v1277
        %v1472 = vunpack.c.h.b16 %v1277
        %v1473 = vunpack.c.l.b16 %v1278
        %v1474 = vunpack.c.h.b16 %v1278
        %v1475 = vunpack.c.l.b16 %v1279
        %v1476 = vunpack.c.h.b16 %v1279
        %v1477 = vunpack.c.l.b16 %v1280
        %v1478 = vunpack.c.h.b16 %v1280
        %v1479 = vunpack.c.l.b16 %v1281
        %v1480 = vunpack.c.h.b16 %v1281
        %v1481 = vunpack.c.l.b16 %v1282
        %v1482 = vunpack.c.h.b16 %v1282
        %v1483 = vunpack.c.l.b16 %v1283
        %v1484 = vunpack.c.h.b16 %v1283
        %v1485 = vunpack.c.l.b16 %v1284
        %v1486 = vunpack.c.h.b16 %v1284
        %v1487 = vunpack.c.l.b16 %v1285
        %v1488 = vunpack.c.h.b16 %v1285
        %v1489 = vunpack.c.l.b16 %v1286
        %v1490 = vunpack.c.h.b16 %v1286
        %v1491 = vunpack.c.l.b16 %v1287
        %v1492 = vunpack.c.h.b16 %v1287
        %v1493 = vunpack.c.l.b16 %v1288
        %v1494 = vunpack.c.h.b16 %v1288
        %v1495 = vunpack.c.l.b16 %v1289
        %v1496 = vunpack.c.h.b16 %v1289
        %v1497 = vunpack.c.l.b16 %v1290
        %v1498 = vunpack.c.h.b16 %v1290
        %v1499 = vunpack.c.l.b16 %v1291
        %v1500 = vunpack.c.h.b16 %v1291
        %v1501 = vunpack.c.l.b16 %v1292
        %v1502 = vunpack.c.h.b16 %v1292
        %v1503 = vunpack.c.l.b16 %v1293
        %v1504 = vunpack.c.h.b16 %v1293
        %v1505 = vunpack.c.l.b16 %v1294
        %v1506 = vunpack.c.h.b16 %v1294
        %v1507 = vunpack.c.l.b16 %v1295
        %v1508 = vunpack.c.h.b16 %v1295
        %v1509 = vunpack.c.l.b16 %v1296
        %v1510 = vunpack.c.h.b16 %v1296
        %v1511 = vunpack.c.l.b16 %v1297
        %v1512 = vunpack.c.h.b16 %v1297
        %v1513 = vunpack.c.l.b16 %v1298
        %v1514 = vunpack.c.h.b16 %v1298
        %v1515 = vunpack.c.l.b16 %v1299
        %v1516 = vunpack.c.h.b16 %v1299
        %v1517 = vunpack.c.l.b16 %v1300
        %v1518 = vunpack.c.h.b16 %v1300
        %v1519 = vunpack.c.l.b16 %v1301
        %v1520 = vunpack.c.h.b16 %v1301
        %v1521 = vunpack.c.l.b16 %v1302
        %v1522 = vunpack.c.h.b16 %v1302
        %v1523 = vunpack.c.l.b16 %v1303
        %v1524 = vunpack.c.h.b16 %v1303
        %v1525 = vpack.c.b16 %v1399, %v1397
        %v1526 = vpack.c.b16 %v1400, %v1398
        %v1527 = vpack.c.b16 %v1403, %v1401
        %v1528 = vpack.c.b16 %v1404, %v1402
        %v1529 = vpack.c.b16 %v1407, %v1405
        %v1530 = vpack.c.b16 %v1408, %v1406
        %v1531 = vpack.c.b16 %v1411, %v1409
        %v1532 = vpack.c.b16 %v1412, %v1410
        %v1533 = vpack.c.b16 %v1415, %v1413
        %v1534 = vpack.c.b16 %v1416, %v1414
        %v1535 = vpack.c.b16 %v1419, %v1417
        %v1536 = vpack.c.b16 %v1420, %v1418
        %v1537 = vpack.c.b16 %v1423, %v1421
        %v1538 = vpack.c.b16 %v1424, %v1422
        %v1539 = vpack.c.b16 %v1427, %v1425
        %v1540 = vpack.c.b16 %v1428, %v1426
        %v1541 = vpack.c.b16 %v1431, %v1429
        %v1542 = vpack.c.b16 %v1432, %v1430
        %v1543 = vpack.c.b16 %v1435, %v1433
        %v1544 = vpack.c.b16 %v1436, %v1434
        %v1545 = vpack.c.b16 %v1439, %v1437
        %v1546 = vpack.c.b16 %v1440, %v1438
        %v1547 = vpack.c.b16 %v1443, %v1441
        %v1548 = vpack.c.b16 %v1444, %v1442
        %v1549 = vpack.c.b16 %v1447, %v1445
        %v1550 = vpack.c.b16 %v1448, %v1446
        %v1551 = vpack.c.b16 %v1451, %v1449
        %v1552 = vpack.c.b16 %v1452, %v1450
        %v1553 = vpack.c.b16 %v1455, %v1453
        %v1554 = vpack.c.b16 %v1456, %v1454
        %v1555 = vpack.c.b16 %v1459, %v1457
        %v1556 = vpack.c.b16 %v1460, %v1458
        %v1557 = vpack.c.b16 %v1463, %v1461
        %v1558 = vpack.c.b16 %v1464, %v1462
        %v1559 = vpack.c.b16 %v1467, %v1465
        %v1560 = vpack.c.b16 %v1468, %v1466
        %v1561 = vpack.c.b16 %v1471, %v1469
        %v1562 = vpack.c.b16 %v1472, %v1470
        %v1563 = vpack.c.b16 %v1475, %v1473
        %v1564 = vpack.c.b16 %v1476, %v1474
        %v1565 = vpack.c.b16 %v1479, %v1477
        %v1566 = vpack.c.b16 %v1480, %v1478
        %v1567 = vpack.c.b16 %v1483, %v1481
        %v1568 = vpack.c.b16 %v1484, %v1482
        %v1569 = vpack.c.b16 %v1487, %v1485
        %v1570 = vpack.c.b16 %v1488, %v1486
        %v1571 = vpack.c.b16 %v1491, %v1489
        %v1572 = vpack.c.b16 %v1492, %v1490
        %v1573 = vpack.c.b16 %v1495, %v1493
        %v1574 = vpack.c.b16 %v1496, %v1494
        %v1575 = vpack.c.b16 %v1499, %v1497
        %v1576 = vpack.c.b16 %v1500, %v1498
        %v1577 = vpack.c.b16 %v1503, %v1501
        %v1578 = vpack.c.b16 %v1504, %v1502
        %v1579 = vpack.c.b16 %v1507, %v1505
        %v1580 = vpack.c.b16 %v1508, %v1506
        %v1581 = vpack.c.b16 %v1511, %v1509
        %v1582 = vpack.c.b16 %v1512, %v1510
        %v1583 = vpack.c.b16 %v1515, %v1513
        %v1584 = vpack.c.b16 %v1516, %v1514
        %v1585 = vpack.c.b16 %v1519, %v1517
        %v1586 = vpack.c.b16 %v1520, %v1518
        %v1587 = vpack.c.b16 %v1523, %v1521
        %v1588 = vpack.c.b16 %v1524, %v1522
        %1653 = vmatprep.subr.bf16.mxu0 %v1526
        %1654 = vmatpush1.bf16.msra.mxu0 %v1525
        %1655 = vmatprep.subr.bf16.mxu0 %v1528
        %1656 = vmatpush1.bf16.msra.mxu0 %v1527
        %1657 = vmatprep.subr.bf16.mxu0 %v1530
        %1658 = vmatpush1.bf16.msra.mxu0 %v1529
        %1659 = vmatprep.subr.bf16.mxu0 %v1532
        %1660 = vmatpush1.bf16.msra.mxu0 %v1531
        %1661 = vmatprep.subr.bf16.mxu0 %v1534
        %1662 = vmatpush1.bf16.msra.mxu0 %v1533
        %1663 = vmatprep.subr.bf16.mxu0 %v1536
        %1664 = vmatpush1.bf16.msra.mxu0 %v1535
        %1665 = vmatprep.subr.bf16.mxu0 %v1538
        %1666 = vmatpush1.bf16.msra.mxu0 %v1537
        %1667 = vmatprep.subr.bf16.mxu0 %v1540
        %1668 = vmatpush1.bf16.msra.mxu0 %v1539
        %1669 = vmatprep.subr.bf16.mxu0 %v1542
        %1670 = vmatpush1.bf16.msra.mxu0 %v1541
        %1671 = vmatprep.subr.bf16.mxu0 %v1544
        %1672 = vmatpush1.bf16.msra.mxu0 %v1543
        %1673 = vmatprep.subr.bf16.mxu0 %v1546
        %1674 = vmatpush1.bf16.msra.mxu0 %v1545
        %1675 = vmatprep.subr.bf16.mxu0 %v1548
        %1676 = vmatpush1.bf16.msra.mxu0 %v1547
        %1677 = vmatprep.subr.bf16.mxu0 %v1550
        %1678 = vmatpush1.bf16.msra.mxu0 %v1549
        %1679 = vmatprep.subr.bf16.mxu0 %v1552
        %1680 = vmatpush1.bf16.msra.mxu0 %v1551
        %1681 = vmatprep.subr.bf16.mxu0 %v1554
        %1682 = vmatpush1.bf16.msra.mxu0 %v1553
        %1683 = vmatprep.subr.bf16.mxu0 %v1556
        %1684 = vmatpush1.bf16.msra.mxu0 %v1555
        %1685 = vmatprep.mubr.bf16.mxu0 %v1326
        %1686 = vmatmul.mubr.bf16.gmra.mrb[0].mxu0 %v1319
        %v1687 = vpop.f32.mrb[0].mxu0
        %v1688 = vadd.f32 0.0, %v1687
        %v1689 = vpop.f32.mrb[0].mxu0
        %v1690 = vadd.f32 0.0, %v1689
        %v1691 = vpop.f32.mrb[0].mxu0
        %v1692 = vpop.f32.mrb[0].mxu0
        %1693 = vdwg.mxu0
        %1694 = vmatprep.subr.bf16.mxu0 %v1558
        %1695 = vmatpush1.bf16.msra.mxu0 %v1557
        %1696 = vmatprep.subr.bf16.mxu0 %v1560
        %1697 = vmatpush1.bf16.msra.mxu0 %v1559
        %1698 = vmatprep.subr.bf16.mxu0 %v1562
        %1699 = vmatpush1.bf16.msra.mxu0 %v1561
        %1700 = vmatprep.subr.bf16.mxu0 %v1564
        %1701 = vmatpush1.bf16.msra.mxu0 %v1563
        %1702 = vmatprep.subr.bf16.mxu0 %v1566
        %1703 = vmatpush1.bf16.msra.mxu0 %v1565
        %1704 = vmatprep.subr.bf16.mxu0 %v1568
        %1705 = vmatpush1.bf16.msra.mxu0 %v1567
        %1706 = vmatprep.subr.bf16.mxu0 %v1570
        %1707 = vmatpush1.bf16.msra.mxu0 %v1569
        %1708 = vmatprep.subr.bf16.mxu0 %v1572
        %1709 = vmatpush1.bf16.msra.mxu0 %v1571
        %1710 = vmatprep.subr.bf16.mxu0 %v1574
        %1711 = vmatpush1.bf16.msra.mxu0 %v1573
        %1712 = vmatprep.subr.bf16.mxu0 %v1576
        %1713 = vmatpush1.bf16.msra.mxu0 %v1575
        %1714 = vmatprep.subr.bf16.mxu0 %v1578
        %1715 = vmatpush1.bf16.msra.mxu0 %v1577
        %1716 = vmatprep.subr.bf16.mxu0 %v1580
        %1717 = vmatpush1.bf16.msra.mxu0 %v1579
        %1718 = vmatprep.subr.bf16.mxu0 %v1582
        %1719 = vmatpush1.bf16.msra.mxu0 %v1581
        %1720 = vmatprep.subr.bf16.mxu0 %v1584
        %1721 = vmatpush1.bf16.msra.mxu0 %v1583
        %1722 = vmatprep.subr.bf16.mxu0 %v1586
        %1723 = vmatpush1.bf16.msra.mxu0 %v1585
        %1724 = vmatprep.subr.bf16.mxu0 %v1588
        %1725 = vmatpush1.bf16.msra.mxu0 %v1587
        %1726 = vmatprep.mubr.bf16.mxu0 %v1328
        %1727 = vmatmul.mubr.bf16.gmra.mrb[0].mxu0 %v1327
        %v1728 = vpop.f32.mrb[0].mxu0
        %v1729 = vadd.f32 %v1688, %v1728
        %v1730 = vpop.f32.mrb[0].mxu0
        %v1731 = vadd.f32 %v1690, %v1730
        %v1732 = vpop.f32.mrb[0].mxu0
        %v1733 = vpop.f32.mrb[0].mxu0
        %1734 = vdwg.mxu0
        %v1735 = vadd.f32 %v1232, %v1729
        %v1736 = vadd.f32 %v1234, %v1731
        %v1737 = vld [vmem:[%s257] sm:$0xf]
        %s1738 = scalar_lea.vmem %s2, 1536
        %v1739 = vld [vmem:[%s1738] sm:$0xff]
        %v1740 = vld [vmem:[%s1738 + $0x8] sm:$0xff]
        %v1741 = vld [vmem:[%s1738 + $0x10] sm:$0xff]
        %v1742 = vld [vmem:[%s1738 + $0x18] sm:$0xff]
        %v1743 = vld [vmem:[%s1738 + $0x20] sm:$0xff]
        %v1744 = vld [vmem:[%s1738 + $0x28] sm:$0xff]
        %v1745 = vld [vmem:[%s1738 + $0x30] sm:$0xff]
        %v1746 = vld [vmem:[%s1738 + $0x38] sm:$0xff]
        %v1747 = vld [vmem:[%s1738 + $0x40] sm:$0xff]
        %v1748 = vld [vmem:[%s1738 + $0x48] sm:$0xff]
        %v1749 = vld [vmem:[%s1738 + $0x50] sm:$0xff]
        %v1750 = vld [vmem:[%s1738 + $0x58] sm:$0xff]
        %v1751 = vld [vmem:[%s1738 + $0x60] sm:$0xff]
        %v1752 = vld [vmem:[%s1738 + $0x68] sm:$0xff]
        %v1753 = vld [vmem:[%s1738 + $0x70] sm:$0xff]
        %v1754 = vld [vmem:[%s1738 + $0x78] sm:$0xff]
        %v1755 = vld [vmem:[%s1738 + $0x80] sm:$0xff]
        %v1756 = vld [vmem:[%s1738 + $0x88] sm:$0xff]
        %v1757 = vld [vmem:[%s1738 + $0x90] sm:$0xff]
        %v1758 = vld [vmem:[%s1738 + $0x98] sm:$0xff]
        %v1759 = vld [vmem:[%s1738 + $0xa0] sm:$0xff]
        %v1760 = vld [vmem:[%s1738 + $0xa8] sm:$0xff]
        %v1761 = vld [vmem:[%s1738 + $0xb0] sm:$0xff]
        %v1762 = vld [vmem:[%s1738 + $0xb8] sm:$0xff]
        %v1763 = vld [vmem:[%s1738 + $0xc0] sm:$0xff]
        %v1764 = vld [vmem:[%s1738 + $0xc8] sm:$0xff]
        %v1765 = vld [vmem:[%s1738 + $0xd0] sm:$0xff]
        %v1766 = vld [vmem:[%s1738 + $0xd8] sm:$0xff]
        %v1767 = vld [vmem:[%s1738 + $0xe0] sm:$0xff]
        %v1768 = vld [vmem:[%s1738 + $0xe8] sm:$0xff]
        %v1769 = vld [vmem:[%s1738 + $0xf0] sm:$0xff]
        %v1770 = vld [vmem:[%s1738 + $0xf8] sm:$0xff]
        %v1771 = vld [vmem:[%s1738 + $0x100] sm:$0xff]
        %v1772 = vld [vmem:[%s1738 + $0x108] sm:$0xff]
        %v1773 = vld [vmem:[%s1738 + $0x110] sm:$0xff]
        %v1774 = vld [vmem:[%s1738 + $0x118] sm:$0xff]
        %v1775 = vld [vmem:[%s1738 + $0x120] sm:$0xff]
        %v1776 = vld [vmem:[%s1738 + $0x128] sm:$0xff]
        %v1777 = vld [vmem:[%s1738 + $0x130] sm:$0xff]
        %v1778 = vld [vmem:[%s1738 + $0x138] sm:$0xff]
        %v1779 = vld [vmem:[%s1738 + $0x140] sm:$0xff]
        %v1780 = vld [vmem:[%s1738 + $0x148] sm:$0xff]
        %v1781 = vld [vmem:[%s1738 + $0x150] sm:$0xff]
        %v1782 = vld [vmem:[%s1738 + $0x158] sm:$0xff]
        %v1783 = vld [vmem:[%s1738 + $0x160] sm:$0xff]
        %v1784 = vld [vmem:[%s1738 + $0x168] sm:$0xff]
        %v1785 = vld [vmem:[%s1738 + $0x170] sm:$0xff]
        %v1786 = vld [vmem:[%s1738 + $0x178] sm:$0xff]
        %v1787 = vld [vmem:[%s1738 + $0x180] sm:$0xff]
        %v1788 = vld [vmem:[%s1738 + $0x188] sm:$0xff]
        %v1789 = vld [vmem:[%s1738 + $0x190] sm:$0xff]
        %v1790 = vld [vmem:[%s1738 + $0x198] sm:$0xff]
        %v1791 = vld [vmem:[%s1738 + $0x1a0] sm:$0xff]
        %v1792 = vld [vmem:[%s1738 + $0x1a8] sm:$0xff]
        %v1793 = vld [vmem:[%s1738 + $0x1b0] sm:$0xff]
        %v1794 = vld [vmem:[%s1738 + $0x1b8] sm:$0xff]
        %v1795 = vld [vmem:[%s1738 + $0x1c0] sm:$0xff]
        %v1796 = vld [vmem:[%s1738 + $0x1c8] sm:$0xff]
        %v1797 = vld [vmem:[%s1738 + $0x1d0] sm:$0xff]
        %v1798 = vld [vmem:[%s1738 + $0x1d8] sm:$0xff]
        %v1799 = vld [vmem:[%s1738 + $0x1e0] sm:$0xff]
        %v1800 = vld [vmem:[%s1738 + $0x1e8] sm:$0xff]
        %v1801 = vld [vmem:[%s1738 + $0x1f0] sm:$0xff]
        %v1802 = vld [vmem:[%s1738 + $0x1f8] sm:$0xff]
        %v1805 = vunpack.c.l.s4 1966171168
        %v1806 = vunpack.c.0.s8 %v1805
        %v1807 = vlaneseq
        %v1808 = vshrl.u32 %v1807, 7
        %v1809 = vsub.s32 %v1806, %v1808
        %v1810 = vrot.slane %v1737, %v1809
        %v1811 = vcombine.high %v1810, %v1810
        %v1813 = vunpack.c.l.s4 1966171168
        %v1814 = vunpack.c.0.s8 %v1813
        %v1815 = vlaneseq
        %v1816 = vshrl.u32 %v1815, 7
        %v1817 = vsub.s32 %v1814, %v1816
        %v1818 = vrot.slane %v1810, %v1817
        %v1820 = vunpack.c.l.s4 1966171168
        %v1821 = vunpack.c.0.s8 %v1820
        %v1822 = vlaneseq
        %v1823 = vshrl.u32 %v1822, 7
        %v1824 = vsub.s32 %v1821, %v1823
        %v1825 = vrot.slane %v1811, %v1824
        %v1826 = vcombine.high %v1818, %v1818
        %v1827 = vcombine.high %v1825, %v1825
        %v1829 = vshrl.u32 %v1818, 16
        %v1832 = vshrl.u32 %v1825, 16
        %v1835 = vshrl.u32 %v1826, 16
        %v1838 = vshrl.u32 %v1827, 16
        %v1908 = vunpack.c.l.b16 %v1739
        %v1909 = vunpack.c.h.b16 %v1739
        %v1910 = vunpack.c.l.b16 %v1740
        %v1911 = vunpack.c.h.b16 %v1740
        %v1912 = vunpack.c.l.b16 %v1741
        %v1913 = vunpack.c.h.b16 %v1741
        %v1914 = vunpack.c.l.b16 %v1742
        %v1915 = vunpack.c.h.b16 %v1742
        %v1916 = vunpack.c.l.b16 %v1743
        %v1917 = vunpack.c.h.b16 %v1743
        %v1918 = vunpack.c.l.b16 %v1744
        %v1919 = vunpack.c.h.b16 %v1744
        %v1920 = vunpack.c.l.b16 %v1745
        %v1921 = vunpack.c.h.b16 %v1745
        %v1922 = vunpack.c.l.b16 %v1746
        %v1923 = vunpack.c.h.b16 %v1746
        %v1924 = vunpack.c.l.b16 %v1747
        %v1925 = vunpack.c.h.b16 %v1747
        %v1926 = vunpack.c.l.b16 %v1748
        %v1927 = vunpack.c.h.b16 %v1748
        %v1928 = vunpack.c.l.b16 %v1749
        %v1929 = vunpack.c.h.b16 %v1749
        %v1930 = vunpack.c.l.b16 %v1750
        %v1931 = vunpack.c.h.b16 %v1750
        %v1932 = vunpack.c.l.b16 %v1751
        %v1933 = vunpack.c.h.b16 %v1751
        %v1934 = vunpack.c.l.b16 %v1752
        %v1935 = vunpack.c.h.b16 %v1752
        %v1936 = vunpack.c.l.b16 %v1753
        %v1937 = vunpack.c.h.b16 %v1753
        %v1938 = vunpack.c.l.b16 %v1754
        %v1939 = vunpack.c.h.b16 %v1754
        %v1940 = vunpack.c.l.b16 %v1755
        %v1941 = vunpack.c.h.b16 %v1755
        %v1942 = vunpack.c.l.b16 %v1756
        %v1943 = vunpack.c.h.b16 %v1756
        %v1944 = vunpack.c.l.b16 %v1757
        %v1945 = vunpack.c.h.b16 %v1757
        %v1946 = vunpack.c.l.b16 %v1758
        %v1947 = vunpack.c.h.b16 %v1758
        %v1948 = vunpack.c.l.b16 %v1759
        %v1949 = vunpack.c.h.b16 %v1759
        %v1950 = vunpack.c.l.b16 %v1760
        %v1951 = vunpack.c.h.b16 %v1760
        %v1952 = vunpack.c.l.b16 %v1761
        %v1953 = vunpack.c.h.b16 %v1761
        %v1954 = vunpack.c.l.b16 %v1762
        %v1955 = vunpack.c.h.b16 %v1762
        %v1956 = vunpack.c.l.b16 %v1763
        %v1957 = vunpack.c.h.b16 %v1763
        %v1958 = vunpack.c.l.b16 %v1764
        %v1959 = vunpack.c.h.b16 %v1764
        %v1960 = vunpack.c.l.b16 %v1765
        %v1961 = vunpack.c.h.b16 %v1765
        %v1962 = vunpack.c.l.b16 %v1766
        %v1963 = vunpack.c.h.b16 %v1766
        %v1964 = vunpack.c.l.b16 %v1767
        %v1965 = vunpack.c.h.b16 %v1767
        %v1966 = vunpack.c.l.b16 %v1768
        %v1967 = vunpack.c.h.b16 %v1768
        %v1968 = vunpack.c.l.b16 %v1769
        %v1969 = vunpack.c.h.b16 %v1769
        %v1970 = vunpack.c.l.b16 %v1770
        %v1971 = vunpack.c.h.b16 %v1770
        %v1972 = vunpack.c.l.b16 %v1771
        %v1973 = vunpack.c.h.b16 %v1771
        %v1974 = vunpack.c.l.b16 %v1772
        %v1975 = vunpack.c.h.b16 %v1772
        %v1976 = vunpack.c.l.b16 %v1773
        %v1977 = vunpack.c.h.b16 %v1773
        %v1978 = vunpack.c.l.b16 %v1774
        %v1979 = vunpack.c.h.b16 %v1774
        %v1980 = vunpack.c.l.b16 %v1775
        %v1981 = vunpack.c.h.b16 %v1775
        %v1982 = vunpack.c.l.b16 %v1776
        %v1983 = vunpack.c.h.b16 %v1776
        %v1984 = vunpack.c.l.b16 %v1777
        %v1985 = vunpack.c.h.b16 %v1777
        %v1986 = vunpack.c.l.b16 %v1778
        %v1987 = vunpack.c.h.b16 %v1778
        %v1988 = vunpack.c.l.b16 %v1779
        %v1989 = vunpack.c.h.b16 %v1779
        %v1990 = vunpack.c.l.b16 %v1780
        %v1991 = vunpack.c.h.b16 %v1780
        %v1992 = vunpack.c.l.b16 %v1781
        %v1993 = vunpack.c.h.b16 %v1781
        %v1994 = vunpack.c.l.b16 %v1782
        %v1995 = vunpack.c.h.b16 %v1782
        %v1996 = vunpack.c.l.b16 %v1783
        %v1997 = vunpack.c.h.b16 %v1783
        %v1998 = vunpack.c.l.b16 %v1784
        %v1999 = vunpack.c.h.b16 %v1784
        %v2000 = vunpack.c.l.b16 %v1785
        %v2001 = vunpack.c.h.b16 %v1785
        %v2002 = vunpack.c.l.b16 %v1786
        %v2003 = vunpack.c.h.b16 %v1786
        %v2004 = vunpack.c.l.b16 %v1787
        %v2005 = vunpack.c.h.b16 %v1787
        %v2006 = vunpack.c.l.b16 %v1788
        %v2007 = vunpack.c.h.b16 %v1788
        %v2008 = vunpack.c.l.b16 %v1789
        %v2009 = vunpack.c.h.b16 %v1789
        %v2010 = vunpack.c.l.b16 %v1790
        %v2011 = vunpack.c.h.b16 %v1790
        %v2012 = vunpack.c.l.b16 %v1791
        %v2013 = vunpack.c.h.b16 %v1791
        %v2014 = vunpack.c.l.b16 %v1792
        %v2015 = vunpack.c.h.b16 %v1792
        %v2016 = vunpack.c.l.b16 %v1793
        %v2017 = vunpack.c.h.b16 %v1793
        %v2018 = vunpack.c.l.b16 %v1794
        %v2019 = vunpack.c.h.b16 %v1794
        %v2020 = vunpack.c.l.b16 %v1795
        %v2021 = vunpack.c.h.b16 %v1795
        %v2022 = vunpack.c.l.b16 %v1796
        %v2023 = vunpack.c.h.b16 %v1796
        %v2024 = vunpack.c.l.b16 %v1797
        %v2025 = vunpack.c.h.b16 %v1797
        %v2026 = vunpack.c.l.b16 %v1798
        %v2027 = vunpack.c.h.b16 %v1798
        %v2028 = vunpack.c.l.b16 %v1799
        %v2029 = vunpack.c.h.b16 %v1799
        %v2030 = vunpack.c.l.b16 %v1800
        %v2031 = vunpack.c.h.b16 %v1800
        %v2032 = vunpack.c.l.b16 %v1801
        %v2033 = vunpack.c.h.b16 %v1801
        %v2034 = vunpack.c.l.b16 %v1802
        %v2035 = vunpack.c.h.b16 %v1802
        %v2036 = vpack.c.b16 %v1910, %v1908
        %v2037 = vpack.c.b16 %v1911, %v1909
        %v2038 = vpack.c.b16 %v1914, %v1912
        %v2039 = vpack.c.b16 %v1915, %v1913
        %v2040 = vpack.c.b16 %v1918, %v1916
        %v2041 = vpack.c.b16 %v1919, %v1917
        %v2042 = vpack.c.b16 %v1922, %v1920
        %v2043 = vpack.c.b16 %v1923, %v1921
        %v2044 = vpack.c.b16 %v1926, %v1924
        %v2045 = vpack.c.b16 %v1927, %v1925
        %v2046 = vpack.c.b16 %v1930, %v1928
        %v2047 = vpack.c.b16 %v1931, %v1929
        %v2048 = vpack.c.b16 %v1934, %v1932
        %v2049 = vpack.c.b16 %v1935, %v1933
        %v2050 = vpack.c.b16 %v1938, %v1936
        %v2051 = vpack.c.b16 %v1939, %v1937
        %v2052 = vpack.c.b16 %v1942, %v1940
        %v2053 = vpack.c.b16 %v1943, %v1941
        %v2054 = vpack.c.b16 %v1946, %v1944
        %v2055 = vpack.c.b16 %v1947, %v1945
        %v2056 = vpack.c.b16 %v1950, %v1948
        %v2057 = vpack.c.b16 %v1951, %v1949
        %v2058 = vpack.c.b16 %v1954, %v1952
        %v2059 = vpack.c.b16 %v1955, %v1953
        %v2060 = vpack.c.b16 %v1958, %v1956
        %v2061 = vpack.c.b16 %v1959, %v1957
        %v2062 = vpack.c.b16 %v1962, %v1960
        %v2063 = vpack.c.b16 %v1963, %v1961
        %v2064 = vpack.c.b16 %v1966, %v1964
        %v2065 = vpack.c.b16 %v1967, %v1965
        %v2066 = vpack.c.b16 %v1970, %v1968
        %v2067 = vpack.c.b16 %v1971, %v1969
        %v2068 = vpack.c.b16 %v1974, %v1972
        %v2069 = vpack.c.b16 %v1975, %v1973
        %v2070 = vpack.c.b16 %v1978, %v1976
        %v2071 = vpack.c.b16 %v1979, %v1977
        %v2072 = vpack.c.b16 %v1982, %v1980
        %v2073 = vpack.c.b16 %v1983, %v1981
        %v2074 = vpack.c.b16 %v1986, %v1984
        %v2075 = vpack.c.b16 %v1987, %v1985
        %v2076 = vpack.c.b16 %v1990, %v1988
        %v2077 = vpack.c.b16 %v1991, %v1989
        %v2078 = vpack.c.b16 %v1994, %v1992
        %v2079 = vpack.c.b16 %v1995, %v1993
        %v2080 = vpack.c.b16 %v1998, %v1996
        %v2081 = vpack.c.b16 %v1999, %v1997
        %v2082 = vpack.c.b16 %v2002, %v2000
        %v2083 = vpack.c.b16 %v2003, %v2001
        %v2084 = vpack.c.b16 %v2006, %v2004
        %v2085 = vpack.c.b16 %v2007, %v2005
        %v2086 = vpack.c.b16 %v2010, %v2008
        %v2087 = vpack.c.b16 %v2011, %v2009
        %v2088 = vpack.c.b16 %v2014, %v2012
        %v2089 = vpack.c.b16 %v2015, %v2013
        %v2090 = vpack.c.b16 %v2018, %v2016
        %v2091 = vpack.c.b16 %v2019, %v2017
        %v2092 = vpack.c.b16 %v2022, %v2020
        %v2093 = vpack.c.b16 %v2023, %v2021
        %v2094 = vpack.c.b16 %v2026, %v2024
        %v2095 = vpack.c.b16 %v2027, %v2025
        %v2096 = vpack.c.b16 %v2030, %v2028
        %v2097 = vpack.c.b16 %v2031, %v2029
        %v2098 = vpack.c.b16 %v2034, %v2032
        %v2099 = vpack.c.b16 %v2035, %v2033
        %2164 = vmatprep.subr.bf16.mxu0 %v2037
        %2165 = vmatpush1.bf16.msra.mxu0 %v2036
        %2166 = vmatprep.subr.bf16.mxu0 %v2039
        %2167 = vmatpush1.bf16.msra.mxu0 %v2038
        %2168 = vmatprep.subr.bf16.mxu0 %v2041
        %2169 = vmatpush1.bf16.msra.mxu0 %v2040
        %2170 = vmatprep.subr.bf16.mxu0 %v2043
        %2171 = vmatpush1.bf16.msra.mxu0 %v2042
        %2172 = vmatprep.subr.bf16.mxu0 %v2045
        %2173 = vmatpush1.bf16.msra.mxu0 %v2044
        %2174 = vmatprep.subr.bf16.mxu0 %v2047
        %2175 = vmatpush1.bf16.msra.mxu0 %v2046
        %2176 = vmatprep.subr.bf16.mxu0 %v2049
        %2177 = vmatpush1.bf16.msra.mxu0 %v2048
        %2178 = vmatprep.subr.bf16.mxu0 %v2051
        %2179 = vmatpush1.bf16.msra.mxu0 %v2050
        %2180 = vmatprep.subr.bf16.mxu0 %v2053
        %2181 = vmatpush1.bf16.msra.mxu0 %v2052
        %2182 = vmatprep.subr.bf16.mxu0 %v2055
        %2183 = vmatpush1.bf16.msra.mxu0 %v2054
        %2184 = vmatprep.subr.bf16.mxu0 %v2057
        %2185 = vmatpush1.bf16.msra.mxu0 %v2056
        %2186 = vmatprep.subr.bf16.mxu0 %v2059
        %2187 = vmatpush1.bf16.msra.mxu0 %v2058
        %2188 = vmatprep.subr.bf16.mxu0 %v2061
        %2189 = vmatpush1.bf16.msra.mxu0 %v2060
        %2190 = vmatprep.subr.bf16.mxu0 %v2063
        %2191 = vmatpush1.bf16.msra.mxu0 %v2062
        %2192 = vmatprep.subr.bf16.mxu0 %v2065
        %2193 = vmatpush1.bf16.msra.mxu0 %v2064
        %2194 = vmatprep.subr.bf16.mxu0 %v2067
        %2195 = vmatpush1.bf16.msra.mxu0 %v2066
        %2196 = vmatprep.mubr.bf16.mxu0 %v1832
        %2197 = vmatmul.mubr.bf16.gmra.mrb[0].mxu0 %v1829
        %v2198 = vpop.f32.mrb[0].mxu0
        %v2199 = vadd.f32 0.0, %v2198
        %v2200 = vpop.f32.mrb[0].mxu0
        %v2201 = vadd.f32 0.0, %v2200
        %v2202 = vpop.f32.mrb[0].mxu0
        %v2203 = vpop.f32.mrb[0].mxu0
        %2204 = vdwg.mxu0
        %2205 = vmatprep.subr.bf16.mxu0 %v2069
        %2206 = vmatpush1.bf16.msra.mxu0 %v2068
        %2207 = vmatprep.subr.bf16.mxu0 %v2071
        %2208 = vmatpush1.bf16.msra.mxu0 %v2070
        %2209 = vmatprep.subr.bf16.mxu0 %v2073
        %2210 = vmatpush1.bf16.msra.mxu0 %v2072
        %2211 = vmatprep.subr.bf16.mxu0 %v2075
        %2212 = vmatpush1.bf16.msra.mxu0 %v2074
        %2213 = vmatprep.subr.bf16.mxu0 %v2077
        %2214 = vmatpush1.bf16.msra.mxu0 %v2076
        %2215 = vmatprep.subr.bf16.mxu0 %v2079
        %2216 = vmatpush1.bf16.msra.mxu0 %v2078
        %2217 = vmatprep.subr.bf16.mxu0 %v2081
        %2218 = vmatpush1.bf16.msra.mxu0 %v2080
        %2219 = vmatprep.subr.bf16.mxu0 %v2083
        %2220 = vmatpush1.bf16.msra.mxu0 %v2082
        %2221 = vmatprep.subr.bf16.mxu0 %v2085
        %2222 = vmatpush1.bf16.msra.mxu0 %v2084
        %2223 = vmatprep.subr.bf16.mxu0 %v2087
        %2224 = vmatpush1.bf16.msra.mxu0 %v2086
        %2225 = vmatprep.subr.bf16.mxu0 %v2089
        %2226 = vmatpush1.bf16.msra.mxu0 %v2088
        %2227 = vmatprep.subr.bf16.mxu0 %v2091
        %2228 = vmatpush1.bf16.msra.mxu0 %v2090
        %2229 = vmatprep.subr.bf16.mxu0 %v2093
        %2230 = vmatpush1.bf16.msra.mxu0 %v2092
        %2231 = vmatprep.subr.bf16.mxu0 %v2095
        %2232 = vmatpush1.bf16.msra.mxu0 %v2094
        %2233 = vmatprep.subr.bf16.mxu0 %v2097
        %2234 = vmatpush1.bf16.msra.mxu0 %v2096
        %2235 = vmatprep.subr.bf16.mxu0 %v2099
        %2236 = vmatpush1.bf16.msra.mxu0 %v2098
        %2237 = vmatprep.mubr.bf16.mxu0 %v1838
        %2238 = vmatmul.mubr.bf16.gmra.mrb[0].mxu0 %v1835
        %v2239 = vpop.f32.mrb[0].mxu0
        %v2240 = vadd.f32 %v2199, %v2239
        %v2241 = vpop.f32.mrb[0].mxu0
        %v2242 = vadd.f32 %v2201, %v2241
        %v2243 = vpop.f32.mrb[0].mxu0
        %v2244 = vpop.f32.mrb[0].mxu0
        %2245 = vdwg.mxu0
        %v2246 = vadd.f32 %v1735, %v2240
        %v2247 = vadd.f32 %v1736, %v2242
        %v2248 = vld [vmem:[%s3] sm:$0x3]
        %v2250 = vlaneseq
        %v2251 = vshrl.u32 %v2250, 7
        %v2252 = vsub.s32 0, %v2251
        %v2253 = vrot.slane %v2248, %v2252
        %v2254 = vlaneseq
        %v2255 = vshrl.u32 %v2254, 7
        %v2256 = vsub.s32 1, %v2255
        %v2257 = vrot.slane %v2248, %v2256
        %v2260 = vadd.f32 %v2246, %v2253
        %v2261 = vadd.f32 %v2247, %v2257
        %v2262 = vmax.f32 %v2260, 0.0
        %v2263 = vmax.f32 %v2261, 0.0
        %v2266 = vcombine.low %v2262, %v2263
        %v2268 = vunpack.c.l.s4 1966171168
        %v2269 = vunpack.c.0.s8 %v2268
        %v2270 = vlaneseq
        %v2271 = vshrl.u32 %v2270, 7
        %v2272 = vsub.s32 %v2269, %v2271
        %v2273 = vrot.slane %v2266, %v2272
        %v2275 = vunpack.c.l.s4 1966171168
        %v2276 = vunpack.c.0.s8 %v2275
        %v2277 = vlaneseq
        %v2278 = vshrl.u32 %v2277, 7
        %v2279 = vsub.s32 %v2276, %v2278
        %v2280 = vrot.slane %v2273, %v2279
        %v2282 = vlaneseq
        %vm2283 = vcmp.ge.s32.totalorder %v2282, 0
        %vm2284 = vcmp.lt.s32.totalorder %v2282, 256
        %vm2285 = vmand %vm2283, %vm2284
        %2286 = vst.msk [vmem:[%s240] sm:$0x3] %vm2285, %v2280
        %s2287 = sand.u32 %s140, 1
        %s2288 = scalar_lea.sflag [#allocation3], %s2287
        %s2289 = sand.u32 %s140, 1
        %s2290 = smul.addr %s2289, 2
        %s2291 = scalar_lea.vmem [#allocation2], %s2290
        // Predicated region
        $region37: #{_lambda_.7} parent=35 // pred_check
          %p2292 = pneg %p150
        $region38: #{_lambda_.7} parent=35 // pred_check_branch
          %2294 = sbr.rel (%p2292) target = $region40
        $region39: #{_lambda_.7} parent=35 // pred_region
          %s2296 = ssub.s32 32, 32
          %2297 = vsyncadd %s2288, %s2296
          %s2298 = smul.addr %s23, 2
          %s2299 = smul.addr %s22, 2
          %s2300 = sadd.s32 %s2298, %s2299
          %s2301 = smul.addr %s2300, 16
          %s2302 = scalar_lea.hbm %s4, %s2301
          %s2304 = sshll.u32 %s2291, 4
          %s2305 = int_to_ptr.vmem [resolvable:$true] %s2304
          %2307 = dma.vmem_to_hbm [thread:$0]  %s2305, 32, %s2302, %s2288
        $region40: #{_lambda_.7} parent=35 // pred_fallthru
          _
      $region36: #{_lambda_.7} parent=5 // pred_fallthru
        _
      %p2308 = scmp.le.s32.totalorder 2, %s13
      // Predicated region
      $region41: #{_lambda_.7} parent=5 // pred_check
        %p2309 = pneg %p2308
      $region42: #{_lambda_.7} parent=5 // pred_check_branch
        %2311 = sbr.rel (%p2309) target = $region44
      $region43: #{_lambda_.7} parent=5 // pred_region
        %s2312 = ssub.s32 %s13, 2
        // Predicated region
        $region45: #{_lambda_.7} parent=43 // pred_check
          %p2313 = pneg %p156
        $region46: #{_lambda_.7} parent=43 // pred_check_branch
          %2315 = sbr.rel (%p2313) target = $region48
        $region47: #{_lambda_.7} parent=43 // pred_region
          %s2316 = sand.u32 %s141, 1
          %s2317 = scalar_lea.sflag [#allocation3], %s2316
          %s2318 = sand.u32 %s141, 1
          %s2319 = smul.addr %s2318, 2
          %s2320 = scalar_lea.vmem [#allocation2], %s2319
          %2321 = dma.done %s2317, 32
        $region48: #{_lambda_.7} parent=43 // pred_fallthru
          _
      $region44: #{_lambda_.7} parent=5 // pred_fallthru
        _
    $region6: #{_lambda_.7} parent=1 // loop_footer
      %s17 = sadd.s32 1, %s13
    $region7: #{_lambda_.7} parent=1 // loop_footer_branch
      %12 = sbr.rel target = $region3
    $region8: #{_lambda_.7} parent=1 // loop_exit
      _
    %2322 = vsyncpa [#allocation3], 1
    %s2323 = scalar_lea.sflag [#allocation3], 1
    %2324 = vsyncpa %s2323, 1

</llo_original>
